<compile_context>
chip_gen: v7x
topology: tpu7x:2x2x1
jax: 0.10.0
libtpu: 0.0.40
codegen_flags: <defaults>
</compile_context>

<pallas_src>
import numpy as np
import jax
import jax.numpy as jnp
from jax.experimental import pallas as pl
from jax.experimental.pallas import tpu as pltpu

MULTIRES = 6
IN_DIM = 3
NFREQ_DIM = IN_DIM * MULTIRES            # 18
EMB_DIM = IN_DIM * (1 + 2 * MULTIRES)    # 39
HIDDEN = 64
OUT_DIM = 4
TM = 1024                                # points per grid step (lane axis); sweep 1024-2048


# ---------------- math helpers (traced inside the kernel) ----------------

def _layernorm_feat(x, eps=1e-5):
    # torch.nn.LayerNorm(dim, elementwise_affine=False): biased variance, eps=1e-5.
    # Features live on axis 0 (sublane axis) in the transposed layout.
    mu = jnp.mean(x, axis=0, keepdims=True)
    xc = x - mu
    var = jnp.mean(xc * xc, axis=0, keepdims=True)
    return xc * jax.lax.rsqrt(var + eps)


def _softplus100(x, beta=100.0, threshold=20.0):
    # torch.nn.Softplus(beta=100): 1/beta*log1p(exp(beta*x)); linear above threshold.
    bx = x * beta
    sp = jnp.log1p(jnp.exp(jnp.minimum(bx, threshold))) / beta
    return jnp.where(bx > threshold, x, sp)


# ------------------------------ kernel ------------------------------------

def implicit_kernel(x_ref, r_ref,
                    w0x_ref, w0s_ref, w0c_ref, b0_ref,
                    w1h_ref, w1x_ref, w1s_ref, w1c_ref, b1_ref,
                    w2h_ref, w2x_ref, w2s_ref, w2c_ref, b2_ref,
                    o_ref):
    x = x_ref[...]                                                       # (3, TM)

    # Positional embedding, fully lane-dense: scaled[3k+j, n] = 2^k * x[j, n].
    scaled = jnp.dot(r_ref[...], x, preferred_element_type=jnp.float32)  # (18, TM)
    s = jnp.sin(scaled)
    c = jnp.cos(scaled)
    # TODO(synk): double-angle recurrence for sin/cos would need per-frequency
    # sublane shuffles in this layout; direct sin/cos on the lane-dense block
    # is ~10% of the EUP work, so it is kept.

    def emb_term(wx_ref, ws_ref, wc_ref):
        # Equivalent of emb @ W_emb in the row-major reference (no concat).
        return (jnp.dot(wx_ref[...], x, preferred_element_type=jnp.float32)
                + jnp.dot(ws_ref[...], s, preferred_element_type=jnp.float32)
                + jnp.dot(wc_ref[...], c, preferred_element_type=jnp.float32))

    # layer 0: Linear(39 -> H) -> LayerNorm -> Softplus(beta=100)
    h = emb_term(w0x_ref, w0s_ref, w0c_ref) + b0_ref[...]                # (H, TM)
    h = _softplus100(_layernorm_feat(h))

    # layer 1: Linear(H+39 -> H) == W_h @ h + W_emb @ emb  (split matmul)
    h = (jnp.dot(w1h_ref[...], h, preferred_element_type=jnp.float32)
         + emb_term(w1x_ref, w1s_ref, w1c_ref) + b1_ref[...])
    h = _softplus100(_layernorm_feat(h))

    # layer 2 (last): Linear only
    out = (jnp.dot(w2h_ref[...], h, preferred_element_type=jnp.float32)
           + emb_term(w2x_ref, w2s_ref, w2c_ref) + b2_ref[...])          # (OUT, TM)
    o_ref[...] = out.astype(o_ref.dtype)


# ------------------------------ wrapper ------------------------------------

def _round_up(n, m):
    return ((n + m - 1) // m) * m


def _split_emb_weight(w_emb):
    """w_emb: (EMB_DIM, out) slice in torch embedding order -> (out,3), (out,18), (out,18)."""
    wt = w_emb.T                                                    # (out, 39)
    sin_cols = np.array([3 + 6 * k + j for k in range(MULTIRES) for j in range(IN_DIM)])
    cos_cols = sin_cols + IN_DIM
    return wt[:, :IN_DIM], wt[:, sin_cols], wt[:, cos_cols]


def _freq_projection():
    """R (18, 3) with R[3k+j, j] = 2^k so that R @ x_t stacks all scaled coords."""
    r = np.zeros((NFREQ_DIM, IN_DIM), np.float32)
    for k in range(MULTIRES):
        r[IN_DIM * k:IN_DIM * (k + 1), :] = (2.0 ** k) * np.eye(IN_DIM, dtype=np.float32)
    return jnp.asarray(r)


def implicit_function(x, params, tm=TM):
    """x: (N, 3) float32; params: (w0,b0,w1,b1,w2,b2) with weights (in,out), biases (1,out)."""
    N = x.shape[0]
    w0, b0, w1, b1, w2, b2 = params
    H = w0.shape[1]

    # ---- host-side parameter plumbing (done once, outside the kernel) ----
    w0x, w0s, w0c = _split_emb_weight(w0)            # (H,3), (H,18), (H,18)
    w1h = w1[:H].T                                    # (H, H)
    w1x, w1s, w1c = _split_emb_weight(w1[H:])
    w2h = w2[:H].T                                    # (OUT, H)
    w2x, w2s, w2c = _split_emb_weight(w2[H:])
    b0t, b1t, b2t = b0.T, b1.T, b2.T                  # (H,1), (H,1), (OUT,1)
    rproj = _freq_projection()

    # ---- feature-major input, padded so the lane axis is a multiple of tm ----
    tm = min(tm, _round_up(max(N, 1), 128))           # tiny inputs: don't over-pad
    n_pad = _round_up(N, tm)
    xt = jnp.pad(x.astype(jnp.float32).T, ((0, 0), (0, n_pad - N)))   # (3, n_pad)

    def wspec(arr):
        # grid-invariant block (constant index_map -> no per-step re-DMA)
        return pl.BlockSpec(arr.shape, lambda i: (0, 0))

    out_t = pl.pallas_call(
        implicit_kernel,
        out_shape=jax.ShapeDtypeStruct((OUT_DIM, n_pad), jnp.float32),
        grid=(n_pad // tm,),
        in_specs=[
            pl.BlockSpec((IN_DIM, tm), lambda i: (0, i)),
            wspec(rproj),
            wspec(w0x), wspec(w0s), wspec(w0c), wspec(b0t),
            wspec(w1h), wspec(w1x), wspec(w1s), wspec(w1c), wspec(b1t),
            wspec(w2h), wspec(w2x), wspec(w2s), wspec(w2c), wspec(b2t),
        ],
        out_specs=pl.BlockSpec((OUT_DIM, tm), lambda i: (0, i)),
        compiler_params=pltpu.CompilerParams(dimension_semantics=("parallel",)),
    )(xt, rproj,
      w0x, w0s, w0c, b0t,
      w1h, w1x, w1s, w1c, b1t,
      w2h, w2x, w2s, w2c, b2t)

    return out_t[:, :N].T                             # (N, OUT_DIM)


# --------------------------- pure-JAX reference -----------------------------

def _embed_ref(x):
    parts = [x]
    for k in range(MULTIRES):
        f = jnp.float32(2.0 ** k)
        parts.append(jnp.sin(x * f))
        parts.append(jnp.cos(x * f))
    return jnp.concatenate(parts, axis=-1)


def _layernorm_ref(x, eps=1e-5):
    mu = jnp.mean(x, axis=-1, keepdims=True)
    xc = x - mu
    var = jnp.mean(xc * xc, axis=-1, keepdims=True)
    return xc * jax.lax.rsqrt(var + eps)


def reference(x, params):
    w0, b0, w1, b1, w2, b2 = params
    emb = _embed_ref(x.astype(jnp.float32))
    h = _softplus100(_layernorm_ref(emb @ w0 + b0))
    h = _softplus100(_layernorm_ref(jnp.concatenate([h, emb], axis=-1) @ w1 + b1))
    return jnp.concatenate([h, emb], axis=-1) @ w2 + b2


# ------------------------------ main ----------------------------------------

if __name__ == "__main__":
    key = jax.random.PRNGKey(0)
    kx, k0, k1, k2, kb0, kb1, kb2 = jax.random.split(key, 7)

    N = 300   # deliberately NOT a multiple of 128/TM: exercises the padded tail
    x = jax.random.normal(kx, (N, IN_DIM), dtype=jnp.float32)

    # Deterministic synthetic parameters (Linear weights stored as (in, out)).
    def init_w(k, fan_in, fan_out):
        return jax.random.normal(k, (fan_in, fan_out), dtype=jnp.float32) / jnp.sqrt(fan_in)

    w0 = init_w(k0, EMB_DIM, HIDDEN)
    w1 = init_w(k1, HIDDEN + EMB_DIM, HIDDEN)
    w2 = init_w(k2, HIDDEN + EMB_DIM, OUT_DIM)
    b0 = 0.01 * jax.random.normal(kb0, (1, HIDDEN), dtype=jnp.float32)
    b1 = 0.01 * jax.random.normal(kb1, (1, HIDDEN), dtype=jnp.float32)
    b2 = 0.01 * jax.random.normal(kb2, (1, OUT_DIM), dtype=jnp.float32)
    params = (w0, b0, w1, b1, w2, b2)

    out = jax.block_until_ready(implicit_function(x, params))
    ref = jax.block_until_ready(reference(x, params))

    assert out.shape == (N, OUT_DIM)
    max_err = float(jnp.max(jnp.abs(out - ref)))
    assert jnp.allclose(out, ref, atol=1e-4, rtol=1e-4), max_err

    print("KERNEL_OK")
</pallas_src>

<mosaic_0001>
module attributes {stable_mosaic.version = 11 : i64} {
  func.func @implicit_kernel(%arg0: i32, %arg1: memref<3x384xf32, #tpu.memory_space<vmem>>, %arg2: memref<18x3xf32, #tpu.memory_space<vmem>>, %arg3: memref<64x3xf32, #tpu.memory_space<vmem>>, %arg4: memref<64x18xf32, #tpu.memory_space<vmem>>, %arg5: memref<64x18xf32, #tpu.memory_space<vmem>>, %arg6: memref<64x1xf32, #tpu.memory_space<vmem>>, %arg7: memref<64x64xf32, #tpu.memory_space<vmem>>, %arg8: memref<64x3xf32, #tpu.memory_space<vmem>>, %arg9: memref<64x18xf32, #tpu.memory_space<vmem>>, %arg10: memref<64x18xf32, #tpu.memory_space<vmem>>, %arg11: memref<64x1xf32, #tpu.memory_space<vmem>>, %arg12: memref<4x64xf32, #tpu.memory_space<vmem>>, %arg13: memref<4x3xf32, #tpu.memory_space<vmem>>, %arg14: memref<4x18xf32, #tpu.memory_space<vmem>>, %arg15: memref<4x18xf32, #tpu.memory_space<vmem>>, %arg16: memref<4x1xf32, #tpu.memory_space<vmem>>, %arg17: memref<4x384xf32, #tpu.memory_space<vmem>>) attributes {dimension_semantics = [#tpu.dimension_semantics<parallel>], iteration_bounds = array<i64: 1>, scalar_prefetch = 0 : i64, scratch_operands = 0 : i64, tpu.core_type = #tpu.core_type<tc>, window_params = [{transform_indices = @transform_0, window_bounds = array<i64: 3, 384>}, {pipeline_mode = #tpu.pipeline_mode<synchronous>, transform_indices = @transform_1, window_bounds = array<i64: 18, 3>}, {pipeline_mode = #tpu.pipeline_mode<synchronous>, transform_indices = @transform_2, window_bounds = array<i64: 64, 3>}, {pipeline_mode = #tpu.pipeline_mode<synchronous>, transform_indices = @transform_3, window_bounds = array<i64: 64, 18>}, {pipeline_mode = #tpu.pipeline_mode<synchronous>, transform_indices = @transform_4, window_bounds = array<i64: 64, 18>}, {pipeline_mode = #tpu.pipeline_mode<synchronous>, transform_indices = @transform_5, window_bounds = array<i64: 64, 1>}, {pipeline_mode = #tpu.pipeline_mode<synchronous>, transform_indices = @transform_6, window_bounds = array<i64: 64, 64>}, {pipeline_mode = #tpu.pipeline_mode<synchronous>, transform_indices = @transform_7, window_bounds = array<i64: 64, 3>}, {pipeline_mode = #tpu.pipeline_mode<synchronous>, transform_indices = @transform_8, window_bounds = array<i64: 64, 18>}, {pipeline_mode = #tpu.pipeline_mode<synchronous>, transform_indices = @transform_9, window_bounds = array<i64: 64, 18>}, {pipeline_mode = #tpu.pipeline_mode<synchronous>, transform_indices = @transform_10, window_bounds = array<i64: 64, 1>}, {pipeline_mode = #tpu.pipeline_mode<synchronous>, transform_indices = @transform_11, window_bounds = array<i64: 4, 64>}, {pipeline_mode = #tpu.pipeline_mode<synchronous>, transform_indices = @transform_12, window_bounds = array<i64: 4, 3>}, {pipeline_mode = #tpu.pipeline_mode<synchronous>, transform_indices = @transform_13, window_bounds = array<i64: 4, 18>}, {pipeline_mode = #tpu.pipeline_mode<synchronous>, transform_indices = @transform_14, window_bounds = array<i64: 4, 18>}, {pipeline_mode = #tpu.pipeline_mode<synchronous>, transform_indices = @transform_15, window_bounds = array<i64: 4, 1>}, {transform_indices = @transform_16, window_bounds = array<i64: 4, 384>}]} {
    %c0 = arith.constant 0 : index
    %c0_0 = arith.constant 0 : index
    %0 = vector.load %arg1[%c0, %c0_0] : memref<3x384xf32, #tpu.memory_space<vmem>>, vector<3x384xf32>
    %c0_1 = arith.constant 0 : index
    %c0_2 = arith.constant 0 : index
    %1 = vector.load %arg2[%c0_1, %c0_2] : memref<18x3xf32, #tpu.memory_space<vmem>>, vector<18x3xf32>
    %cst = arith.constant dense<0.000000e+00> : vector<18x384xf32>
    %2 = tpu.matmul %1, %0, %cst {dimension_numbers = #tpu.dot_dimension_numbers<[1], [0], [0], [1], [0, 0, 1, 1], [], []>} : vector<18x3xf32>, vector<3x384xf32>, vector<18x384xf32> -> vector<18x384xf32>
    %3 = math.sin %2 : vector<18x384xf32>
    %4 = math.cos %2 : vector<18x384xf32>
    %c0_3 = arith.constant 0 : index
    %c0_4 = arith.constant 0 : index
    %5 = vector.load %arg3[%c0_3, %c0_4] : memref<64x3xf32, #tpu.memory_space<vmem>>, vector<64x3xf32>
    %cst_5 = arith.constant dense<0.000000e+00> : vector<64x384xf32>
    %6 = tpu.matmul %5, %0, %cst_5 {dimension_numbers = #tpu.dot_dimension_numbers<[1], [0], [0], [1], [0, 0, 1, 1], [], []>} : vector<64x3xf32>, vector<3x384xf32>, vector<64x384xf32> -> vector<64x384xf32>
    %c0_6 = arith.constant 0 : index
    %c0_7 = arith.constant 0 : index
    %7 = vector.load %arg4[%c0_6, %c0_7] : memref<64x18xf32, #tpu.memory_space<vmem>>, vector<64x18xf32>
    %cst_8 = arith.constant dense<0.000000e+00> : vector<64x384xf32>
    %8 = tpu.matmul %7, %3, %cst_8 {dimension_numbers = #tpu.dot_dimension_numbers<[1], [0], [0], [1], [0, 0, 1, 1], [], []>} : vector<64x18xf32>, vector<18x384xf32>, vector<64x384xf32> -> vector<64x384xf32>
    %9 = arith.addf %6, %8 : vector<64x384xf32>
    %c0_9 = arith.constant 0 : index
    %c0_10 = arith.constant 0 : index
    %10 = vector.load %arg5[%c0_9, %c0_10] : memref<64x18xf32, #tpu.memory_space<vmem>>, vector<64x18xf32>
    %cst_11 = arith.constant dense<0.000000e+00> : vector<64x384xf32>
    %11 = tpu.matmul %10, %4, %cst_11 {dimension_numbers = #tpu.dot_dimension_numbers<[1], [0], [0], [1], [0, 0, 1, 1], [], []>} : vector<64x18xf32>, vector<18x384xf32>, vector<64x384xf32> -> vector<64x384xf32>
    %12 = arith.addf %9, %11 : vector<64x384xf32>
    %c0_12 = arith.constant 0 : index
    %c0_13 = arith.constant 0 : index
    %13 = vector.load %arg6[%c0_12, %c0_13] : memref<64x1xf32, #tpu.memory_space<vmem>>, vector<64x1xf32>
    %14 = vector.broadcast %13 : vector<64x1xf32> to vector<64x384xf32>
    %15 = arith.addf %12, %14 : vector<64x384xf32>
    %cst_14 = arith.constant dense<0.000000e+00> : vector<384xf32>
    %16 = vector.multi_reduction <add>, %15, %cst_14 [0] : vector<64x384xf32> to vector<384xf32>
    %17 = vector.shape_cast %16 : vector<384xf32> to vector<1x384xf32>
    %cst_15 = arith.constant 6.400000e+01 : f32
    %18 = vector.broadcast %cst_15 : f32 to vector<1x384xf32>
    %19 = arith.divf %17, %18 : vector<1x384xf32>
    %20 = vector.broadcast %19 : vector<1x384xf32> to vector<64x384xf32>
    %21 = arith.subf %15, %20 : vector<64x384xf32>
    %22 = arith.mulf %21, %21 : vector<64x384xf32>
    %cst_16 = arith.constant dense<0.000000e+00> : vector<384xf32>
    %23 = vector.multi_reduction <add>, %22, %cst_16 [0] : vector<64x384xf32> to vector<384xf32>
    %24 = vector.shape_cast %23 : vector<384xf32> to vector<1x384xf32>
    %cst_17 = arith.constant 6.400000e+01 : f32
    %25 = vector.broadcast %cst_17 : f32 to vector<1x384xf32>
    %26 = arith.divf %24, %25 : vector<1x384xf32>
    %cst_18 = arith.constant 9.99999974E-6 : f32
    %27 = vector.broadcast %cst_18 : f32 to vector<1x384xf32>
    %28 = arith.addf %26, %27 : vector<1x384xf32>
    %29 = math.rsqrt %28 : vector<1x384xf32>
    %30 = vector.broadcast %29 : vector<1x384xf32> to vector<64x384xf32>
    %31 = arith.mulf %21, %30 : vector<64x384xf32>
    %cst_19 = arith.constant 1.000000e+02 : f32
    %32 = vector.broadcast %cst_19 : f32 to vector<64x384xf32>
    %33 = arith.mulf %31, %32 : vector<64x384xf32>
    %cst_20 = arith.constant 2.000000e+01 : f32
    %34 = vector.broadcast %cst_20 : f32 to vector<64x384xf32>
    %35 = arith.minimumf %33, %34 : vector<64x384xf32>
    %36 = math.exp %35 : vector<64x384xf32>
    %37 = math.log1p %36 : vector<64x384xf32>
    %cst_21 = arith.constant 1.000000e+02 : f32
    %38 = vector.broadcast %cst_21 : f32 to vector<64x384xf32>
    %39 = arith.divf %37, %38 : vector<64x384xf32>
    %cst_22 = arith.constant 2.000000e+01 : f32
    %40 = vector.broadcast %cst_22 : f32 to vector<64x384xf32>
    %41 = arith.cmpf ogt, %33, %40 : vector<64x384xf32>
    %42 = arith.select %41, %31, %39 : vector<64x384xi1>, vector<64x384xf32>
    %c0_23 = arith.constant 0 : index
    %c0_24 = arith.constant 0 : index
    %43 = vector.load %arg7[%c0_23, %c0_24] : memref<64x64xf32, #tpu.memory_space<vmem>>, vector<64x64xf32>
    %cst_25 = arith.constant dense<0.000000e+00> : vector<64x384xf32>
    %44 = tpu.matmul %43, %42, %cst_25 {dimension_numbers = #tpu.dot_dimension_numbers<[1], [0], [0], [1], [0, 0, 1, 1], [], []>} : vector<64x64xf32>, vector<64x384xf32>, vector<64x384xf32> -> vector<64x384xf32>
    %c0_26 = arith.constant 0 : index
    %c0_27 = arith.constant 0 : index
    %45 = vector.load %arg8[%c0_26, %c0_27] : memref<64x3xf32, #tpu.memory_space<vmem>>, vector<64x3xf32>
    %cst_28 = arith.constant dense<0.000000e+00> : vector<64x384xf32>
    %46 = tpu.matmul %45, %0, %cst_28 {dimension_numbers = #tpu.dot_dimension_numbers<[1], [0], [0], [1], [0, 0, 1, 1], [], []>} : vector<64x3xf32>, vector<3x384xf32>, vector<64x384xf32> -> vector<64x384xf32>
    %c0_29 = arith.constant 0 : index
    %c0_30 = arith.constant 0 : index
    %47 = vector.load %arg9[%c0_29, %c0_30] : memref<64x18xf32, #tpu.memory_space<vmem>>, vector<64x18xf32>
    %cst_31 = arith.constant dense<0.000000e+00> : vector<64x384xf32>
    %48 = tpu.matmul %47, %3, %cst_31 {dimension_numbers = #tpu.dot_dimension_numbers<[1], [0], [0], [1], [0, 0, 1, 1], [], []>} : vector<64x18xf32>, vector<18x384xf32>, vector<64x384xf32> -> vector<64x384xf32>
    %49 = arith.addf %46, %48 : vector<64x384xf32>
    %c0_32 = arith.constant 0 : index
    %c0_33 = arith.constant 0 : index
    %50 = vector.load %arg10[%c0_32, %c0_33] : memref<64x18xf32, #tpu.memory_space<vmem>>, vector<64x18xf32>
    %cst_34 = arith.constant dense<0.000000e+00> : vector<64x384xf32>
    %51 = tpu.matmul %50, %4, %cst_34 {dimension_numbers = #tpu.dot_dimension_numbers<[1], [0], [0], [1], [0, 0, 1, 1], [], []>} : vector<64x18xf32>, vector<18x384xf32>, vector<64x384xf32> -> vector<64x384xf32>
    %52 = arith.addf %49, %51 : vector<64x384xf32>
    %53 = arith.addf %44, %52 : vector<64x384xf32>
    %c0_35 = arith.constant 0 : index
    %c0_36 = arith.constant 0 : index
    %54 = vector.load %arg11[%c0_35, %c0_36] : memref<64x1xf32, #tpu.memory_space<vmem>>, vector<64x1xf32>
    %55 = vector.broadcast %54 : vector<64x1xf32> to vector<64x384xf32>
    %56 = arith.addf %53, %55 : vector<64x384xf32>
    %cst_37 = arith.constant dense<0.000000e+00> : vector<384xf32>
    %57 = vector.multi_reduction <add>, %56, %cst_37 [0] : vector<64x384xf32> to vector<384xf32>
    %58 = vector.shape_cast %57 : vector<384xf32> to vector<1x384xf32>
    %cst_38 = arith.constant 6.400000e+01 : f32
    %59 = vector.broadcast %cst_38 : f32 to vector<1x384xf32>
    %60 = arith.divf %58, %59 : vector<1x384xf32>
    %61 = vector.broadcast %60 : vector<1x384xf32> to vector<64x384xf32>
    %62 = arith.subf %56, %61 : vector<64x384xf32>
    %63 = arith.mulf %62, %62 : vector<64x384xf32>
    %cst_39 = arith.constant dense<0.000000e+00> : vector<384xf32>
    %64 = vector.multi_reduction <add>, %63, %cst_39 [0] : vector<64x384xf32> to vector<384xf32>
    %65 = vector.shape_cast %64 : vector<384xf32> to vector<1x384xf32>
    %cst_40 = arith.constant 6.400000e+01 : f32
    %66 = vector.broadcast %cst_40 : f32 to vector<1x384xf32>
    %67 = arith.divf %65, %66 : vector<1x384xf32>
    %cst_41 = arith.constant 9.99999974E-6 : f32
    %68 = vector.broadcast %cst_41 : f32 to vector<1x384xf32>
    %69 = arith.addf %67, %68 : vector<1x384xf32>
    %70 = math.rsqrt %69 : vector<1x384xf32>
    %71 = vector.broadcast %70 : vector<1x384xf32> to vector<64x384xf32>
    %72 = arith.mulf %62, %71 : vector<64x384xf32>
    %cst_42 = arith.constant 1.000000e+02 : f32
    %73 = vector.broadcast %cst_42 : f32 to vector<64x384xf32>
    %74 = arith.mulf %72, %73 : vector<64x384xf32>
    %cst_43 = arith.constant 2.000000e+01 : f32
    %75 = vector.broadcast %cst_43 : f32 to vector<64x384xf32>
    %76 = arith.minimumf %74, %75 : vector<64x384xf32>
    %77 = math.exp %76 : vector<64x384xf32>
    %78 = math.log1p %77 : vector<64x384xf32>
    %cst_44 = arith.constant 1.000000e+02 : f32
    %79 = vector.broadcast %cst_44 : f32 to vector<64x384xf32>
    %80 = arith.divf %78, %79 : vector<64x384xf32>
    %cst_45 = arith.constant 2.000000e+01 : f32
    %81 = vector.broadcast %cst_45 : f32 to vector<64x384xf32>
    %82 = arith.cmpf ogt, %74, %81 : vector<64x384xf32>
    %83 = arith.select %82, %72, %80 : vector<64x384xi1>, vector<64x384xf32>
    %c0_46 = arith.constant 0 : index
    %c0_47 = arith.constant 0 : index
    %84 = vector.load %arg12[%c0_46, %c0_47] : memref<4x64xf32, #tpu.memory_space<vmem>>, vector<4x64xf32>
    %cst_48 = arith.constant dense<0.000000e+00> : vector<4x384xf32>
    %85 = tpu.matmul %84, %83, %cst_48 {dimension_numbers = #tpu.dot_dimension_numbers<[1], [0], [0], [1], [0, 0, 1, 1], [], []>} : vector<4x64xf32>, vector<64x384xf32>, vector<4x384xf32> -> vector<4x384xf32>
    %c0_49 = arith.constant 0 : index
    %c0_50 = arith.constant 0 : index
    %86 = vector.load %arg13[%c0_49, %c0_50] : memref<4x3xf32, #tpu.memory_space<vmem>>, vector<4x3xf32>
    %cst_51 = arith.constant dense<0.000000e+00> : vector<4x384xf32>
    %87 = tpu.matmul %86, %0, %cst_51 {dimension_numbers = #tpu.dot_dimension_numbers<[1], [0], [0], [1], [0, 0, 1, 1], [], []>} : vector<4x3xf32>, vector<3x384xf32>, vector<4x384xf32> -> vector<4x384xf32>
    %c0_52 = arith.constant 0 : index
    %c0_53 = arith.constant 0 : index
    %88 = vector.load %arg14[%c0_52, %c0_53] : memref<4x18xf32, #tpu.memory_space<vmem>>, vector<4x18xf32>
    %cst_54 = arith.constant dense<0.000000e+00> : vector<4x384xf32>
    %89 = tpu.matmul %88, %3, %cst_54 {dimension_numbers = #tpu.dot_dimension_numbers<[1], [0], [0], [1], [0, 0, 1, 1], [], []>} : vector<4x18xf32>, vector<18x384xf32>, vector<4x384xf32> -> vector<4x384xf32>
    %90 = arith.addf %87, %89 : vector<4x384xf32>
    %c0_55 = arith.constant 0 : index
    %c0_56 = arith.constant 0 : index
    %91 = vector.load %arg15[%c0_55, %c0_56] : memref<4x18xf32, #tpu.memory_space<vmem>>, vector<4x18xf32>
    %cst_57 = arith.constant dense<0.000000e+00> : vector<4x384xf32>
    %92 = tpu.matmul %91, %4, %cst_57 {dimension_numbers = #tpu.dot_dimension_numbers<[1], [0], [0], [1], [0, 0, 1, 1], [], []>} : vector<4x18xf32>, vector<18x384xf32>, vector<4x384xf32> -> vector<4x384xf32>
    %93 = arith.addf %90, %92 : vector<4x384xf32>
    %94 = arith.addf %85, %93 : vector<4x384xf32>
    %c0_58 = arith.constant 0 : index
    %c0_59 = arith.constant 0 : index
    %95 = vector.load %arg16[%c0_58, %c0_59] : memref<4x1xf32, #tpu.memory_space<vmem>>, vector<4x1xf32>
    %96 = vector.broadcast %95 : vector<4x1xf32> to vector<4x384xf32>
    %97 = arith.addf %94, %96 : vector<4x384xf32>
    %c0_60 = arith.constant 0 : index
    %c0_61 = arith.constant 0 : index
    %98 = vector.load %arg17[%c0_60, %c0_61] : memref<4x384xf32, #tpu.memory_space<vmem>>, vector<4x384xf32>
    tpu.vector_store %arg17[%c0_60, %c0_61], %97 {strides = array<i32>} : memref<4x384xf32, #tpu.memory_space<vmem>>, vector<4x384xf32>,
    return
  }
  func.func @transform_0(%arg0: i32) -> (i32, i32) {
    %c0_i32 = arith.constant 0 : i32
    %c0_i32_0 = arith.constant 0 : i32
    return %c0_i32, %arg0 : i32, i32
  }
  func.func @transform_1(%arg0: i32) -> (i32, i32) {
    %c0_i32 = arith.constant 0 : i32
    %c0_i32_0 = arith.constant 0 : i32
    %c0_i32_1 = arith.constant 0 : i32
    return %c0_i32, %c0_i32_0 : i32, i32
  }
  func.func @transform_2(%arg0: i32) -> (i32, i32) {
    %c0_i32 = arith.constant 0 : i32
    %c0_i32_0 = arith.constant 0 : i32
    %c0_i32_1 = arith.constant 0 : i32
    return %c0_i32, %c0_i32_0 : i32, i32
  }
  func.func @transform_3(%arg0: i32) -> (i32, i32) {
    %c0_i32 = arith.constant 0 : i32
    %c0_i32_0 = arith.constant 0 : i32
    %c0_i32_1 = arith.constant 0 : i32
    return %c0_i32, %c0_i32_0 : i32, i32
  }
  func.func @transform_4(%arg0: i32) -> (i32, i32) {
    %c0_i32 = arith.constant 0 : i32
    %c0_i32_0 = arith.constant 0 : i32
    %c0_i32_1 = arith.constant 0 : i32
    return %c0_i32, %c0_i32_0 : i32, i32
  }
  func.func @transform_5(%arg0: i32) -> (i32, i32) {
    %c0_i32 = arith.constant 0 : i32
    %c0_i32_0 = arith.constant 0 : i32
    %c0_i32_1 = arith.constant 0 : i32
    return %c0_i32, %c0_i32_0 : i32, i32
  }
  func.func @transform_6(%arg0: i32) -> (i32, i32) {
    %c0_i32 = arith.constant 0 : i32
    %c0_i32_0 = arith.constant 0 : i32
    %c0_i32_1 = arith.constant 0 : i32
    return %c0_i32, %c0_i32_0 : i32, i32
  }
  func.func @transform_7(%arg0: i32) -> (i32, i32) {
    %c0_i32 = arith.constant 0 : i32
    %c0_i32_0 = arith.constant 0 : i32
    %c0_i32_1 = arith.constant 0 : i32
    return %c0_i32, %c0_i32_0 : i32, i32
  }
  func.func @transform_8(%arg0: i32) -> (i32, i32) {
    %c0_i32 = arith.constant 0 : i32
    %c0_i32_0 = arith.constant 0 : i32
    %c0_i32_1 = arith.constant 0 : i32
    return %c0_i32, %c0_i32_0 : i32, i32
  }
  func.func @transform_9(%arg0: i32) -> (i32, i32) {
    %c0_i32 = arith.constant 0 : i32
    %c0_i32_0 = arith.constant 0 : i32
    %c0_i32_1 = arith.constant 0 : i32
    return %c0_i32, %c0_i32_0 : i32, i32
  }
  func.func @transform_10(%arg0: i32) -> (i32, i32) {
    %c0_i32 = arith.constant 0 : i32
    %c0_i32_0 = arith.constant 0 : i32
    %c0_i32_1 = arith.constant 0 : i32
    return %c0_i32, %c0_i32_0 : i32, i32
  }
  func.func @transform_11(%arg0: i32) -> (i32, i32) {
    %c0_i32 = arith.constant 0 : i32
    %c0_i32_0 = arith.constant 0 : i32
    %c0_i32_1 = arith.constant 0 : i32
    return %c0_i32, %c0_i32_0 : i32, i32
  }
  func.func @transform_12(%arg0: i32) -> (i32, i32) {
    %c0_i32 = arith.constant 0 : i32
    %c0_i32_0 = arith.constant 0 : i32
    %c0_i32_1 = arith.constant 0 : i32
    return %c0_i32, %c0_i32_0 : i32, i32
  }
  func.func @transform_13(%arg0: i32) -> (i32, i32) {
    %c0_i32 = arith.constant 0 : i32
    %c0_i32_0 = arith.constant 0 : i32
    %c0_i32_1 = arith.constant 0 : i32
    return %c0_i32, %c0_i32_0 : i32, i32
  }
  func.func @transform_14(%arg0: i32) -> (i32, i32) {
    %c0_i32 = arith.constant 0 : i32
    %c0_i32_0 = arith.constant 0 : i32
    %c0_i32_1 = arith.constant 0 : i32
    return %c0_i32, %c0_i32_0 : i32, i32
  }
  func.func @transform_15(%arg0: i32) -> (i32, i32) {
    %c0_i32 = arith.constant 0 : i32
    %c0_i32_0 = arith.constant 0 : i32
    %c0_i32_1 = arith.constant 0 : i32
    return %c0_i32, %c0_i32_0 : i32, i32
  }
  func.func @transform_16(%arg0: i32) -> (i32, i32) {
    %c0_i32 = arith.constant 0 : i32
    %c0_i32_0 = arith.constant 0 : i32
    return %c0_i32, %arg0 : i32, i32
  }
}

</mosaic_0001>

<llo_original>
// kernel: tpu_custom_call.1
$region0: #{tpu_custom_call.1}
  #allocation0 [shape = 'u32[]', space=smem, size = 0x4, offset = 0x4, fixed_abs, tag = 'smem constant byte address 0x4 - core index']
  #allocation1 [shape = 'u32[144,128]{1,0:T(1,128)}', space=vmem, size = 0x12000, scoped, tag = 'internal scratch']
  %s0 = inlined_call_operand.vmem [shape: f32[3,384], index: 0, kind: input, shape index: {}]
  %s1 = inlined_call_operand.vmem [shape: f32[18,3], index: 1, kind: input, shape index: {}]
  %s2 = inlined_call_operand.vmem [shape: f32[64,3], index: 2, kind: input, shape index: {}]
  %s3 = inlined_call_operand.vmem [shape: f32[64,18], index: 3, kind: input, shape index: {}]
  %s4 = inlined_call_operand.vmem [shape: f32[64,18], index: 4, kind: input, shape index: {}]
  %s5 = inlined_call_operand.vmem [shape: f32[64,1], index: 5, kind: input, shape index: {}]
  %s6 = inlined_call_operand.vmem [shape: f32[64,64], index: 6, kind: input, shape index: {}]
  %s7 = inlined_call_operand.vmem [shape: f32[64,3], index: 7, kind: input, shape index: {}]
  %s8 = inlined_call_operand.vmem [shape: f32[64,18], index: 8, kind: input, shape index: {}]
  %s9 = inlined_call_operand.vmem [shape: f32[64,18], index: 9, kind: input, shape index: {}]
  %s10 = inlined_call_operand.vmem [shape: f32[64,1], index: 10, kind: input, shape index: {}]
  %s11 = inlined_call_operand.vmem [shape: f32[4,64], index: 11, kind: input, shape index: {}]
  %s12 = inlined_call_operand.vmem [shape: f32[4,3], index: 12, kind: input, shape index: {}]
  %s13 = inlined_call_operand.vmem [shape: f32[4,18], index: 13, kind: input, shape index: {}]
  %s14 = inlined_call_operand.vmem [shape: f32[4,18], index: 14, kind: input, shape index: {}]
  %s15 = inlined_call_operand.vmem [shape: f32[4,1], index: 15, kind: input, shape index: {}]
  %s16 = inlined_call_operand.hbm [shape: f32[4,384], index: 16, kind: output, shape index: {}]
  %s17 = sld [smem:[#allocation0]]
  $region74: #{tpu_custom_call.1} parent=0
    _
  %s19 = ssub.s32 1, %s17
  %s20 = scalar_select 0, %s19, %s17
  $region1: #{tpu_custom_call.1} parent=0
    #allocation2 [shape = 'u8[6144]{0}', space=vmem, size = 0x1800, scoped, tag = 'output window, operand 0, single buffered']
    #allocation3 [shape = 's32[1]{0}', space=sflag, size = 0x4, scoped, tag = 'scoped memory for tpu_custom_call.1']
    %21 = vsyncpa [#allocation3], 0
    // Predicated region
    $region2: #{tpu_custom_call.1} parent=1 // pred_check
      _
    $region3: #{tpu_custom_call.1} parent=1 // pred_check_branch
      %23 = sbr.rel (0) target = $region5
    $region4: #{tpu_custom_call.1} parent=1 // pred_region
      _
    $region5: #{tpu_custom_call.1} parent=1 // pred_fallthru
      _
    // Predicated region
    $region6: #{tpu_custom_call.1} parent=1 // pred_check
      _
    $region7: #{tpu_custom_call.1} parent=1 // pred_check_branch
      %25 = sbr.rel (0) target = $region9
    $region8: #{tpu_custom_call.1} parent=1 // pred_region
      _
    $region9: #{tpu_custom_call.1} parent=1 // pred_fallthru
      _
    // Predicated region
    $region10: #{tpu_custom_call.1} parent=1 // pred_check
      _
    $region11: #{tpu_custom_call.1} parent=1 // pred_check_branch
      %27 = sbr.rel (0) target = $region13
    $region12: #{tpu_custom_call.1} parent=1 // pred_region
      _
    $region13: #{tpu_custom_call.1} parent=1 // pred_fallthru
      _
    // Predicated region
    $region14: #{tpu_custom_call.1} parent=1 // pred_check
      _
    $region15: #{tpu_custom_call.1} parent=1 // pred_check_branch
      %29 = sbr.rel (0) target = $region17
    $region16: #{tpu_custom_call.1} parent=1 // pred_region
      _
    $region17: #{tpu_custom_call.1} parent=1 // pred_fallthru
      _
    // Predicated region
    $region18: #{tpu_custom_call.1} parent=1 // pred_check
      _
    $region19: #{tpu_custom_call.1} parent=1 // pred_check_branch
      %31 = sbr.rel (0) target = $region21
    $region20: #{tpu_custom_call.1} parent=1 // pred_region
      _
    $region21: #{tpu_custom_call.1} parent=1 // pred_fallthru
      _
    // Predicated region
    $region22: #{tpu_custom_call.1} parent=1 // pred_check
      _
    $region23: #{tpu_custom_call.1} parent=1 // pred_check_branch
      %33 = sbr.rel (0) target = $region25
    $region24: #{tpu_custom_call.1} parent=1 // pred_region
      _
    $region25: #{tpu_custom_call.1} parent=1 // pred_fallthru
      _
    // Predicated region
    $region26: #{tpu_custom_call.1} parent=1 // pred_check
      _
    $region27: #{tpu_custom_call.1} parent=1 // pred_check_branch
      %35 = sbr.rel (0) target = $region29
    $region28: #{tpu_custom_call.1} parent=1 // pred_region
      _
    $region29: #{tpu_custom_call.1} parent=1 // pred_fallthru
      _
    // Predicated region
    $region30: #{tpu_custom_call.1} parent=1 // pred_check
      _
    $region31: #{tpu_custom_call.1} parent=1 // pred_check_branch
      %37 = sbr.rel (0) target = $region33
    $region32: #{tpu_custom_call.1} parent=1 // pred_region
      _
    $region33: #{tpu_custom_call.1} parent=1 // pred_fallthru
      _
    // Predicated region
    $region34: #{tpu_custom_call.1} parent=1 // pred_check
      _
    $region35: #{tpu_custom_call.1} parent=1 // pred_check_branch
      %39 = sbr.rel (0) target = $region37
    $region36: #{tpu_custom_call.1} parent=1 // pred_region
      _
    $region37: #{tpu_custom_call.1} parent=1 // pred_fallthru
      _
    // Predicated region
    $region38: #{tpu_custom_call.1} parent=1 // pred_check
      _
    $region39: #{tpu_custom_call.1} parent=1 // pred_check_branch
      %41 = sbr.rel (0) target = $region41
    $region40: #{tpu_custom_call.1} parent=1 // pred_region
      _
    $region41: #{tpu_custom_call.1} parent=1 // pred_fallthru
      _
    // Predicated region
    $region42: #{tpu_custom_call.1} parent=1 // pred_check
      _
    $region43: #{tpu_custom_call.1} parent=1 // pred_check_branch
      %43 = sbr.rel (0) target = $region45
    $region44: #{tpu_custom_call.1} parent=1 // pred_region
      _
    $region45: #{tpu_custom_call.1} parent=1 // pred_fallthru
      _
    // Predicated region
    $region46: #{tpu_custom_call.1} parent=1 // pred_check
      _
    $region47: #{tpu_custom_call.1} parent=1 // pred_check_branch
      %45 = sbr.rel (0) target = $region49
    $region48: #{tpu_custom_call.1} parent=1 // pred_region
      _
    $region49: #{tpu_custom_call.1} parent=1 // pred_fallthru
      _
    // Predicated region
    $region50: #{tpu_custom_call.1} parent=1 // pred_check
      _
    $region51: #{tpu_custom_call.1} parent=1 // pred_check_branch
      %47 = sbr.rel (0) target = $region53
    $region52: #{tpu_custom_call.1} parent=1 // pred_region
      _
    $region53: #{tpu_custom_call.1} parent=1 // pred_fallthru
      _
    // Predicated region
    $region54: #{tpu_custom_call.1} parent=1 // pred_check
      _
    $region55: #{tpu_custom_call.1} parent=1 // pred_check_branch
      %49 = sbr.rel (0) target = $region57
    $region56: #{tpu_custom_call.1} parent=1 // pred_region
      _
    $region57: #{tpu_custom_call.1} parent=1 // pred_fallthru
      _
    // Predicated region
    $region58: #{tpu_custom_call.1} parent=1 // pred_check
      _
    $region59: #{tpu_custom_call.1} parent=1 // pred_check_branch
      %51 = sbr.rel (0) target = $region61
    $region60: #{tpu_custom_call.1} parent=1 // pred_region
      _
    $region61: #{tpu_custom_call.1} parent=1 // pred_fallthru
      _
    // Predicated region
    $region62: #{tpu_custom_call.1} parent=1 // pred_check
      _
    $region63: #{tpu_custom_call.1} parent=1 // pred_check_branch
      %53 = sbr.rel (0) target = $region65
    $region64: #{tpu_custom_call.1} parent=1 // pred_region
      _
    $region65: #{tpu_custom_call.1} parent=1 // pred_fallthru
      _
    %v54 = vld [vmem:[%s0] sm:$0x77]
    %v55 = vld [vmem:[%s0 + $0x8] sm:$0x7]
    %v56 = vld [vmem:[%s1] sm:$0xff]
    %v57 = vld [vmem:[%s1 + $0x8] sm:$0xff]
    %v58 = vld [vmem:[%s1 + $0x10] sm:$0x3]
    %v61 = vcombine.high %v54, %v54
    %vm62 = vcmask 23552
    %v64 = vsel %vm62, %v56, 0
    %v67 = vsel %vm62, %v57, 0
    %v70 = vsel %vm62, %v58, 0
    %vm72 = vcmask 1042432
    %v73 = vsel %vm72, %v54, 0
    %v75 = vsel %vm72, %v61, 0
    %v77 = vsel %vm72, %v55, 0
    %79 = vmatprep.subr.mxu0 %v75
    %80 = vmatpush1.msra.mxu0 %v73
    %81 = vmatprep.subr.mxu0 0.0
    %82 = vmatpush1.msra.mxu0 0.0
    %83 = vmatprep.subr.mxu0 0.0
    %84 = vmatpush1.msra.mxu0 0.0
    %85 = vmatprep.subr.mxu0 0.0
    %86 = vmatpush1.msra.mxu0 0.0
    %87 = vmatprep.subr.mxu0 0.0
    %88 = vmatpush1.msra.mxu0 0.0
    %89 = vmatprep.subr.mxu0 0.0
    %90 = vmatpush1.msra.mxu0 0.0
    %91 = vmatprep.subr.mxu0 0.0
    %92 = vmatpush1.msra.mxu0 0.0
    %93 = vmatprep.subr.mxu0 0.0
    %94 = vmatpush1.msra.mxu0 0.0
    %95 = vmatprep.subr.mxu0 0.0
    %96 = vmatpush1.msra.mxu0 0.0
    %97 = vmatprep.subr.mxu0 0.0
    %98 = vmatpush1.msra.mxu0 0.0
    %99 = vmatprep.subr.mxu0 0.0
    %100 = vmatpush1.msra.mxu0 0.0
    %101 = vmatprep.subr.mxu0 0.0
    %102 = vmatpush1.msra.mxu0 0.0
    %103 = vmatprep.subr.mxu0 0.0
    %104 = vmatpush1.msra.mxu0 0.0
    %105 = vmatprep.subr.mxu0 0.0
    %106 = vmatpush1.msra.mxu0 0.0
    %107 = vmatprep.subr.mxu0 0.0
    %108 = vmatpush1.msra.mxu0 0.0
    %109 = vmatprep.subr.mxu0 0.0
    %110 = vmatpush1.msra.mxu0 0.0
    %111 = vmatprep.subr.mxu0 0.0
    %112 = vmatpush1.msra.mxu0 0.0
    %113 = vmatprep.subr.mxu0 0.0
    %114 = vmatpush1.msra.mxu0 0.0
    %115 = vmatprep.subr.mxu0 0.0
    %116 = vmatpush1.msra.mxu0 0.0
    %117 = vmatprep.subr.mxu0 0.0
    %118 = vmatpush1.msra.mxu0 0.0
    %119 = vmatprep.subr.mxu0 0.0
    %120 = vmatpush1.msra.mxu0 0.0
    %121 = vmatprep.subr.mxu0 0.0
    %122 = vmatpush1.msra.mxu0 0.0
    %123 = vmatprep.subr.mxu0 0.0
    %124 = vmatpush1.msra.mxu0 0.0
    %125 = vmatprep.subr.mxu0 0.0
    %126 = vmatpush1.msra.mxu0 0.0
    %127 = vmatprep.subr.mxu0 0.0
    %128 = vmatpush1.msra.mxu0 0.0
    %129 = vmatprep.subr.mxu0 0.0
    %130 = vmatpush1.msra.mxu0 0.0
    %131 = vmatprep.subr.mxu0 0.0
    %132 = vmatpush1.msra.mxu0 0.0
    %133 = vmatprep.subr.mxu0 0.0
    %134 = vmatpush1.msra.mxu0 0.0
    %135 = vmatprep.subr.mxu0 0.0
    %136 = vmatpush1.msra.mxu0 0.0
    %137 = vmatprep.subr.mxu0 0.0
    %138 = vmatpush1.msra.mxu0 0.0
    %139 = vmatprep.subr.mxu0 0.0
    %140 = vmatpush1.msra.mxu0 0.0
    %141 = vmatprep.subr.mxu0 0.0
    %142 = vmatpush1.msra.mxu0 0.0
    %143 = vmatprep.mubr.f32.mxu0 0.0
    %144 = vmatmul.mubr.f32.gmra.mrb[0].mxu0 %v64
    %v145 = vpop.f32.mrb[0].mxu0
    %v146 = vadd.f32 0.0, %v145
    %v147 = vpop.f32.mrb[0].mxu0
    %v148 = vadd.f32 0.0, %v147
    %149 = vmatprep.mubr.f32.mxu0 0.0
    %150 = vmatmul.mubr.f32.gmra.mrb[0].mxu0 %v67
    %v151 = vpop.f32.mrb[0].mxu0
    %v152 = vadd.f32 0.0, %v151
    %v153 = vpop.f32.mrb[0].mxu0
    %v154 = vadd.f32 0.0, %v153
    %155 = vmatprep.mubr.f32.mxu0 0.0
    %156 = vmatmul.mubr.f32.gmra.mrb[0].mxu0 %v70
    %v157 = vpop.f32.mrb[0].mxu0
    %v158 = vadd.f32 0.0, %v157
    %v159 = vpop.f32.mrb[0].mxu0
    %v160 = vadd.f32 0.0, %v159
    %161 = vdwg.mxu0
    %162 = vmatprep.subr.mxu0 0.0
    %163 = vmatpush1.msra.mxu0 %v77
    %164 = vmatprep.subr.mxu0 0.0
    %165 = vmatpush1.msra.mxu0 0.0
    %166 = vmatprep.subr.mxu0 0.0
    %167 = vmatpush1.msra.mxu0 0.0
    %168 = vmatprep.subr.mxu0 0.0
    %169 = vmatpush1.msra.mxu0 0.0
    %170 = vmatprep.subr.mxu0 0.0
    %171 = vmatpush1.msra.mxu0 0.0
    %172 = vmatprep.subr.mxu0 0.0
    %173 = vmatpush1.msra.mxu0 0.0
    %174 = vmatprep.subr.mxu0 0.0
    %175 = vmatpush1.msra.mxu0 0.0
    %176 = vmatprep.subr.mxu0 0.0
    %177 = vmatpush1.msra.mxu0 0.0
    %178 = vmatprep.subr.mxu0 0.0
    %179 = vmatpush1.msra.mxu0 0.0
    %180 = vmatprep.subr.mxu0 0.0
    %181 = vmatpush1.msra.mxu0 0.0
    %182 = vmatprep.subr.mxu0 0.0
    %183 = vmatpush1.msra.mxu0 0.0
    %184 = vmatprep.subr.mxu0 0.0
    %185 = vmatpush1.msra.mxu0 0.0
    %186 = vmatprep.subr.mxu0 0.0
    %187 = vmatpush1.msra.mxu0 0.0
    %188 = vmatprep.subr.mxu0 0.0
    %189 = vmatpush1.msra.mxu0 0.0
    %190 = vmatprep.subr.mxu0 0.0
    %191 = vmatpush1.msra.mxu0 0.0
    %192 = vmatprep.subr.mxu0 0.0
    %193 = vmatpush1.msra.mxu0 0.0
    %194 = vmatprep.subr.mxu0 0.0
    %195 = vmatpush1.msra.mxu0 0.0
    %196 = vmatprep.subr.mxu0 0.0
    %197 = vmatpush1.msra.mxu0 0.0
    %198 = vmatprep.subr.mxu0 0.0
    %199 = vmatpush1.msra.mxu0 0.0
    %200 = vmatprep.subr.mxu0 0.0
    %201 = vmatpush1.msra.mxu0 0.0
    %202 = vmatprep.subr.mxu0 0.0
    %203 = vmatpush1.msra.mxu0 0.0
    %204 = vmatprep.subr.mxu0 0.0
    %205 = vmatpush1.msra.mxu0 0.0
    %206 = vmatprep.subr.mxu0 0.0
    %207 = vmatpush1.msra.mxu0 0.0
    %208 = vmatprep.subr.mxu0 0.0
    %209 = vmatpush1.msra.mxu0 0.0
    %210 = vmatprep.subr.mxu0 0.0
    %211 = vmatpush1.msra.mxu0 0.0
    %212 = vmatprep.subr.mxu0 0.0
    %213 = vmatpush1.msra.mxu0 0.0
    %214 = vmatprep.subr.mxu0 0.0
    %215 = vmatpush1.msra.mxu0 0.0
    %216 = vmatprep.subr.mxu0 0.0
    %217 = vmatpush1.msra.mxu0 0.0
    %218 = vmatprep.subr.mxu0 0.0
    %219 = vmatpush1.msra.mxu0 0.0
    %220 = vmatprep.subr.mxu0 0.0
    %221 = vmatpush1.msra.mxu0 0.0
    %222 = vmatprep.subr.mxu0 0.0
    %223 = vmatpush1.msra.mxu0 0.0
    %224 = vmatprep.subr.mxu0 0.0
    %225 = vmatpush1.msra.mxu0 0.0
    %226 = vmatprep.mubr.f32.mxu0 0.0
    %227 = vmatmul.mubr.f32.gmra.mrb[0].mxu0 %v64
    %v228 = vpop.f32.mrb[0].mxu0
    %v229 = vadd.f32 0.0, %v228
    %v230 = vpop.f32.mrb[0].mxu0
    %231 = vmatprep.mubr.f32.mxu0 0.0
    %232 = vmatmul.mubr.f32.gmra.mrb[0].mxu0 %v67
    %v233 = vpop.f32.mrb[0].mxu0
    %v234 = vadd.f32 0.0, %v233
    %v235 = vpop.f32.mrb[0].mxu0
    %236 = vmatprep.mubr.f32.mxu0 0.0
    %237 = vmatmul.mubr.f32.gmra.mrb[0].mxu0 %v70
    %v238 = vpop.f32.mrb[0].mxu0
    %v239 = vadd.f32 0.0, %v238
    %v240 = vpop.f32.mrb[0].mxu0
    %241 = vdwg.mxu0
    %v242 = vand.u32 2147483647, %v146
    %vm243 = vcmp.le.f32.partialorder %v242, 0.7853982
    %vm244 = vcmp.lt.s32.totalorder %v146, 0
    %v245 = vand.u32 %v146, 2139095040
    %v246 = vshrl.u32 %v245, 23
    %v247 = vsub.s32 %v246, 127
    %v248 = vand.u32 2147483647, %v146
    %v249 = vand.u32 %v248, 8388607
    %v250 = vor.u32 %v249, 8388608
    %v251 = vsub.s32 0, %v250
    %v252 = vadd.s32 %v247, 1
    %vm253 = vcmp.gt.s32.totalorder %v252, 0
    %v254 = vsel %vm253, %v252, 0
    %v255 = vshrl.u32 %v254, 5
    %v256 = vand.u32 %v254, 31
    %v257 = vsub.s32 32, %v256
    %v258 = vshrl.u32 683565275, %v257
    %v259 = vshll.u32 683565275, %v256
    %v260 = vshrl.u32 2475754826, %v257
    %v261 = vor.u32 %v259, %v260
    %v262 = vshll.u32 2475754826, %v256
    %v263 = vshrl.u32 2131351028, %v257
    %v264 = vor.u32 %v262, %v263
    %v265 = vshll.u32 2131351028, %v256
    %v266 = vshrl.u32 2102212464, %v257
    %v267 = vor.u32 %v265, %v266
    %v268 = vshll.u32 2102212464, %v256
    %v269 = vshrl.u32 920167782, %v257
    %v270 = vor.u32 %v268, %v269
    %v271 = vshll.u32 920167782, %v256
    %v272 = vshrl.u32 1326507024, %v257
    %v273 = vor.u32 %v271, %v272
    %vm274 = vcmp.lt.s32.totalorder %v255, 1
    %vm275 = vcmp.lt.s32.totalorder %v255, 2
    %vm276 = vcmp.lt.s32.totalorder %v255, 3
    %vm277 = vcmp.lt.s32.totalorder %v255, 4
    %v278 = vsel %vm274, %v258, %v261
    %v279 = vsel %vm277, %v267, 2102212464
    %v280 = vsel %vm276, %v264, %v279
    %v281 = vsel %vm275, %v278, %v280
    %v282 = vsel %vm274, %v261, %v264
    %v283 = vsel %vm277, %v270, 920167782
    %v284 = vsel %vm276, %v267, %v283
    %v285 = vsel %vm275, %v282, %v284
    %v286 = vsel %vm274, %v264, %v267
    %v287 = vsel %vm277, %v273, 1326507024
    %v288 = vsel %vm276, %v270, %v287
    %v289 = vsel %vm275, %v286, %v288
    %v290 = vshll.u32 %v250, 8
    %v291 = vmul.u32.u64.compose %v290, %v289
    %v292 = vextract.low.u32 %v291
    %v293 = vextract.high.u32 %v291
    %v294 = vmul.u32.u64.compose %v290, %v285
    %v295 = vextract.low.u32 %v294
    %v296 = vextract.high.u32 %v294
    %v297 = vmul.u32 %v290, %v281
    %v298 = vadd.s32 %v293, %v295
    %vm299 = vc.u32 %v293, %v295
    %v300 = vadd.s32 %v296, 1
    %v301 = vsel %vm299, %v300, %v296
    %v302 = vadd.s32 %v297, %v301
    %v303 = vadd.s32 %v302, 536870912
    %v304 = vshrl.u32 %v303, 30
    %v305 = vshll.u32 %v304, 30
    %v306 = vsub.s32 %v302, %v305
    %vm307 = vcmp.lt.s32.totalorder %v306, 0
    %v308 = vsub.s32 0, %v306
    %v309 = vsel %vm307, %v308, %v306
    %v310 = vclz %v309
    %v311 = vsub.s32 %v310, 2
    %vm312 = vcmp.gt.s32.totalorder 0, %v311
    %v313 = vsel %vm312, 0, %v311
    %v314 = vsub.s32 32, %v313
    %v315 = vshll.u32 %v306, %v313
    %v316 = vshrl.u32 %v298, %v314
    %v317 = vor.u32 %v315, %v316
    %v318 = vsub.s32 4294967266, %v313
    %v319 = vadd.s32 %v318, 127
    %v320 = vshll.u32 %v319, 23
    %v321 = vor.u32 4788187, %v320
    %v322 = vand.u32 2147483647, %v321
    %v324 = vcvt.s32.f32 %v317
    %v325 = vmul.f32 %v324, %v322
    %v326 = vxor.u32 %v325, 2147483648
    %v327 = vsel %vm244, %v326, %v325
    %v328 = vsub.s32 4, %v304
    %v329 = vsel %vm244, %v328, %v304
    %v330 = vsel %vm243, %v146, %v327
    %v331 = vsel %vm243, 0, %v329
    %v332 = vcosq.f32.pop %v330
    %v333 = vsinq.f32.pop %v330
    %vm334 = vweird.f32 %v146
    %v335 = vadd.s32 %v331, 3
    %v336 = vand.u32 %v335, 3
    %vm337 = vcmp.lt.s32.totalorder %v336, 2
    %vm338 = vcmp.eq.s32.totalorder %v336, 0
    %v339 = vxor.u32 %v333, 2147483648
    %v340 = vsel %vm338, %v332, %v339
    %vm341 = vcmp.eq.s32.totalorder %v336, 2
    %v342 = vxor.u32 %v332, 2147483648
    %v343 = vsel %vm341, %v342, %v333
    %v344 = vsel %vm337, %v340, %v343
    %v345 = vsel %vm334, nan, %v344
    %v346 = vand.u32 2147483647, %v148
    %vm347 = vcmp.le.f32.partialorder %v346, 0.7853982
    %vm348 = vcmp.lt.s32.totalorder %v148, 0
    %v349 = vand.u32 %v148, 2139095040
    %v350 = vshrl.u32 %v349, 23
    %v351 = vsub.s32 %v350, 127
    %v352 = vand.u32 2147483647, %v148
    %v353 = vand.u32 %v352, 8388607
    %v354 = vor.u32 %v353, 8388608
    %v355 = vsub.s32 0, %v354
    %v356 = vadd.s32 %v351, 1
    %vm357 = vcmp.gt.s32.totalorder %v356, 0
    %v358 = vsel %vm357, %v356, 0
    %v359 = vshrl.u32 %v358, 5
    %v360 = vand.u32 %v358, 31
    %v361 = vsub.s32 32, %v360
    %v362 = vshrl.u32 683565275, %v361
    %v363 = vshll.u32 683565275, %v360
    %v364 = vshrl.u32 2475754826, %v361
    %v365 = vor.u32 %v363, %v364
    %v366 = vshll.u32 2475754826, %v360
    %v367 = vshrl.u32 2131351028, %v361
    %v368 = vor.u32 %v366, %v367
    %v369 = vshll.u32 2131351028, %v360
    %v370 = vshrl.u32 2102212464, %v361
    %v371 = vor.u32 %v369, %v370
    %v372 = vshll.u32 2102212464, %v360
    %v373 = vshrl.u32 920167782, %v361
    %v374 = vor.u32 %v372, %v373
    %v375 = vshll.u32 920167782, %v360
    %v376 = vshrl.u32 1326507024, %v361
    %v377 = vor.u32 %v375, %v376
    %vm378 = vcmp.lt.s32.totalorder %v359, 1
    %vm379 = vcmp.lt.s32.totalorder %v359, 2
    %vm380 = vcmp.lt.s32.totalorder %v359, 3
    %vm381 = vcmp.lt.s32.totalorder %v359, 4
    %v382 = vsel %vm378, %v362, %v365
    %v383 = vsel %vm381, %v371, 2102212464
    %v384 = vsel %vm380, %v368, %v383
    %v385 = vsel %vm379, %v382, %v384
    %v386 = vsel %vm378, %v365, %v368
    %v387 = vsel %vm381, %v374, 920167782
    %v388 = vsel %vm380, %v371, %v387
    %v389 = vsel %vm379, %v386, %v388
    %v390 = vsel %vm378, %v368, %v371
    %v391 = vsel %vm381, %v377, 1326507024
    %v392 = vsel %vm380, %v374, %v391
    %v393 = vsel %vm379, %v390, %v392
    %v394 = vshll.u32 %v354, 8
    %v395 = vmul.u32.u64.compose %v394, %v393
    %v396 = vextract.low.u32 %v395
    %v397 = vextract.high.u32 %v395
    %v398 = vmul.u32.u64.compose %v394, %v389
    %v399 = vextract.low.u32 %v398
    %v400 = vextract.high.u32 %v398
    %v401 = vmul.u32 %v394, %v385
    %v402 = vadd.s32 %v397, %v399
    %vm403 = vc.u32 %v397, %v399
    %v404 = vadd.s32 %v400, 1
    %v405 = vsel %vm403, %v404, %v400
    %v406 = vadd.s32 %v401, %v405
    %v407 = vadd.s32 %v406, 536870912
    %v408 = vshrl.u32 %v407, 30
    %v409 = vshll.u32 %v408, 30
    %v410 = vsub.s32 %v406, %v409
    %vm411 = vcmp.lt.s32.totalorder %v410, 0
    %v412 = vsub.s32 0, %v410
    %v413 = vsel %vm411, %v412, %v410
    %v414 = vclz %v413
    %v415 = vsub.s32 %v414, 2
    %vm416 = vcmp.gt.s32.totalorder 0, %v415
    %v417 = vsel %vm416, 0, %v415
    %v418 = vsub.s32 32, %v417
    %v419 = vshll.u32 %v410, %v417
    %v420 = vshrl.u32 %v402, %v418
    %v421 = vor.u32 %v419, %v420
    %v422 = vsub.s32 4294967266, %v417
    %v423 = vadd.s32 %v422, 127
    %v424 = vshll.u32 %v423, 23
    %v425 = vor.u32 4788187, %v424
    %v426 = vand.u32 2147483647, %v425
    %v428 = vcvt.s32.f32 %v421
    %v429 = vmul.f32 %v428, %v426
    %v430 = vxor.u32 %v429, 2147483648
    %v431 = vsel %vm348, %v430, %v429
    %v432 = vsub.s32 4, %v408
    %v433 = vsel %vm348, %v432, %v408
    %v434 = vsel %vm347, %v148, %v431
    %v435 = vsel %vm347, 0, %v433
    %v436 = vcosq.f32.pop %v434
    %v437 = vsinq.f32.pop %v434
    %vm438 = vweird.f32 %v148
    %v439 = vadd.s32 %v435, 3
    %v440 = vand.u32 %v439, 3
    %vm441 = vcmp.lt.s32.totalorder %v440, 2
    %vm442 = vcmp.eq.s32.totalorder %v440, 0
    %v443 = vxor.u32 %v437, 2147483648
    %v444 = vsel %vm442, %v436, %v443
    %vm445 = vcmp.eq.s32.totalorder %v440, 2
    %v446 = vxor.u32 %v436, 2147483648
    %v447 = vsel %vm445, %v446, %v437
    %v448 = vsel %vm441, %v444, %v447
    %v449 = vsel %vm438, nan, %v448
    %v450 = vand.u32 2147483647, %v229
    %vm451 = vcmp.le.f32.partialorder %v450, 0.7853982
    %vm452 = vcmp.lt.s32.totalorder %v229, 0
    %v453 = vand.u32 %v229, 2139095040
    %v454 = vshrl.u32 %v453, 23
    %v455 = vsub.s32 %v454, 127
    %v456 = vand.u32 2147483647, %v229
    %v457 = vand.u32 %v456, 8388607
    %v458 = vor.u32 %v457, 8388608
    %v459 = vsub.s32 0, %v458
    %v460 = vadd.s32 %v455, 1
    %vm461 = vcmp.gt.s32.totalorder %v460, 0
    %v462 = vsel %vm461, %v460, 0
    %v463 = vshrl.u32 %v462, 5
    %v464 = vand.u32 %v462, 31
    %v465 = vsub.s32 32, %v464
    %v466 = vshrl.u32 683565275, %v465
    %v467 = vshll.u32 683565275, %v464
    %v468 = vshrl.u32 2475754826, %v465
    %v469 = vor.u32 %v467, %v468
    %v470 = vshll.u32 2475754826, %v464
    %v471 = vshrl.u32 2131351028, %v465
    %v472 = vor.u32 %v470, %v471
    %v473 = vshll.u32 2131351028, %v464
    %v474 = vshrl.u32 2102212464, %v465
    %v475 = vor.u32 %v473, %v474
    %v476 = vshll.u32 2102212464, %v464
    %v477 = vshrl.u32 920167782, %v465
    %v478 = vor.u32 %v476, %v477
    %v479 = vshll.u32 920167782, %v464
    %v480 = vshrl.u32 1326507024, %v465
    %v481 = vor.u32 %v479, %v480
    %vm482 = vcmp.lt.s32.totalorder %v463, 1
    %vm483 = vcmp.lt.s32.totalorder %v463, 2
    %vm484 = vcmp.lt.s32.totalorder %v463, 3
    %vm485 = vcmp.lt.s32.totalorder %v463, 4
    %v486 = vsel %vm482, %v466, %v469
    %v487 = vsel %vm485, %v475, 2102212464
    %v488 = vsel %vm484, %v472, %v487
    %v489 = vsel %vm483, %v486, %v488
    %v490 = vsel %vm482, %v469, %v472
    %v491 = vsel %vm485, %v478, 920167782
    %v492 = vsel %vm484, %v475, %v491
    %v493 = vsel %vm483, %v490, %v492
    %v494 = vsel %vm482, %v472, %v475
    %v495 = vsel %vm485, %v481, 1326507024
    %v496 = vsel %vm484, %v478, %v495
    %v497 = vsel %vm483, %v494, %v496
    %v498 = vshll.u32 %v458, 8
    %v499 = vmul.u32.u64.compose %v498, %v497
    %v500 = vextract.low.u32 %v499
    %v501 = vextract.high.u32 %v499
    %v502 = vmul.u32.u64.compose %v498, %v493
    %v503 = vextract.low.u32 %v502
    %v504 = vextract.high.u32 %v502
    %v505 = vmul.u32 %v498, %v489
    %v506 = vadd.s32 %v501, %v503
    %vm507 = vc.u32 %v501, %v503
    %v508 = vadd.s32 %v504, 1
    %v509 = vsel %vm507, %v508, %v504
    %v510 = vadd.s32 %v505, %v509
    %v511 = vadd.s32 %v510, 536870912
    %v512 = vshrl.u32 %v511, 30
    %v513 = vshll.u32 %v512, 30
    %v514 = vsub.s32 %v510, %v513
    %vm515 = vcmp.lt.s32.totalorder %v514, 0
    %v516 = vsub.s32 0, %v514
    %v517 = vsel %vm515, %v516, %v514
    %v518 = vclz %v517
    %v519 = vsub.s32 %v518, 2
    %vm520 = vcmp.gt.s32.totalorder 0, %v519
    %v521 = vsel %vm520, 0, %v519
    %v522 = vsub.s32 32, %v521
    %v523 = vshll.u32 %v514, %v521
    %v524 = vshrl.u32 %v506, %v522
    %v525 = vor.u32 %v523, %v524
    %v526 = vsub.s32 4294967266, %v521
    %v527 = vadd.s32 %v526, 127
    %v528 = vshll.u32 %v527, 23
    %v529 = vor.u32 4788187, %v528
    %v530 = vand.u32 2147483647, %v529
    %v532 = vcvt.s32.f32 %v525
    %v533 = vmul.f32 %v532, %v530
    %v534 = vxor.u32 %v533, 2147483648
    %v535 = vsel %vm452, %v534, %v533
    %v536 = vsub.s32 4, %v512
    %v537 = vsel %vm452, %v536, %v512
    %v538 = vsel %vm451, %v229, %v535
    %v539 = vsel %vm451, 0, %v537
    %v540 = vcosq.f32.pop %v538
    %v541 = vsinq.f32.pop %v538
    %vm542 = vweird.f32 %v229
    %v543 = vadd.s32 %v539, 3
    %v544 = vand.u32 %v543, 3
    %vm545 = vcmp.lt.s32.totalorder %v544, 2
    %vm546 = vcmp.eq.s32.totalorder %v544, 0
    %v547 = vxor.u32 %v541, 2147483648
    %v548 = vsel %vm546, %v540, %v547
    %vm549 = vcmp.eq.s32.totalorder %v544, 2
    %v550 = vxor.u32 %v540, 2147483648
    %v551 = vsel %vm549, %v550, %v541
    %v552 = vsel %vm545, %v548, %v551
    %v553 = vsel %vm542, nan, %v552
    %v554 = vand.u32 2147483647, %v152
    %vm555 = vcmp.le.f32.partialorder %v554, 0.7853982
    %vm556 = vcmp.lt.s32.totalorder %v152, 0
    %v557 = vand.u32 %v152, 2139095040
    %v558 = vshrl.u32 %v557, 23
    %v559 = vsub.s32 %v558, 127
    %v560 = vand.u32 2147483647, %v152
    %v561 = vand.u32 %v560, 8388607
    %v562 = vor.u32 %v561, 8388608
    %v563 = vsub.s32 0, %v562
    %v564 = vadd.s32 %v559, 1
    %vm565 = vcmp.gt.s32.totalorder %v564, 0
    %v566 = vsel %vm565, %v564, 0
    %v567 = vshrl.u32 %v566, 5
    %v568 = vand.u32 %v566, 31
    %v569 = vsub.s32 32, %v568
    %v570 = vshrl.u32 683565275, %v569
    %v571 = vshll.u32 683565275, %v568
    %v572 = vshrl.u32 2475754826, %v569
    %v573 = vor.u32 %v571, %v572
    %v574 = vshll.u32 2475754826, %v568
    %v575 = vshrl.u32 2131351028, %v569
    %v576 = vor.u32 %v574, %v575
    %v577 = vshll.u32 2131351028, %v568
    %v578 = vshrl.u32 2102212464, %v569
    %v579 = vor.u32 %v577, %v578
    %v580 = vshll.u32 2102212464, %v568
    %v581 = vshrl.u32 920167782, %v569
    %v582 = vor.u32 %v580, %v581
    %v583 = vshll.u32 920167782, %v568
    %v584 = vshrl.u32 1326507024, %v569
    %v585 = vor.u32 %v583, %v584
    %vm586 = vcmp.lt.s32.totalorder %v567, 1
    %vm587 = vcmp.lt.s32.totalorder %v567, 2
    %vm588 = vcmp.lt.s32.totalorder %v567, 3
    %vm589 = vcmp.lt.s32.totalorder %v567, 4
    %v590 = vsel %vm586, %v570, %v573
    %v591 = vsel %vm589, %v579, 2102212464
    %v592 = vsel %vm588, %v576, %v591
    %v593 = vsel %vm587, %v590, %v592
    %v594 = vsel %vm586, %v573, %v576
    %v595 = vsel %vm589, %v582, 920167782
    %v596 = vsel %vm588, %v579, %v595
    %v597 = vsel %vm587, %v594, %v596
    %v598 = vsel %vm586, %v576, %v579
    %v599 = vsel %vm589, %v585, 1326507024
    %v600 = vsel %vm588, %v582, %v599
    %v601 = vsel %vm587, %v598, %v600
    %v602 = vshll.u32 %v562, 8
    %v603 = vmul.u32.u64.compose %v602, %v601
    %v604 = vextract.low.u32 %v603
    %v605 = vextract.high.u32 %v603
    %v606 = vmul.u32.u64.compose %v602, %v597
    %v607 = vextract.low.u32 %v606
    %v608 = vextract.high.u32 %v606
    %v609 = vmul.u32 %v602, %v593
    %v610 = vadd.s32 %v605, %v607
    %vm611 = vc.u32 %v605, %v607
    %v612 = vadd.s32 %v608, 1
    %v613 = vsel %vm611, %v612, %v608
    %v614 = vadd.s32 %v609, %v613
    %v615 = vadd.s32 %v614, 536870912
    %v616 = vshrl.u32 %v615, 30
    %v617 = vshll.u32 %v616, 30
    %v618 = vsub.s32 %v614, %v617
    %vm619 = vcmp.lt.s32.totalorder %v618, 0
    %v620 = vsub.s32 0, %v618
    %v621 = vsel %vm619, %v620, %v618
    %v622 = vclz %v621
    %v623 = vsub.s32 %v622, 2
    %vm624 = vcmp.gt.s32.totalorder 0, %v623
    %v625 = vsel %vm624, 0, %v623
    %v626 = vsub.s32 32, %v625
    %v627 = vshll.u32 %v618, %v625
    %v628 = vshrl.u32 %v610, %v626
    %v629 = vor.u32 %v627, %v628
    %v630 = vsub.s32 4294967266, %v625
    %v631 = vadd.s32 %v630, 127
    %v632 = vshll.u32 %v631, 23
    %v633 = vor.u32 4788187, %v632
    %v634 = vand.u32 2147483647, %v633
    %v636 = vcvt.s32.f32 %v629
    %v637 = vmul.f32 %v636, %v634
    %v638 = vxor.u32 %v637, 2147483648
    %v639 = vsel %vm556, %v638, %v637
    %v640 = vsub.s32 4, %v616
    %v641 = vsel %vm556, %v640, %v616
    %v642 = vsel %vm555, %v152, %v639
    %v643 = vsel %vm555, 0, %v641
    %v644 = vcosq.f32.pop %v642
    %v645 = vsinq.f32.pop %v642
    %vm646 = vweird.f32 %v152
    %v647 = vadd.s32 %v643, 3
    %v648 = vand.u32 %v647, 3
    %vm649 = vcmp.lt.s32.totalorder %v648, 2
    %vm650 = vcmp.eq.s32.totalorder %v648, 0
    %v651 = vxor.u32 %v645, 2147483648
    %v652 = vsel %vm650, %v644, %v651
    %vm653 = vcmp.eq.s32.totalorder %v648, 2
    %v654 = vxor.u32 %v644, 2147483648
    %v655 = vsel %vm653, %v654, %v645
    %v656 = vsel %vm649, %v652, %v655
    %v657 = vsel %vm646, nan, %v656
    %v658 = vand.u32 2147483647, %v154
    %vm659 = vcmp.le.f32.partialorder %v658, 0.7853982
    %vm660 = vcmp.lt.s32.totalorder %v154, 0
    %v661 = vand.u32 %v154, 2139095040
    %v662 = vshrl.u32 %v661, 23
    %v663 = vsub.s32 %v662, 127
    %v664 = vand.u32 2147483647, %v154
    %v665 = vand.u32 %v664, 8388607
    %v666 = vor.u32 %v665, 8388608
    %v667 = vsub.s32 0, %v666
    %v668 = vadd.s32 %v663, 1
    %vm669 = vcmp.gt.s32.totalorder %v668, 0
    %v670 = vsel %vm669, %v668, 0
    %v671 = vshrl.u32 %v670, 5
    %v672 = vand.u32 %v670, 31
    %v673 = vsub.s32 32, %v672
    %v674 = vshrl.u32 683565275, %v673
    %v675 = vshll.u32 683565275, %v672
    %v676 = vshrl.u32 2475754826, %v673
    %v677 = vor.u32 %v675, %v676
    %v678 = vshll.u32 2475754826, %v672
    %v679 = vshrl.u32 2131351028, %v673
    %v680 = vor.u32 %v678, %v679
    %v681 = vshll.u32 2131351028, %v672
    %v682 = vshrl.u32 2102212464, %v673
    %v683 = vor.u32 %v681, %v682
    %v684 = vshll.u32 2102212464, %v672
    %v685 = vshrl.u32 920167782, %v673
    %v686 = vor.u32 %v684, %v685
    %v687 = vshll.u32 920167782, %v672
    %v688 = vshrl.u32 1326507024, %v673
    %v689 = vor.u32 %v687, %v688
    %vm690 = vcmp.lt.s32.totalorder %v671, 1
    %vm691 = vcmp.lt.s32.totalorder %v671, 2
    %vm692 = vcmp.lt.s32.totalorder %v671, 3
    %vm693 = vcmp.lt.s32.totalorder %v671, 4
    %v694 = vsel %vm690, %v674, %v677
    %v695 = vsel %vm693, %v683, 2102212464
    %v696 = vsel %vm692, %v680, %v695
    %v697 = vsel %vm691, %v694, %v696
    %v698 = vsel %vm690, %v677, %v680
    %v699 = vsel %vm693, %v686, 920167782
    %v700 = vsel %vm692, %v683, %v699
    %v701 = vsel %vm691, %v698, %v700
    %v702 = vsel %vm690, %v680, %v683
    %v703 = vsel %vm693, %v689, 1326507024
    %v704 = vsel %vm692, %v686, %v703
    %v705 = vsel %vm691, %v702, %v704
    %v706 = vshll.u32 %v666, 8
    %v707 = vmul.u32.u64.compose %v706, %v705
    %v708 = vextract.low.u32 %v707
    %v709 = vextract.high.u32 %v707
    %v710 = vmul.u32.u64.compose %v706, %v701
    %v711 = vextract.low.u32 %v710
    %v712 = vextract.high.u32 %v710
    %v713 = vmul.u32 %v706, %v697
    %v714 = vadd.s32 %v709, %v711
    %vm715 = vc.u32 %v709, %v711
    %v716 = vadd.s32 %v712, 1
    %v717 = vsel %vm715, %v716, %v712
    %v718 = vadd.s32 %v713, %v717
    %v719 = vadd.s32 %v718, 536870912
    %v720 = vshrl.u32 %v719, 30
    %v721 = vshll.u32 %v720, 30
    %v722 = vsub.s32 %v718, %v721
    %vm723 = vcmp.lt.s32.totalorder %v722, 0
    %v724 = vsub.s32 0, %v722
    %v725 = vsel %vm723, %v724, %v722
    %v726 = vclz %v725
    %v727 = vsub.s32 %v726, 2
    %vm728 = vcmp.gt.s32.totalorder 0, %v727
    %v729 = vsel %vm728, 0, %v727
    %v730 = vsub.s32 32, %v729
    %v731 = vshll.u32 %v722, %v729
    %v732 = vshrl.u32 %v714, %v730
    %v733 = vor.u32 %v731, %v732
    %v734 = vsub.s32 4294967266, %v729
    %v735 = vadd.s32 %v734, 127
    %v736 = vshll.u32 %v735, 23
    %v737 = vor.u32 4788187, %v736
    %v738 = vand.u32 2147483647, %v737
    %v740 = vcvt.s32.f32 %v733
    %v741 = vmul.f32 %v740, %v738
    %v742 = vxor.u32 %v741, 2147483648
    %v743 = vsel %vm660, %v742, %v741
    %v744 = vsub.s32 4, %v720
    %v745 = vsel %vm660, %v744, %v720
    %v746 = vsel %vm659, %v154, %v743
    %v747 = vsel %vm659, 0, %v745
    %v748 = vcosq.f32.pop %v746
    %v749 = vsinq.f32.pop %v746
    %vm750 = vweird.f32 %v154
    %v751 = vadd.s32 %v747, 3
    %v752 = vand.u32 %v751, 3
    %vm753 = vcmp.lt.s32.totalorder %v752, 2
    %vm754 = vcmp.eq.s32.totalorder %v752, 0
    %v755 = vxor.u32 %v749, 2147483648
    %v756 = vsel %vm754, %v748, %v755
    %vm757 = vcmp.eq.s32.totalorder %v752, 2
    %v758 = vxor.u32 %v748, 2147483648
    %v759 = vsel %vm757, %v758, %v749
    %v760 = vsel %vm753, %v756, %v759
    %v761 = vsel %vm750, nan, %v760
    %v762 = vand.u32 2147483647, %v234
    %vm763 = vcmp.le.f32.partialorder %v762, 0.7853982
    %vm764 = vcmp.lt.s32.totalorder %v234, 0
    %v765 = vand.u32 %v234, 2139095040
    %v766 = vshrl.u32 %v765, 23
    %v767 = vsub.s32 %v766, 127
    %v768 = vand.u32 2147483647, %v234
    %v769 = vand.u32 %v768, 8388607
    %v770 = vor.u32 %v769, 8388608
    %v771 = vsub.s32 0, %v770
    %v772 = vadd.s32 %v767, 1
    %vm773 = vcmp.gt.s32.totalorder %v772, 0
    %v774 = vsel %vm773, %v772, 0
    %v775 = vshrl.u32 %v774, 5
    %v776 = vand.u32 %v774, 31
    %v777 = vsub.s32 32, %v776
    %v778 = vshrl.u32 683565275, %v777
    %v779 = vshll.u32 683565275, %v776
    %v780 = vshrl.u32 2475754826, %v777
    %v781 = vor.u32 %v779, %v780
    %v782 = vshll.u32 2475754826, %v776
    %v783 = vshrl.u32 2131351028, %v777
    %v784 = vor.u32 %v782, %v783
    %v785 = vshll.u32 2131351028, %v776
    %v786 = vshrl.u32 2102212464, %v777
    %v787 = vor.u32 %v785, %v786
    %v788 = vshll.u32 2102212464, %v776
    %v789 = vshrl.u32 920167782, %v777
    %v790 = vor.u32 %v788, %v789
    %v791 = vshll.u32 920167782, %v776
    %v792 = vshrl.u32 1326507024, %v777
    %v793 = vor.u32 %v791, %v792
    %vm794 = vcmp.lt.s32.totalorder %v775, 1
    %vm795 = vcmp.lt.s32.totalorder %v775, 2
    %vm796 = vcmp.lt.s32.totalorder %v775, 3
    %vm797 = vcmp.lt.s32.totalorder %v775, 4
    %v798 = vsel %vm794, %v778, %v781
    %v799 = vsel %vm797, %v787, 2102212464
    %v800 = vsel %vm796, %v784, %v799
    %v801 = vsel %vm795, %v798, %v800
    %v802 = vsel %vm794, %v781, %v784
    %v803 = vsel %vm797, %v790, 920167782
    %v804 = vsel %vm796, %v787, %v803
    %v805 = vsel %vm795, %v802, %v804
    %v806 = vsel %vm794, %v784, %v787
    %v807 = vsel %vm797, %v793, 1326507024
    %v808 = vsel %vm796, %v790, %v807
    %v809 = vsel %vm795, %v806, %v808
    %v810 = vshll.u32 %v770, 8
    %v811 = vmul.u32.u64.compose %v810, %v809
    %v812 = vextract.low.u32 %v811
    %v813 = vextract.high.u32 %v811
    %v814 = vmul.u32.u64.compose %v810, %v805
    %v815 = vextract.low.u32 %v814
    %v816 = vextract.high.u32 %v814
    %v817 = vmul.u32 %v810, %v801
    %v818 = vadd.s32 %v813, %v815
    %vm819 = vc.u32 %v813, %v815
    %v820 = vadd.s32 %v816, 1
    %v821 = vsel %vm819, %v820, %v816
    %v822 = vadd.s32 %v817, %v821
    %v823 = vadd.s32 %v822, 536870912
    %v824 = vshrl.u32 %v823, 30
    %v825 = vshll.u32 %v824, 30
    %v826 = vsub.s32 %v822, %v825
    %vm827 = vcmp.lt.s32.totalorder %v826, 0
    %v828 = vsub.s32 0, %v826
    %v829 = vsel %vm827, %v828, %v826
    %v830 = vclz %v829
    %v831 = vsub.s32 %v830, 2
    %vm832 = vcmp.gt.s32.totalorder 0, %v831
    %v833 = vsel %vm832, 0, %v831
    %v834 = vsub.s32 32, %v833
    %v835 = vshll.u32 %v826, %v833
    %v836 = vshrl.u32 %v818, %v834
    %v837 = vor.u32 %v835, %v836
    %v838 = vsub.s32 4294967266, %v833
    %v839 = vadd.s32 %v838, 127
    %v840 = vshll.u32 %v839, 23
    %v841 = vor.u32 4788187, %v840
    %v842 = vand.u32 2147483647, %v841
    %v844 = vcvt.s32.f32 %v837
    %v845 = vmul.f32 %v844, %v842
    %v846 = vxor.u32 %v845, 2147483648
    %v847 = vsel %vm764, %v846, %v845
    %v848 = vsub.s32 4, %v824
    %v849 = vsel %vm764, %v848, %v824
    %v850 = vsel %vm763, %v234, %v847
    %v851 = vsel %vm763, 0, %v849
    %v852 = vcosq.f32.pop %v850
    %v853 = vsinq.f32.pop %v850
    %vm854 = vweird.f32 %v234
    %v855 = vadd.s32 %v851, 3
    %v856 = vand.u32 %v855, 3
    %vm857 = vcmp.lt.s32.totalorder %v856, 2
    %vm858 = vcmp.eq.s32.totalorder %v856, 0
    %v859 = vxor.u32 %v853, 2147483648
    %v860 = vsel %vm858, %v852, %v859
    %vm861 = vcmp.eq.s32.totalorder %v856, 2
    %v862 = vxor.u32 %v852, 2147483648
    %v863 = vsel %vm861, %v862, %v853
    %v864 = vsel %vm857, %v860, %v863
    %v865 = vsel %vm854, nan, %v864
    %v866 = vand.u32 2147483647, %v158
    %vm867 = vcmp.le.f32.partialorder %v866, 0.7853982
    %vm868 = vcmp.lt.s32.totalorder %v158, 0
    %v869 = vand.u32 %v158, 2139095040
    %v870 = vshrl.u32 %v869, 23
    %v871 = vsub.s32 %v870, 127
    %v872 = vand.u32 2147483647, %v158
    %v873 = vand.u32 %v872, 8388607
    %v874 = vor.u32 %v873, 8388608
    %v875 = vsub.s32 0, %v874
    %v876 = vadd.s32 %v871, 1
    %vm877 = vcmp.gt.s32.totalorder %v876, 0
    %v878 = vsel %vm877, %v876, 0
    %v879 = vshrl.u32 %v878, 5
    %v880 = vand.u32 %v878, 31
    %v881 = vsub.s32 32, %v880
    %v882 = vshrl.u32 683565275, %v881
    %v883 = vshll.u32 683565275, %v880
    %v884 = vshrl.u32 2475754826, %v881
    %v885 = vor.u32 %v883, %v884
    %v886 = vshll.u32 2475754826, %v880
    %v887 = vshrl.u32 2131351028, %v881
    %v888 = vor.u32 %v886, %v887
    %v889 = vshll.u32 2131351028, %v880
    %v890 = vshrl.u32 2102212464, %v881
    %v891 = vor.u32 %v889, %v890
    %v892 = vshll.u32 2102212464, %v880
    %v893 = vshrl.u32 920167782, %v881
    %v894 = vor.u32 %v892, %v893
    %v895 = vshll.u32 920167782, %v880
    %v896 = vshrl.u32 1326507024, %v881
    %v897 = vor.u32 %v895, %v896
    %vm898 = vcmp.lt.s32.totalorder %v879, 1
    %vm899 = vcmp.lt.s32.totalorder %v879, 2
    %vm900 = vcmp.lt.s32.totalorder %v879, 3
    %vm901 = vcmp.lt.s32.totalorder %v879, 4
    %v902 = vsel %vm898, %v882, %v885
    %v903 = vsel %vm901, %v891, 2102212464
    %v904 = vsel %vm900, %v888, %v903
    %v905 = vsel %vm899, %v902, %v904
    %v906 = vsel %vm898, %v885, %v888
    %v907 = vsel %vm901, %v894, 920167782
    %v908 = vsel %vm900, %v891, %v907
    %v909 = vsel %vm899, %v906, %v908
    %v910 = vsel %vm898, %v888, %v891
    %v911 = vsel %vm901, %v897, 1326507024
    %v912 = vsel %vm900, %v894, %v911
    %v913 = vsel %vm899, %v910, %v912
    %v914 = vshll.u32 %v874, 8
    %v915 = vmul.u32.u64.compose %v914, %v913
    %v916 = vextract.low.u32 %v915
    %v917 = vextract.high.u32 %v915
    %v918 = vmul.u32.u64.compose %v914, %v909
    %v919 = vextract.low.u32 %v918
    %v920 = vextract.high.u32 %v918
    %v921 = vmul.u32 %v914, %v905
    %v922 = vadd.s32 %v917, %v919
    %vm923 = vc.u32 %v917, %v919
    %v924 = vadd.s32 %v920, 1
    %v925 = vsel %vm923, %v924, %v920
    %v926 = vadd.s32 %v921, %v925
    %v927 = vadd.s32 %v926, 536870912
    %v928 = vshrl.u32 %v927, 30
    %v929 = vshll.u32 %v928, 30
    %v930 = vsub.s32 %v926, %v929
    %vm931 = vcmp.lt.s32.totalorder %v930, 0
    %v932 = vsub.s32 0, %v930
    %v933 = vsel %vm931, %v932, %v930
    %v934 = vclz %v933
    %v935 = vsub.s32 %v934, 2
    %vm936 = vcmp.gt.s32.totalorder 0, %v935
    %v937 = vsel %vm936, 0, %v935
    %v938 = vsub.s32 32, %v937
    %v939 = vshll.u32 %v930, %v937
    %v940 = vshrl.u32 %v922, %v938
    %v941 = vor.u32 %v939, %v940
    %v942 = vsub.s32 4294967266, %v937
    %v943 = vadd.s32 %v942, 127
    %v944 = vshll.u32 %v943, 23
    %v945 = vor.u32 4788187, %v944
    %v946 = vand.u32 2147483647, %v945
    %v948 = vcvt.s32.f32 %v941
    %v949 = vmul.f32 %v948, %v946
    %v950 = vxor.u32 %v949, 2147483648
    %v951 = vsel %vm868, %v950, %v949
    %v952 = vsub.s32 4, %v928
    %v953 = vsel %vm868, %v952, %v928
    %v954 = vsel %vm867, %v158, %v951
    %v955 = vsel %vm867, 0, %v953
    %v956 = vcosq.f32.pop %v954
    %v957 = vsinq.f32.pop %v954
    %vm958 = vweird.f32 %v158
    %v959 = vadd.s32 %v955, 3
    %v960 = vand.u32 %v959, 3
    %vm961 = vcmp.lt.s32.totalorder %v960, 2
    %vm962 = vcmp.eq.s32.totalorder %v960, 0
    %v963 = vxor.u32 %v957, 2147483648
    %v964 = vsel %vm962, %v956, %v963
    %vm965 = vcmp.eq.s32.totalorder %v960, 2
    %v966 = vxor.u32 %v956, 2147483648
    %v967 = vsel %vm965, %v966, %v957
    %v968 = vsel %vm961, %v964, %v967
    %v969 = vsel %vm958, nan, %v968
    %v970 = vand.u32 2147483647, %v160
    %vm971 = vcmp.le.f32.partialorder %v970, 0.7853982
    %vm972 = vcmp.lt.s32.totalorder %v160, 0
    %v973 = vand.u32 %v160, 2139095040
    %v974 = vshrl.u32 %v973, 23
    %v975 = vsub.s32 %v974, 127
    %v976 = vand.u32 2147483647, %v160
    %v977 = vand.u32 %v976, 8388607
    %v978 = vor.u32 %v977, 8388608
    %v979 = vsub.s32 0, %v978
    %v980 = vadd.s32 %v975, 1
    %vm981 = vcmp.gt.s32.totalorder %v980, 0
    %v982 = vsel %vm981, %v980, 0
    %v983 = vshrl.u32 %v982, 5
    %v984 = vand.u32 %v982, 31
    %v985 = vsub.s32 32, %v984
    %v986 = vshrl.u32 683565275, %v985
    %v987 = vshll.u32 683565275, %v984
    %v988 = vshrl.u32 2475754826, %v985
    %v989 = vor.u32 %v987, %v988
    %v990 = vshll.u32 2475754826, %v984
    %v991 = vshrl.u32 2131351028, %v985
    %v992 = vor.u32 %v990, %v991
    %v993 = vshll.u32 2131351028, %v984
    %v994 = vshrl.u32 2102212464, %v985
    %v995 = vor.u32 %v993, %v994
    %v996 = vshll.u32 2102212464, %v984
    %v997 = vshrl.u32 920167782, %v985
    %v998 = vor.u32 %v996, %v997
    %v999 = vshll.u32 920167782, %v984
    %v1000 = vshrl.u32 1326507024, %v985
    %v1001 = vor.u32 %v999, %v1000
    %vm1002 = vcmp.lt.s32.totalorder %v983, 1
    %vm1003 = vcmp.lt.s32.totalorder %v983, 2
    %vm1004 = vcmp.lt.s32.totalorder %v983, 3
    %vm1005 = vcmp.lt.s32.totalorder %v983, 4
    %v1006 = vsel %vm1002, %v986, %v989
    %v1007 = vsel %vm1005, %v995, 2102212464
    %v1008 = vsel %vm1004, %v992, %v1007
    %v1009 = vsel %vm1003, %v1006, %v1008
    %v1010 = vsel %vm1002, %v989, %v992
    %v1011 = vsel %vm1005, %v998, 920167782
    %v1012 = vsel %vm1004, %v995, %v1011
    %v1013 = vsel %vm1003, %v1010, %v1012
    %v1014 = vsel %vm1002, %v992, %v995
    %v1015 = vsel %vm1005, %v1001, 1326507024
    %v1016 = vsel %vm1004, %v998, %v1015
    %v1017 = vsel %vm1003, %v1014, %v1016
    %v1018 = vshll.u32 %v978, 8
    %v1019 = vmul.u32.u64.compose %v1018, %v1017
    %v1020 = vextract.low.u32 %v1019
    %v1021 = vextract.high.u32 %v1019
    %v1022 = vmul.u32.u64.compose %v1018, %v1013
    %v1023 = vextract.low.u32 %v1022
    %v1024 = vextract.high.u32 %v1022
    %v1025 = vmul.u32 %v1018, %v1009
    %v1026 = vadd.s32 %v1021, %v1023
    %vm1027 = vc.u32 %v1021, %v1023
    %v1028 = vadd.s32 %v1024, 1
    %v1029 = vsel %vm1027, %v1028, %v1024
    %v1030 = vadd.s32 %v1025, %v1029
    %v1031 = vadd.s32 %v1030, 536870912
    %v1032 = vshrl.u32 %v1031, 30
    %v1033 = vshll.u32 %v1032, 30
    %v1034 = vsub.s32 %v1030, %v1033
    %vm1035 = vcmp.lt.s32.totalorder %v1034, 0
    %v1036 = vsub.s32 0, %v1034
    %v1037 = vsel %vm1035, %v1036, %v1034
    %v1038 = vclz %v1037
    %v1039 = vsub.s32 %v1038, 2
    %vm1040 = vcmp.gt.s32.totalorder 0, %v1039
    %v1041 = vsel %vm1040, 0, %v1039
    %v1042 = vsub.s32 32, %v1041
    %v1043 = vshll.u32 %v1034, %v1041
    %v1044 = vshrl.u32 %v1026, %v1042
    %v1045 = vor.u32 %v1043, %v1044
    %v1046 = vsub.s32 4294967266, %v1041
    %v1047 = vadd.s32 %v1046, 127
    %v1048 = vshll.u32 %v1047, 23
    %v1049 = vor.u32 4788187, %v1048
    %v1050 = vand.u32 2147483647, %v1049
    %v1052 = vcvt.s32.f32 %v1045
    %v1053 = vmul.f32 %v1052, %v1050
    %v1054 = vxor.u32 %v1053, 2147483648
    %v1055 = vsel %vm972, %v1054, %v1053
    %v1056 = vsub.s32 4, %v1032
    %v1057 = vsel %vm972, %v1056, %v1032
    %v1058 = vsel %vm971, %v160, %v1055
    %v1059 = vsel %vm971, 0, %v1057
    %v1060 = vcosq.f32.pop %v1058
    %v1061 = vsinq.f32.pop %v1058
    %vm1062 = vweird.f32 %v160
    %v1063 = vadd.s32 %v1059, 3
    %v1064 = vand.u32 %v1063, 3
    %vm1065 = vcmp.lt.s32.totalorder %v1064, 2
    %vm1066 = vcmp.eq.s32.totalorder %v1064, 0
    %v1067 = vxor.u32 %v1061, 2147483648
    %v1068 = vsel %vm1066, %v1060, %v1067
    %vm1069 = vcmp.eq.s32.totalorder %v1064, 2
    %v1070 = vxor.u32 %v1060, 2147483648
    %v1071 = vsel %vm1069, %v1070, %v1061
    %v1072 = vsel %vm1065, %v1068, %v1071
    %v1073 = vsel %vm1062, nan, %v1072
    %v1074 = vand.u32 2147483647, %v239
    %vm1075 = vcmp.le.f32.partialorder %v1074, 0.7853982
    %vm1076 = vcmp.lt.s32.totalorder %v239, 0
    %v1077 = vand.u32 %v239, 2139095040
    %v1078 = vshrl.u32 %v1077, 23
    %v1079 = vsub.s32 %v1078, 127
    %v1080 = vand.u32 2147483647, %v239
    %v1081 = vand.u32 %v1080, 8388607
    %v1082 = vor.u32 %v1081, 8388608
    %v1083 = vsub.s32 0, %v1082
    %v1084 = vadd.s32 %v1079, 1
    %vm1085 = vcmp.gt.s32.totalorder %v1084, 0
    %v1086 = vsel %vm1085, %v1084, 0
    %v1087 = vshrl.u32 %v1086, 5
    %v1088 = vand.u32 %v1086, 31
    %v1089 = vsub.s32 32, %v1088
    %v1090 = vshrl.u32 683565275, %v1089
    %v1091 = vshll.u32 683565275, %v1088
    %v1092 = vshrl.u32 2475754826, %v1089
    %v1093 = vor.u32 %v1091, %v1092
    %v1094 = vshll.u32 2475754826, %v1088
    %v1095 = vshrl.u32 2131351028, %v1089
    %v1096 = vor.u32 %v1094, %v1095
    %v1097 = vshll.u32 2131351028, %v1088
    %v1098 = vshrl.u32 2102212464, %v1089
    %v1099 = vor.u32 %v1097, %v1098
    %v1100 = vshll.u32 2102212464, %v1088
    %v1101 = vshrl.u32 920167782, %v1089
    %v1102 = vor.u32 %v1100, %v1101
    %v1103 = vshll.u32 920167782, %v1088
    %v1104 = vshrl.u32 1326507024, %v1089
    %v1105 = vor.u32 %v1103, %v1104
    %vm1106 = vcmp.lt.s32.totalorder %v1087, 1
    %vm1107 = vcmp.lt.s32.totalorder %v1087, 2
    %vm1108 = vcmp.lt.s32.totalorder %v1087, 3
    %vm1109 = vcmp.lt.s32.totalorder %v1087, 4
    %v1110 = vsel %vm1106, %v1090, %v1093
    %v1111 = vsel %vm1109, %v1099, 2102212464
    %v1112 = vsel %vm1108, %v1096, %v1111
    %v1113 = vsel %vm1107, %v1110, %v1112
    %v1114 = vsel %vm1106, %v1093, %v1096
    %v1115 = vsel %vm1109, %v1102, 920167782
    %v1116 = vsel %vm1108, %v1099, %v1115
    %v1117 = vsel %vm1107, %v1114, %v1116
    %v1118 = vsel %vm1106, %v1096, %v1099
    %v1119 = vsel %vm1109, %v1105, 1326507024
    %v1120 = vsel %vm1108, %v1102, %v1119
    %v1121 = vsel %vm1107, %v1118, %v1120
    %v1122 = vshll.u32 %v1082, 8
    %v1123 = vmul.u32.u64.compose %v1122, %v1121
    %v1124 = vextract.low.u32 %v1123
    %v1125 = vextract.high.u32 %v1123
    %v1126 = vmul.u32.u64.compose %v1122, %v1117
    %v1127 = vextract.low.u32 %v1126
    %v1128 = vextract.high.u32 %v1126
    %v1129 = vmul.u32 %v1122, %v1113
    %v1130 = vadd.s32 %v1125, %v1127
    %vm1131 = vc.u32 %v1125, %v1127
    %v1132 = vadd.s32 %v1128, 1
    %v1133 = vsel %vm1131, %v1132, %v1128
    %v1134 = vadd.s32 %v1129, %v1133
    %v1135 = vadd.s32 %v1134, 536870912
    %v1136 = vshrl.u32 %v1135, 30
    %v1137 = vshll.u32 %v1136, 30
    %v1138 = vsub.s32 %v1134, %v1137
    %vm1139 = vcmp.lt.s32.totalorder %v1138, 0
    %v1140 = vsub.s32 0, %v1138
    %v1141 = vsel %vm1139, %v1140, %v1138
    %v1142 = vclz %v1141
    %v1143 = vsub.s32 %v1142, 2
    %vm1144 = vcmp.gt.s32.totalorder 0, %v1143
    %v1145 = vsel %vm1144, 0, %v1143
    %v1146 = vsub.s32 32, %v1145
    %v1147 = vshll.u32 %v1138, %v1145
    %v1148 = vshrl.u32 %v1130, %v1146
    %v1149 = vor.u32 %v1147, %v1148
    %v1150 = vsub.s32 4294967266, %v1145
    %v1151 = vadd.s32 %v1150, 127
    %v1152 = vshll.u32 %v1151, 23
    %v1153 = vor.u32 4788187, %v1152
    %v1154 = vand.u32 2147483647, %v1153
    %v1156 = vcvt.s32.f32 %v1149
    %v1157 = vmul.f32 %v1156, %v1154
    %v1158 = vxor.u32 %v1157, 2147483648
    %v1159 = vsel %vm1076, %v1158, %v1157
    %v1160 = vsub.s32 4, %v1136
    %v1161 = vsel %vm1076, %v1160, %v1136
    %v1162 = vsel %vm1075, %v239, %v1159
    %v1163 = vsel %vm1075, 0, %v1161
    %v1164 = vcosq.f32.pop %v1162
    %v1165 = vsinq.f32.pop %v1162
    %vm1166 = vweird.f32 %v239
    %v1167 = vadd.s32 %v1163, 3
    %v1168 = vand.u32 %v1167, 3
    %vm1169 = vcmp.lt.s32.totalorder %v1168, 2
    %vm1170 = vcmp.eq.s32.totalorder %v1168, 0
    %v1171 = vxor.u32 %v1165, 2147483648
    %v1172 = vsel %vm1170, %v1164, %v1171
    %vm1173 = vcmp.eq.s32.totalorder %v1168, 2
    %v1174 = vxor.u32 %v1164, 2147483648
    %v1175 = vsel %vm1173, %v1174, %v1165
    %v1176 = vsel %vm1169, %v1172, %v1175
    %v1177 = vsel %vm1166, nan, %v1176
    %v1178 = vand.u32 2147483647, %v146
    %vm1179 = vcmp.le.f32.partialorder %v1178, 0.7853982
    %vm1180 = vcmp.lt.s32.totalorder %v146, 0
    %v1181 = vand.u32 %v146, 2139095040
    %v1182 = vshrl.u32 %v1181, 23
    %v1183 = vsub.s32 %v1182, 127
    %v1184 = vand.u32 2147483647, %v146
    %v1185 = vand.u32 %v1184, 8388607
    %v1186 = vor.u32 %v1185, 8388608
    %v1187 = vsub.s32 0, %v1186
    %v1188 = vadd.s32 %v1183, 1
    %vm1189 = vcmp.gt.s32.totalorder %v1188, 0
    %v1190 = vsel %vm1189, %v1188, 0
    %v1191 = vshrl.u32 %v1190, 5
    %v1192 = vand.u32 %v1190, 31
    %v1193 = vsub.s32 32, %v1192
    %v1194 = vshrl.u32 683565275, %v1193
    %v1195 = vshll.u32 683565275, %v1192
    %v1196 = vshrl.u32 2475754826, %v1193
    %v1197 = vor.u32 %v1195, %v1196
    %v1198 = vshll.u32 2475754826, %v1192
    %v1199 = vshrl.u32 2131351028, %v1193
    %v1200 = vor.u32 %v1198, %v1199
    %v1201 = vshll.u32 2131351028, %v1192
    %v1202 = vshrl.u32 2102212464, %v1193
    %v1203 = vor.u32 %v1201, %v1202
    %v1204 = vshll.u32 2102212464, %v1192
    %v1205 = vshrl.u32 920167782, %v1193
    %v1206 = vor.u32 %v1204, %v1205
    %v1207 = vshll.u32 920167782, %v1192
    %v1208 = vshrl.u32 1326507024, %v1193
    %v1209 = vor.u32 %v1207, %v1208
    %vm1210 = vcmp.lt.s32.totalorder %v1191, 1
    %vm1211 = vcmp.lt.s32.totalorder %v1191, 2
    %vm1212 = vcmp.lt.s32.totalorder %v1191, 3
    %vm1213 = vcmp.lt.s32.totalorder %v1191, 4
    %v1214 = vsel %vm1210, %v1194, %v1197
    %v1215 = vsel %vm1213, %v1203, 2102212464
    %v1216 = vsel %vm1212, %v1200, %v1215
    %v1217 = vsel %vm1211, %v1214, %v1216
    %v1218 = vsel %vm1210, %v1197, %v1200
    %v1219 = vsel %vm1213, %v1206, 920167782
    %v1220 = vsel %vm1212, %v1203, %v1219
    %v1221 = vsel %vm1211, %v1218, %v1220
    %v1222 = vsel %vm1210, %v1200, %v1203
    %v1223 = vsel %vm1213, %v1209, 1326507024
    %v1224 = vsel %vm1212, %v1206, %v1223
    %v1225 = vsel %vm1211, %v1222, %v1224
    %v1226 = vshll.u32 %v1186, 8
    %v1227 = vmul.u32.u64.compose %v1226, %v1225
    %v1228 = vextract.low.u32 %v1227
    %v1229 = vextract.high.u32 %v1227
    %v1230 = vmul.u32.u64.compose %v1226, %v1221
    %v1231 = vextract.low.u32 %v1230
    %v1232 = vextract.high.u32 %v1230
    %v1233 = vmul.u32 %v1226, %v1217
    %v1234 = vadd.s32 %v1229, %v1231
    %vm1235 = vc.u32 %v1229, %v1231
    %v1236 = vadd.s32 %v1232, 1
    %v1237 = vsel %vm1235, %v1236, %v1232
    %v1238 = vadd.s32 %v1233, %v1237
    %v1239 = vadd.s32 %v1238, 536870912
    %v1240 = vshrl.u32 %v1239, 30
    %v1241 = vshll.u32 %v1240, 30
    %v1242 = vsub.s32 %v1238, %v1241
    %vm1243 = vcmp.lt.s32.totalorder %v1242, 0
    %v1244 = vsub.s32 0, %v1242
    %v1245 = vsel %vm1243, %v1244, %v1242
    %v1246 = vclz %v1245
    %v1247 = vsub.s32 %v1246, 2
    %vm1248 = vcmp.gt.s32.totalorder 0, %v1247
    %v1249 = vsel %vm1248, 0, %v1247
    %v1250 = vsub.s32 32, %v1249
    %v1251 = vshll.u32 %v1242, %v1249
    %v1252 = vshrl.u32 %v1234, %v1250
    %v1253 = vor.u32 %v1251, %v1252
    %v1254 = vsub.s32 4294967266, %v1249
    %v1255 = vadd.s32 %v1254, 127
    %v1256 = vshll.u32 %v1255, 23
    %v1257 = vor.u32 4788187, %v1256
    %v1258 = vand.u32 2147483647, %v1257
    %v1260 = vcvt.s32.f32 %v1253
    %v1261 = vmul.f32 %v1260, %v1258
    %v1262 = vxor.u32 %v1261, 2147483648
    %v1263 = vsel %vm1180, %v1262, %v1261
    %v1264 = vsub.s32 4, %v1240
    %v1265 = vsel %vm1180, %v1264, %v1240
    %v1266 = vsel %vm1179, %v146, %v1263
    %v1267 = vsel %vm1179, 0, %v1265
    %v1268 = vcosq.f32.pop %v1266
    %v1269 = vsinq.f32.pop %v1266
    %vm1270 = vweird.f32 %v146
    %v1271 = vand.u32 %v1267, 3
    %vm1272 = vcmp.lt.s32.totalorder %v1271, 2
    %vm1273 = vcmp.eq.s32.totalorder %v1271, 0
    %v1274 = vxor.u32 %v1269, 2147483648
    %v1275 = vsel %vm1273, %v1268, %v1274
    %vm1276 = vcmp.eq.s32.totalorder %v1271, 2
    %v1277 = vxor.u32 %v1268, 2147483648
    %v1278 = vsel %vm1276, %v1277, %v1269
    %v1279 = vsel %vm1272, %v1275, %v1278
    %v1280 = vsel %vm1270, nan, %v1279
    %v1281 = vand.u32 2147483647, %v148
    %vm1282 = vcmp.le.f32.partialorder %v1281, 0.7853982
    %vm1283 = vcmp.lt.s32.totalorder %v148, 0
    %v1284 = vand.u32 %v148, 2139095040
    %v1285 = vshrl.u32 %v1284, 23
    %v1286 = vsub.s32 %v1285, 127
    %v1287 = vand.u32 2147483647, %v148
    %v1288 = vand.u32 %v1287, 8388607
    %v1289 = vor.u32 %v1288, 8388608
    %v1290 = vsub.s32 0, %v1289
    %v1291 = vadd.s32 %v1286, 1
    %vm1292 = vcmp.gt.s32.totalorder %v1291, 0
    %v1293 = vsel %vm1292, %v1291, 0
    %v1294 = vshrl.u32 %v1293, 5
    %v1295 = vand.u32 %v1293, 31
    %v1296 = vsub.s32 32, %v1295
    %v1297 = vshrl.u32 683565275, %v1296
    %v1298 = vshll.u32 683565275, %v1295
    %v1299 = vshrl.u32 2475754826, %v1296
    %v1300 = vor.u32 %v1298, %v1299
    %v1301 = vshll.u32 2475754826, %v1295
    %v1302 = vshrl.u32 2131351028, %v1296
    %v1303 = vor.u32 %v1301, %v1302
    %v1304 = vshll.u32 2131351028, %v1295
    %v1305 = vshrl.u32 2102212464, %v1296
    %v1306 = vor.u32 %v1304, %v1305
    %v1307 = vshll.u32 2102212464, %v1295
    %v1308 = vshrl.u32 920167782, %v1296
    %v1309 = vor.u32 %v1307, %v1308
    %v1310 = vshll.u32 920167782, %v1295
    %v1311 = vshrl.u32 1326507024, %v1296
    %v1312 = vor.u32 %v1310, %v1311
    %vm1313 = vcmp.lt.s32.totalorder %v1294, 1
    %vm1314 = vcmp.lt.s32.totalorder %v1294, 2
    %vm1315 = vcmp.lt.s32.totalorder %v1294, 3
    %vm1316 = vcmp.lt.s32.totalorder %v1294, 4
    %v1317 = vsel %vm1313, %v1297, %v1300
    %v1318 = vsel %vm1316, %v1306, 2102212464
    %v1319 = vsel %vm1315, %v1303, %v1318
    %v1320 = vsel %vm1314, %v1317, %v1319
    %v1321 = vsel %vm1313, %v1300, %v1303
    %v1322 = vsel %vm1316, %v1309, 920167782
    %v1323 = vsel %vm1315, %v1306, %v1322
    %v1324 = vsel %vm1314, %v1321, %v1323
    %v1325 = vsel %vm1313, %v1303, %v1306
    %v1326 = vsel %vm1316, %v1312, 1326507024
    %v1327 = vsel %vm1315, %v1309, %v1326
    %v1328 = vsel %vm1314, %v1325, %v1327
    %v1329 = vshll.u32 %v1289, 8
    %v1330 = vmul.u32.u64.compose %v1329, %v1328
    %v1331 = vextract.low.u32 %v1330
    %v1332 = vextract.high.u32 %v1330
    %v1333 = vmul.u32.u64.compose %v1329, %v1324
    %v1334 = vextract.low.u32 %v1333
    %v1335 = vextract.high.u32 %v1333
    %v1336 = vmul.u32 %v1329, %v1320
    %v1337 = vadd.s32 %v1332, %v1334
    %vm1338 = vc.u32 %v1332, %v1334
    %v1339 = vadd.s32 %v1335, 1
    %v1340 = vsel %vm1338, %v1339, %v1335
    %v1341 = vadd.s32 %v1336, %v1340
    %v1342 = vadd.s32 %v1341, 536870912
    %v1343 = vshrl.u32 %v1342, 30
    %v1344 = vshll.u32 %v1343, 30
    %v1345 = vsub.s32 %v1341, %v1344
    %vm1346 = vcmp.lt.s32.totalorder %v1345, 0
    %v1347 = vsub.s32 0, %v1345
    %v1348 = vsel %vm1346, %v1347, %v1345
    %v1349 = vclz %v1348
    %v1350 = vsub.s32 %v1349, 2
    %vm1351 = vcmp.gt.s32.totalorder 0, %v1350
    %v1352 = vsel %vm1351, 0, %v1350
    %v1353 = vsub.s32 32, %v1352
    %v1354 = vshll.u32 %v1345, %v1352
    %v1355 = vshrl.u32 %v1337, %v1353
    %v1356 = vor.u32 %v1354, %v1355
    %v1357 = vsub.s32 4294967266, %v1352
    %v1358 = vadd.s32 %v1357, 127
    %v1359 = vshll.u32 %v1358, 23
    %v1360 = vor.u32 4788187, %v1359
    %v1361 = vand.u32 2147483647, %v1360
    %v1363 = vcvt.s32.f32 %v1356
    %v1364 = vmul.f32 %v1363, %v1361
    %v1365 = vxor.u32 %v1364, 2147483648
    %v1366 = vsel %vm1283, %v1365, %v1364
    %v1367 = vsub.s32 4, %v1343
    %v1368 = vsel %vm1283, %v1367, %v1343
    %v1369 = vsel %vm1282, %v148, %v1366
    %v1370 = vsel %vm1282, 0, %v1368
    %v1371 = vcosq.f32.pop %v1369
    %v1372 = vsinq.f32.pop %v1369
    %vm1373 = vweird.f32 %v148
    %v1374 = vand.u32 %v1370, 3
    %vm1375 = vcmp.lt.s32.totalorder %v1374, 2
    %vm1376 = vcmp.eq.s32.totalorder %v1374, 0
    %v1377 = vxor.u32 %v1372, 2147483648
    %v1378 = vsel %vm1376, %v1371, %v1377
    %vm1379 = vcmp.eq.s32.totalorder %v1374, 2
    %v1380 = vxor.u32 %v1371, 2147483648
    %v1381 = vsel %vm1379, %v1380, %v1372
    %v1382 = vsel %vm1375, %v1378, %v1381
    %v1383 = vsel %vm1373, nan, %v1382
    %v1384 = vand.u32 2147483647, %v229
    %vm1385 = vcmp.le.f32.partialorder %v1384, 0.7853982
    %vm1386 = vcmp.lt.s32.totalorder %v229, 0
    %v1387 = vand.u32 %v229, 2139095040
    %v1388 = vshrl.u32 %v1387, 23
    %v1389 = vsub.s32 %v1388, 127
    %v1390 = vand.u32 2147483647, %v229
    %v1391 = vand.u32 %v1390, 8388607
    %v1392 = vor.u32 %v1391, 8388608
    %v1393 = vsub.s32 0, %v1392
    %v1394 = vadd.s32 %v1389, 1
    %vm1395 = vcmp.gt.s32.totalorder %v1394, 0
    %v1396 = vsel %vm1395, %v1394, 0
    %v1397 = vshrl.u32 %v1396, 5
    %v1398 = vand.u32 %v1396, 31
    %v1399 = vsub.s32 32, %v1398
    %v1400 = vshrl.u32 683565275, %v1399
    %v1401 = vshll.u32 683565275, %v1398
    %v1402 = vshrl.u32 2475754826, %v1399
    %v1403 = vor.u32 %v1401, %v1402
    %v1404 = vshll.u32 2475754826, %v1398
    %v1405 = vshrl.u32 2131351028, %v1399
    %v1406 = vor.u32 %v1404, %v1405
    %v1407 = vshll.u32 2131351028, %v1398
    %v1408 = vshrl.u32 2102212464, %v1399
    %v1409 = vor.u32 %v1407, %v1408
    %v1410 = vshll.u32 2102212464, %v1398
    %v1411 = vshrl.u32 920167782, %v1399
    %v1412 = vor.u32 %v1410, %v1411
    %v1413 = vshll.u32 920167782, %v1398
    %v1414 = vshrl.u32 1326507024, %v1399
    %v1415 = vor.u32 %v1413, %v1414
    %vm1416 = vcmp.lt.s32.totalorder %v1397, 1
    %vm1417 = vcmp.lt.s32.totalorder %v1397, 2
    %vm1418 = vcmp.lt.s32.totalorder %v1397, 3
    %vm1419 = vcmp.lt.s32.totalorder %v1397, 4
    %v1420 = vsel %vm1416, %v1400, %v1403
    %v1421 = vsel %vm1419, %v1409, 2102212464
    %v1422 = vsel %vm1418, %v1406, %v1421
    %v1423 = vsel %vm1417, %v1420, %v1422
    %v1424 = vsel %vm1416, %v1403, %v1406
    %v1425 = vsel %vm1419, %v1412, 920167782
    %v1426 = vsel %vm1418, %v1409, %v1425
    %v1427 = vsel %vm1417, %v1424, %v1426
    %v1428 = vsel %vm1416, %v1406, %v1409
    %v1429 = vsel %vm1419, %v1415, 1326507024
    %v1430 = vsel %vm1418, %v1412, %v1429
    %v1431 = vsel %vm1417, %v1428, %v1430
    %v1432 = vshll.u32 %v1392, 8
    %v1433 = vmul.u32.u64.compose %v1432, %v1431
    %v1434 = vextract.low.u32 %v1433
    %v1435 = vextract.high.u32 %v1433
    %v1436 = vmul.u32.u64.compose %v1432, %v1427
    %v1437 = vextract.low.u32 %v1436
    %v1438 = vextract.high.u32 %v1436
    %v1439 = vmul.u32 %v1432, %v1423
    %v1440 = vadd.s32 %v1435, %v1437
    %vm1441 = vc.u32 %v1435, %v1437
    %v1442 = vadd.s32 %v1438, 1
    %v1443 = vsel %vm1441, %v1442, %v1438
    %v1444 = vadd.s32 %v1439, %v1443
    %v1445 = vadd.s32 %v1444, 536870912
    %v1446 = vshrl.u32 %v1445, 30
    %v1447 = vshll.u32 %v1446, 30
    %v1448 = vsub.s32 %v1444, %v1447
    %vm1449 = vcmp.lt.s32.totalorder %v1448, 0
    %v1450 = vsub.s32 0, %v1448
    %v1451 = vsel %vm1449, %v1450, %v1448
    %v1452 = vclz %v1451
    %v1453 = vsub.s32 %v1452, 2
    %vm1454 = vcmp.gt.s32.totalorder 0, %v1453
    %v1455 = vsel %vm1454, 0, %v1453
    %v1456 = vsub.s32 32, %v1455
    %v1457 = vshll.u32 %v1448, %v1455
    %v1458 = vshrl.u32 %v1440, %v1456
    %v1459 = vor.u32 %v1457, %v1458
    %v1460 = vsub.s32 4294967266, %v1455
    %v1461 = vadd.s32 %v1460, 127
    %v1462 = vshll.u32 %v1461, 23
    %v1463 = vor.u32 4788187, %v1462
    %v1464 = vand.u32 2147483647, %v1463
    %v1466 = vcvt.s32.f32 %v1459
    %v1467 = vmul.f32 %v1466, %v1464
    %v1468 = vxor.u32 %v1467, 2147483648
    %v1469 = vsel %vm1386, %v1468, %v1467
    %v1470 = vsub.s32 4, %v1446
    %v1471 = vsel %vm1386, %v1470, %v1446
    %v1472 = vsel %vm1385, %v229, %v1469
    %v1473 = vsel %vm1385, 0, %v1471
    %v1474 = vcosq.f32.pop %v1472
    %v1475 = vsinq.f32.pop %v1472
    %vm1476 = vweird.f32 %v229
    %v1477 = vand.u32 %v1473, 3
    %vm1478 = vcmp.lt.s32.totalorder %v1477, 2
    %vm1479 = vcmp.eq.s32.totalorder %v1477, 0
    %v1480 = vxor.u32 %v1475, 2147483648
    %v1481 = vsel %vm1479, %v1474, %v1480
    %vm1482 = vcmp.eq.s32.totalorder %v1477, 2
    %v1483 = vxor.u32 %v1474, 2147483648
    %v1484 = vsel %vm1482, %v1483, %v1475
    %v1485 = vsel %vm1478, %v1481, %v1484
    %v1486 = vsel %vm1476, nan, %v1485
    %v1487 = vand.u32 2147483647, %v152
    %vm1488 = vcmp.le.f32.partialorder %v1487, 0.7853982
    %vm1489 = vcmp.lt.s32.totalorder %v152, 0
    %v1490 = vand.u32 %v152, 2139095040
    %v1491 = vshrl.u32 %v1490, 23
    %v1492 = vsub.s32 %v1491, 127
    %v1493 = vand.u32 2147483647, %v152
    %v1494 = vand.u32 %v1493, 8388607
    %v1495 = vor.u32 %v1494, 8388608
    %v1496 = vsub.s32 0, %v1495
    %v1497 = vadd.s32 %v1492, 1
    %vm1498 = vcmp.gt.s32.totalorder %v1497, 0
    %v1499 = vsel %vm1498, %v1497, 0
    %v1500 = vshrl.u32 %v1499, 5
    %v1501 = vand.u32 %v1499, 31
    %v1502 = vsub.s32 32, %v1501
    %v1503 = vshrl.u32 683565275, %v1502
    %v1504 = vshll.u32 683565275, %v1501
    %v1505 = vshrl.u32 2475754826, %v1502
    %v1506 = vor.u32 %v1504, %v1505
    %v1507 = vshll.u32 2475754826, %v1501
    %v1508 = vshrl.u32 2131351028, %v1502
    %v1509 = vor.u32 %v1507, %v1508
    %v1510 = vshll.u32 2131351028, %v1501
    %v1511 = vshrl.u32 2102212464, %v1502
    %v1512 = vor.u32 %v1510, %v1511
    %v1513 = vshll.u32 2102212464, %v1501
    %v1514 = vshrl.u32 920167782, %v1502
    %v1515 = vor.u32 %v1513, %v1514
    %v1516 = vshll.u32 920167782, %v1501
    %v1517 = vshrl.u32 1326507024, %v1502
    %v1518 = vor.u32 %v1516, %v1517
    %vm1519 = vcmp.lt.s32.totalorder %v1500, 1
    %vm1520 = vcmp.lt.s32.totalorder %v1500, 2
    %vm1521 = vcmp.lt.s32.totalorder %v1500, 3
    %vm1522 = vcmp.lt.s32.totalorder %v1500, 4
    %v1523 = vsel %vm1519, %v1503, %v1506
    %v1524 = vsel %vm1522, %v1512, 2102212464
    %v1525 = vsel %vm1521, %v1509, %v1524
    %v1526 = vsel %vm1520, %v1523, %v1525
    %v1527 = vsel %vm1519, %v1506, %v1509
    %v1528 = vsel %vm1522, %v1515, 920167782
    %v1529 = vsel %vm1521, %v1512, %v1528
    %v1530 = vsel %vm1520, %v1527, %v1529
    %v1531 = vsel %vm1519, %v1509, %v1512
    %v1532 = vsel %vm1522, %v1518, 1326507024
    %v1533 = vsel %vm1521, %v1515, %v1532
    %v1534 = vsel %vm1520, %v1531, %v1533
    %v1535 = vshll.u32 %v1495, 8
    %v1536 = vmul.u32.u64.compose %v1535, %v1534
    %v1537 = vextract.low.u32 %v1536
    %v1538 = vextract.high.u32 %v1536
    %v1539 = vmul.u32.u64.compose %v1535, %v1530
    %v1540 = vextract.low.u32 %v1539
    %v1541 = vextract.high.u32 %v1539
    %v1542 = vmul.u32 %v1535, %v1526
    %v1543 = vadd.s32 %v1538, %v1540
    %vm1544 = vc.u32 %v1538, %v1540
    %v1545 = vadd.s32 %v1541, 1
    %v1546 = vsel %vm1544, %v1545, %v1541
    %v1547 = vadd.s32 %v1542, %v1546
    %v1548 = vadd.s32 %v1547, 536870912
    %v1549 = vshrl.u32 %v1548, 30
    %v1550 = vshll.u32 %v1549, 30
    %v1551 = vsub.s32 %v1547, %v1550
    %vm1552 = vcmp.lt.s32.totalorder %v1551, 0
    %v1553 = vsub.s32 0, %v1551
    %v1554 = vsel %vm1552, %v1553, %v1551
    %v1555 = vclz %v1554
    %v1556 = vsub.s32 %v1555, 2
    %vm1557 = vcmp.gt.s32.totalorder 0, %v1556
    %v1558 = vsel %vm1557, 0, %v1556
    %v1559 = vsub.s32 32, %v1558
    %v1560 = vshll.u32 %v1551, %v1558
    %v1561 = vshrl.u32 %v1543, %v1559
    %v1562 = vor.u32 %v1560, %v1561
    %v1563 = vsub.s32 4294967266, %v1558
    %v1564 = vadd.s32 %v1563, 127
    %v1565 = vshll.u32 %v1564, 23
    %v1566 = vor.u32 4788187, %v1565
    %v1567 = vand.u32 2147483647, %v1566
    %v1569 = vcvt.s32.f32 %v1562
    %v1570 = vmul.f32 %v1569, %v1567
    %v1571 = vxor.u32 %v1570, 2147483648
    %v1572 = vsel %vm1489, %v1571, %v1570
    %v1573 = vsub.s32 4, %v1549
    %v1574 = vsel %vm1489, %v1573, %v1549
    %v1575 = vsel %vm1488, %v152, %v1572
    %v1576 = vsel %vm1488, 0, %v1574
    %v1577 = vcosq.f32.pop %v1575
    %v1578 = vsinq.f32.pop %v1575
    %vm1579 = vweird.f32 %v152
    %v1580 = vand.u32 %v1576, 3
    %vm1581 = vcmp.lt.s32.totalorder %v1580, 2
    %vm1582 = vcmp.eq.s32.totalorder %v1580, 0
    %v1583 = vxor.u32 %v1578, 2147483648
    %v1584 = vsel %vm1582, %v1577, %v1583
    %vm1585 = vcmp.eq.s32.totalorder %v1580, 2
    %v1586 = vxor.u32 %v1577, 2147483648
    %v1587 = vsel %vm1585, %v1586, %v1578
    %v1588 = vsel %vm1581, %v1584, %v1587
    %v1589 = vsel %vm1579, nan, %v1588
    %v1590 = vand.u32 2147483647, %v154
    %vm1591 = vcmp.le.f32.partialorder %v1590, 0.7853982
    %vm1592 = vcmp.lt.s32.totalorder %v154, 0
    %v1593 = vand.u32 %v154, 2139095040
    %v1594 = vshrl.u32 %v1593, 23
    %v1595 = vsub.s32 %v1594, 127
    %v1596 = vand.u32 2147483647, %v154
    %v1597 = vand.u32 %v1596, 8388607
    %v1598 = vor.u32 %v1597, 8388608
    %v1599 = vsub.s32 0, %v1598
    %v1600 = vadd.s32 %v1595, 1
    %vm1601 = vcmp.gt.s32.totalorder %v1600, 0
    %v1602 = vsel %vm1601, %v1600, 0
    %v1603 = vshrl.u32 %v1602, 5
    %v1604 = vand.u32 %v1602, 31
    %v1605 = vsub.s32 32, %v1604
    %v1606 = vshrl.u32 683565275, %v1605
    %v1607 = vshll.u32 683565275, %v1604
    %v1608 = vshrl.u32 2475754826, %v1605
    %v1609 = vor.u32 %v1607, %v1608
    %v1610 = vshll.u32 2475754826, %v1604
    %v1611 = vshrl.u32 2131351028, %v1605
    %v1612 = vor.u32 %v1610, %v1611
    %v1613 = vshll.u32 2131351028, %v1604
    %v1614 = vshrl.u32 2102212464, %v1605
    %v1615 = vor.u32 %v1613, %v1614
    %v1616 = vshll.u32 2102212464, %v1604
    %v1617 = vshrl.u32 920167782, %v1605
    %v1618 = vor.u32 %v1616, %v1617
    %v1619 = vshll.u32 920167782, %v1604
    %v1620 = vshrl.u32 1326507024, %v1605
    %v1621 = vor.u32 %v1619, %v1620
    %vm1622 = vcmp.lt.s32.totalorder %v1603, 1
    %vm1623 = vcmp.lt.s32.totalorder %v1603, 2
    %vm1624 = vcmp.lt.s32.totalorder %v1603, 3
    %vm1625 = vcmp.lt.s32.totalorder %v1603, 4
    %v1626 = vsel %vm1622, %v1606, %v1609
    %v1627 = vsel %vm1625, %v1615, 2102212464
    %v1628 = vsel %vm1624, %v1612, %v1627
    %v1629 = vsel %vm1623, %v1626, %v1628
    %v1630 = vsel %vm1622, %v1609, %v1612
    %v1631 = vsel %vm1625, %v1618, 920167782
    %v1632 = vsel %vm1624, %v1615, %v1631
    %v1633 = vsel %vm1623, %v1630, %v1632
    %v1634 = vsel %vm1622, %v1612, %v1615
    %v1635 = vsel %vm1625, %v1621, 1326507024
    %v1636 = vsel %vm1624, %v1618, %v1635
    %v1637 = vsel %vm1623, %v1634, %v1636
    %v1638 = vshll.u32 %v1598, 8
    %v1639 = vmul.u32.u64.compose %v1638, %v1637
    %v1640 = vextract.low.u32 %v1639
    %v1641 = vextract.high.u32 %v1639
    %v1642 = vmul.u32.u64.compose %v1638, %v1633
    %v1643 = vextract.low.u32 %v1642
    %v1644 = vextract.high.u32 %v1642
    %v1645 = vmul.u32 %v1638, %v1629
    %v1646 = vadd.s32 %v1641, %v1643
    %vm1647 = vc.u32 %v1641, %v1643
    %v1648 = vadd.s32 %v1644, 1
    %v1649 = vsel %vm1647, %v1648, %v1644
    %v1650 = vadd.s32 %v1645, %v1649
    %v1651 = vadd.s32 %v1650, 536870912
    %v1652 = vshrl.u32 %v1651, 30
    %v1653 = vshll.u32 %v1652, 30
    %v1654 = vsub.s32 %v1650, %v1653
    %vm1655 = vcmp.lt.s32.totalorder %v1654, 0
    %v1656 = vsub.s32 0, %v1654
    %v1657 = vsel %vm1655, %v1656, %v1654
    %v1658 = vclz %v1657
    %v1659 = vsub.s32 %v1658, 2
    %vm1660 = vcmp.gt.s32.totalorder 0, %v1659
    %v1661 = vsel %vm1660, 0, %v1659
    %v1662 = vsub.s32 32, %v1661
    %v1663 = vshll.u32 %v1654, %v1661
    %v1664 = vshrl.u32 %v1646, %v1662
    %v1665 = vor.u32 %v1663, %v1664
    %v1666 = vsub.s32 4294967266, %v1661
    %v1667 = vadd.s32 %v1666, 127
    %v1668 = vshll.u32 %v1667, 23
    %v1669 = vor.u32 4788187, %v1668
    %v1670 = vand.u32 2147483647, %v1669
    %v1672 = vcvt.s32.f32 %v1665
    %v1673 = vmul.f32 %v1672, %v1670
    %v1674 = vxor.u32 %v1673, 2147483648
    %v1675 = vsel %vm1592, %v1674, %v1673
    %v1676 = vsub.s32 4, %v1652
    %v1677 = vsel %vm1592, %v1676, %v1652
    %v1678 = vsel %vm1591, %v154, %v1675
    %v1679 = vsel %vm1591, 0, %v1677
    %v1680 = vcosq.f32.pop %v1678
    %v1681 = vsinq.f32.pop %v1678
    %vm1682 = vweird.f32 %v154
    %v1683 = vand.u32 %v1679, 3
    %vm1684 = vcmp.lt.s32.totalorder %v1683, 2
    %vm1685 = vcmp.eq.s32.totalorder %v1683, 0
    %v1686 = vxor.u32 %v1681, 2147483648
    %v1687 = vsel %vm1685, %v1680, %v1686
    %vm1688 = vcmp.eq.s32.totalorder %v1683, 2
    %v1689 = vxor.u32 %v1680, 2147483648
    %v1690 = vsel %vm1688, %v1689, %v1681
    %v1691 = vsel %vm1684, %v1687, %v1690
    %v1692 = vsel %vm1682, nan, %v1691
    %v1693 = vand.u32 2147483647, %v234
    %vm1694 = vcmp.le.f32.partialorder %v1693, 0.7853982
    %vm1695 = vcmp.lt.s32.totalorder %v234, 0
    %v1696 = vand.u32 %v234, 2139095040
    %v1697 = vshrl.u32 %v1696, 23
    %v1698 = vsub.s32 %v1697, 127
    %v1699 = vand.u32 2147483647, %v234
    %v1700 = vand.u32 %v1699, 8388607
    %v1701 = vor.u32 %v1700, 8388608
    %v1702 = vsub.s32 0, %v1701
    %v1703 = vadd.s32 %v1698, 1
    %vm1704 = vcmp.gt.s32.totalorder %v1703, 0
    %v1705 = vsel %vm1704, %v1703, 0
    %v1706 = vshrl.u32 %v1705, 5
    %v1707 = vand.u32 %v1705, 31
    %v1708 = vsub.s32 32, %v1707
    %v1709 = vshrl.u32 683565275, %v1708
    %v1710 = vshll.u32 683565275, %v1707
    %v1711 = vshrl.u32 2475754826, %v1708
    %v1712 = vor.u32 %v1710, %v1711
    %v1713 = vshll.u32 2475754826, %v1707
    %v1714 = vshrl.u32 2131351028, %v1708
    %v1715 = vor.u32 %v1713, %v1714
    %v1716 = vshll.u32 2131351028, %v1707
    %v1717 = vshrl.u32 2102212464, %v1708
    %v1718 = vor.u32 %v1716, %v1717
    %v1719 = vshll.u32 2102212464, %v1707
    %v1720 = vshrl.u32 920167782, %v1708
    %v1721 = vor.u32 %v1719, %v1720
    %v1722 = vshll.u32 920167782, %v1707
    %v1723 = vshrl.u32 1326507024, %v1708
    %v1724 = vor.u32 %v1722, %v1723
    %vm1725 = vcmp.lt.s32.totalorder %v1706, 1
    %vm1726 = vcmp.lt.s32.totalorder %v1706, 2
    %vm1727 = vcmp.lt.s32.totalorder %v1706, 3
    %vm1728 = vcmp.lt.s32.totalorder %v1706, 4
    %v1729 = vsel %vm1725, %v1709, %v1712
    %v1730 = vsel %vm1728, %v1718, 2102212464
    %v1731 = vsel %vm1727, %v1715, %v1730
    %v1732 = vsel %vm1726, %v1729, %v1731
    %v1733 = vsel %vm1725, %v1712, %v1715
    %v1734 = vsel %vm1728, %v1721, 920167782
    %v1735 = vsel %vm1727, %v1718, %v1734
    %v1736 = vsel %vm1726, %v1733, %v1735
    %v1737 = vsel %vm1725, %v1715, %v1718
    %v1738 = vsel %vm1728, %v1724, 1326507024
    %v1739 = vsel %vm1727, %v1721, %v1738
    %v1740 = vsel %vm1726, %v1737, %v1739
    %v1741 = vshll.u32 %v1701, 8
    %v1742 = vmul.u32.u64.compose %v1741, %v1740
    %v1743 = vextract.low.u32 %v1742
    %v1744 = vextract.high.u32 %v1742
    %v1745 = vmul.u32.u64.compose %v1741, %v1736
    %v1746 = vextract.low.u32 %v1745
    %v1747 = vextract.high.u32 %v1745
    %v1748 = vmul.u32 %v1741, %v1732
    %v1749 = vadd.s32 %v1744, %v1746
    %vm1750 = vc.u32 %v1744, %v1746
    %v1751 = vadd.s32 %v1747, 1
    %v1752 = vsel %vm1750, %v1751, %v1747
    %v1753 = vadd.s32 %v1748, %v1752
    %v1754 = vadd.s32 %v1753, 536870912
    %v1755 = vshrl.u32 %v1754, 30
    %v1756 = vshll.u32 %v1755, 30
    %v1757 = vsub.s32 %v1753, %v1756
    %vm1758 = vcmp.lt.s32.totalorder %v1757, 0
    %v1759 = vsub.s32 0, %v1757
    %v1760 = vsel %vm1758, %v1759, %v1757
    %v1761 = vclz %v1760
    %v1762 = vsub.s32 %v1761, 2
    %vm1763 = vcmp.gt.s32.totalorder 0, %v1762
    %v1764 = vsel %vm1763, 0, %v1762
    %v1765 = vsub.s32 32, %v1764
    %v1766 = vshll.u32 %v1757, %v1764
    %v1767 = vshrl.u32 %v1749, %v1765
    %v1768 = vor.u32 %v1766, %v1767
    %v1769 = vsub.s32 4294967266, %v1764
    %v1770 = vadd.s32 %v1769, 127
    %v1771 = vshll.u32 %v1770, 23
    %v1772 = vor.u32 4788187, %v1771
    %v1773 = vand.u32 2147483647, %v1772
    %v1775 = vcvt.s32.f32 %v1768
    %v1776 = vmul.f32 %v1775, %v1773
    %v1777 = vxor.u32 %v1776, 2147483648
    %v1778 = vsel %vm1695, %v1777, %v1776
    %v1779 = vsub.s32 4, %v1755
    %v1780 = vsel %vm1695, %v1779, %v1755
    %v1781 = vsel %vm1694, %v234, %v1778
    %v1782 = vsel %vm1694, 0, %v1780
    %v1783 = vcosq.f32.pop %v1781
    %v1784 = vsinq.f32.pop %v1781
    %vm1785 = vweird.f32 %v234
    %v1786 = vand.u32 %v1782, 3
    %vm1787 = vcmp.lt.s32.totalorder %v1786, 2
    %vm1788 = vcmp.eq.s32.totalorder %v1786, 0
    %v1789 = vxor.u32 %v1784, 2147483648
    %v1790 = vsel %vm1788, %v1783, %v1789
    %vm1791 = vcmp.eq.s32.totalorder %v1786, 2
    %v1792 = vxor.u32 %v1783, 2147483648
    %v1793 = vsel %vm1791, %v1792, %v1784
    %v1794 = vsel %vm1787, %v1790, %v1793
    %v1795 = vsel %vm1785, nan, %v1794
    %v1796 = vand.u32 2147483647, %v158
    %vm1797 = vcmp.le.f32.partialorder %v1796, 0.7853982
    %vm1798 = vcmp.lt.s32.totalorder %v158, 0
    %v1799 = vand.u32 %v158, 2139095040
    %v1800 = vshrl.u32 %v1799, 23
    %v1801 = vsub.s32 %v1800, 127
    %v1802 = vand.u32 2147483647, %v158
    %v1803 = vand.u32 %v1802, 8388607
    %v1804 = vor.u32 %v1803, 8388608
    %v1805 = vsub.s32 0, %v1804
    %v1806 = vadd.s32 %v1801, 1
    %vm1807 = vcmp.gt.s32.totalorder %v1806, 0
    %v1808 = vsel %vm1807, %v1806, 0
    %v1809 = vshrl.u32 %v1808, 5
    %v1810 = vand.u32 %v1808, 31
    %v1811 = vsub.s32 32, %v1810
    %v1812 = vshrl.u32 683565275, %v1811
    %v1813 = vshll.u32 683565275, %v1810
    %v1814 = vshrl.u32 2475754826, %v1811
    %v1815 = vor.u32 %v1813, %v1814
    %v1816 = vshll.u32 2475754826, %v1810
    %v1817 = vshrl.u32 2131351028, %v1811
    %v1818 = vor.u32 %v1816, %v1817
    %v1819 = vshll.u32 2131351028, %v1810
    %v1820 = vshrl.u32 2102212464, %v1811
    %v1821 = vor.u32 %v1819, %v1820
    %v1822 = vshll.u32 2102212464, %v1810
    %v1823 = vshrl.u32 920167782, %v1811
    %v1824 = vor.u32 %v1822, %v1823
    %v1825 = vshll.u32 920167782, %v1810
    %v1826 = vshrl.u32 1326507024, %v1811
    %v1827 = vor.u32 %v1825, %v1826
    %vm1828 = vcmp.lt.s32.totalorder %v1809, 1
    %vm1829 = vcmp.lt.s32.totalorder %v1809, 2
    %vm1830 = vcmp.lt.s32.totalorder %v1809, 3
    %vm1831 = vcmp.lt.s32.totalorder %v1809, 4
    %v1832 = vsel %vm1828, %v1812, %v1815
    %v1833 = vsel %vm1831, %v1821, 2102212464
    %v1834 = vsel %vm1830, %v1818, %v1833
    %v1835 = vsel %vm1829, %v1832, %v1834
    %v1836 = vsel %vm1828, %v1815, %v1818
    %v1837 = vsel %vm1831, %v1824, 920167782
    %v1838 = vsel %vm1830, %v1821, %v1837
    %v1839 = vsel %vm1829, %v1836, %v1838
    %v1840 = vsel %vm1828, %v1818, %v1821
    %v1841 = vsel %vm1831, %v1827, 1326507024
    %v1842 = vsel %vm1830, %v1824, %v1841
    %v1843 = vsel %vm1829, %v1840, %v1842
    %v1844 = vshll.u32 %v1804, 8
    %v1845 = vmul.u32.u64.compose %v1844, %v1843
    %v1846 = vextract.low.u32 %v1845
    %v1847 = vextract.high.u32 %v1845
    %v1848 = vmul.u32.u64.compose %v1844, %v1839
    %v1849 = vextract.low.u32 %v1848
    %v1850 = vextract.high.u32 %v1848
    %v1851 = vmul.u32 %v1844, %v1835
    %v1852 = vadd.s32 %v1847, %v1849
    %vm1853 = vc.u32 %v1847, %v1849
    %v1854 = vadd.s32 %v1850, 1
    %v1855 = vsel %vm1853, %v1854, %v1850
    %v1856 = vadd.s32 %v1851, %v1855
    %v1857 = vadd.s32 %v1856, 536870912
    %v1858 = vshrl.u32 %v1857, 30
    %v1859 = vshll.u32 %v1858, 30
    %v1860 = vsub.s32 %v1856, %v1859
    %vm1861 = vcmp.lt.s32.totalorder %v1860, 0
    %v1862 = vsub.s32 0, %v1860
    %v1863 = vsel %vm1861, %v1862, %v1860
    %v1864 = vclz %v1863
    %v1865 = vsub.s32 %v1864, 2
    %vm1866 = vcmp.gt.s32.totalorder 0, %v1865
    %v1867 = vsel %vm1866, 0, %v1865
    %v1868 = vsub.s32 32, %v1867
    %v1869 = vshll.u32 %v1860, %v1867
    %v1870 = vshrl.u32 %v1852, %v1868
    %v1871 = vor.u32 %v1869, %v1870
    %v1872 = vsub.s32 4294967266, %v1867
    %v1873 = vadd.s32 %v1872, 127
    %v1874 = vshll.u32 %v1873, 23
    %v1875 = vor.u32 4788187, %v1874
    %v1876 = vand.u32 2147483647, %v1875
    %v1878 = vcvt.s32.f32 %v1871
    %v1879 = vmul.f32 %v1878, %v1876
    %v1880 = vxor.u32 %v1879, 2147483648
    %v1881 = vsel %vm1798, %v1880, %v1879
    %v1882 = vsub.s32 4, %v1858
    %v1883 = vsel %vm1798, %v1882, %v1858
    %v1884 = vsel %vm1797, %v158, %v1881
    %v1885 = vsel %vm1797, 0, %v1883
    %v1886 = vcosq.f32.pop %v1884
    %v1887 = vsinq.f32.pop %v1884
    %vm1888 = vweird.f32 %v158
    %v1889 = vand.u32 %v1885, 3
    %vm1890 = vcmp.lt.s32.totalorder %v1889, 2
    %vm1891 = vcmp.eq.s32.totalorder %v1889, 0
    %v1892 = vxor.u32 %v1887, 2147483648
    %v1893 = vsel %vm1891, %v1886, %v1892
    %vm1894 = vcmp.eq.s32.totalorder %v1889, 2
    %v1895 = vxor.u32 %v1886, 2147483648
    %v1896 = vsel %vm1894, %v1895, %v1887
    %v1897 = vsel %vm1890, %v1893, %v1896
    %v1898 = vsel %vm1888, nan, %v1897
    %v1899 = vand.u32 2147483647, %v160
    %vm1900 = vcmp.le.f32.partialorder %v1899, 0.7853982
    %vm1901 = vcmp.lt.s32.totalorder %v160, 0
    %v1902 = vand.u32 %v160, 2139095040
    %v1903 = vshrl.u32 %v1902, 23
    %v1904 = vsub.s32 %v1903, 127
    %v1905 = vand.u32 2147483647, %v160
    %v1906 = vand.u32 %v1905, 8388607
    %v1907 = vor.u32 %v1906, 8388608
    %v1908 = vsub.s32 0, %v1907
    %v1909 = vadd.s32 %v1904, 1
    %vm1910 = vcmp.gt.s32.totalorder %v1909, 0
    %v1911 = vsel %vm1910, %v1909, 0
    %v1912 = vshrl.u32 %v1911, 5
    %v1913 = vand.u32 %v1911, 31
    %v1914 = vsub.s32 32, %v1913
    %v1915 = vshrl.u32 683565275, %v1914
    %v1916 = vshll.u32 683565275, %v1913
    %v1917 = vshrl.u32 2475754826, %v1914
    %v1918 = vor.u32 %v1916, %v1917
    %v1919 = vshll.u32 2475754826, %v1913
    %v1920 = vshrl.u32 2131351028, %v1914
    %v1921 = vor.u32 %v1919, %v1920
    %v1922 = vshll.u32 2131351028, %v1913
    %v1923 = vshrl.u32 2102212464, %v1914
    %v1924 = vor.u32 %v1922, %v1923
    %v1925 = vshll.u32 2102212464, %v1913
    %v1926 = vshrl.u32 920167782, %v1914
    %v1927 = vor.u32 %v1925, %v1926
    %v1928 = vshll.u32 920167782, %v1913
    %v1929 = vshrl.u32 1326507024, %v1914
    %v1930 = vor.u32 %v1928, %v1929
    %vm1931 = vcmp.lt.s32.totalorder %v1912, 1
    %vm1932 = vcmp.lt.s32.totalorder %v1912, 2
    %vm1933 = vcmp.lt.s32.totalorder %v1912, 3
    %vm1934 = vcmp.lt.s32.totalorder %v1912, 4
    %v1935 = vsel %vm1931, %v1915, %v1918
    %v1936 = vsel %vm1934, %v1924, 2102212464
    %v1937 = vsel %vm1933, %v1921, %v1936
    %v1938 = vsel %vm1932, %v1935, %v1937
    %v1939 = vsel %vm1931, %v1918, %v1921
    %v1940 = vsel %vm1934, %v1927, 920167782
    %v1941 = vsel %vm1933, %v1924, %v1940
    %v1942 = vsel %vm1932, %v1939, %v1941
    %v1943 = vsel %vm1931, %v1921, %v1924
    %v1944 = vsel %vm1934, %v1930, 1326507024
    %v1945 = vsel %vm1933, %v1927, %v1944
    %v1946 = vsel %vm1932, %v1943, %v1945
    %v1947 = vshll.u32 %v1907, 8
    %v1948 = vmul.u32.u64.compose %v1947, %v1946
    %v1949 = vextract.low.u32 %v1948
    %v1950 = vextract.high.u32 %v1948
    %v1951 = vmul.u32.u64.compose %v1947, %v1942
    %v1952 = vextract.low.u32 %v1951
    %v1953 = vextract.high.u32 %v1951
    %v1954 = vmul.u32 %v1947, %v1938
    %v1955 = vadd.s32 %v1950, %v1952
    %vm1956 = vc.u32 %v1950, %v1952
    %v1957 = vadd.s32 %v1953, 1
    %v1958 = vsel %vm1956, %v1957, %v1953
    %v1959 = vadd.s32 %v1954, %v1958
    %v1960 = vadd.s32 %v1959, 536870912
    %v1961 = vshrl.u32 %v1960, 30
    %v1962 = vshll.u32 %v1961, 30
    %v1963 = vsub.s32 %v1959, %v1962
    %vm1964 = vcmp.lt.s32.totalorder %v1963, 0
    %v1965 = vsub.s32 0, %v1963
    %v1966 = vsel %vm1964, %v1965, %v1963
    %v1967 = vclz %v1966
    %v1968 = vsub.s32 %v1967, 2
    %vm1969 = vcmp.gt.s32.totalorder 0, %v1968
    %v1970 = vsel %vm1969, 0, %v1968
    %v1971 = vsub.s32 32, %v1970
    %v1972 = vshll.u32 %v1963, %v1970
    %v1973 = vshrl.u32 %v1955, %v1971
    %v1974 = vor.u32 %v1972, %v1973
    %v1975 = vsub.s32 4294967266, %v1970
    %v1976 = vadd.s32 %v1975, 127
    %v1977 = vshll.u32 %v1976, 23
    %v1978 = vor.u32 4788187, %v1977
    %v1979 = vand.u32 2147483647, %v1978
    %v1981 = vcvt.s32.f32 %v1974
    %v1982 = vmul.f32 %v1981, %v1979
    %v1983 = vxor.u32 %v1982, 2147483648
    %v1984 = vsel %vm1901, %v1983, %v1982
    %v1985 = vsub.s32 4, %v1961
    %v1986 = vsel %vm1901, %v1985, %v1961
    %v1987 = vsel %vm1900, %v160, %v1984
    %v1988 = vsel %vm1900, 0, %v1986
    %v1989 = vcosq.f32.pop %v1987
    %v1990 = vsinq.f32.pop %v1987
    %vm1991 = vweird.f32 %v160
    %v1992 = vand.u32 %v1988, 3
    %vm1993 = vcmp.lt.s32.totalorder %v1992, 2
    %vm1994 = vcmp.eq.s32.totalorder %v1992, 0
    %v1995 = vxor.u32 %v1990, 2147483648
    %v1996 = vsel %vm1994, %v1989, %v1995
    %vm1997 = vcmp.eq.s32.totalorder %v1992, 2
    %v1998 = vxor.u32 %v1989, 2147483648
    %v1999 = vsel %vm1997, %v1998, %v1990
    %v2000 = vsel %vm1993, %v1996, %v1999
    %v2001 = vsel %vm1991, nan, %v2000
    %v2002 = vand.u32 2147483647, %v239
    %vm2003 = vcmp.le.f32.partialorder %v2002, 0.7853982
    %vm2004 = vcmp.lt.s32.totalorder %v239, 0
    %v2005 = vand.u32 %v239, 2139095040
    %v2006 = vshrl.u32 %v2005, 23
    %v2007 = vsub.s32 %v2006, 127
    %v2008 = vand.u32 2147483647, %v239
    %v2009 = vand.u32 %v2008, 8388607
    %v2010 = vor.u32 %v2009, 8388608
    %v2011 = vsub.s32 0, %v2010
    %v2012 = vadd.s32 %v2007, 1
    %vm2013 = vcmp.gt.s32.totalorder %v2012, 0
    %v2014 = vsel %vm2013, %v2012, 0
    %v2015 = vshrl.u32 %v2014, 5
    %v2016 = vand.u32 %v2014, 31
    %v2017 = vsub.s32 32, %v2016
    %v2018 = vshrl.u32 683565275, %v2017
    %v2019 = vshll.u32 683565275, %v2016
    %v2020 = vshrl.u32 2475754826, %v2017
    %v2021 = vor.u32 %v2019, %v2020
    %v2022 = vshll.u32 2475754826, %v2016
    %v2023 = vshrl.u32 2131351028, %v2017
    %v2024 = vor.u32 %v2022, %v2023
    %v2025 = vshll.u32 2131351028, %v2016
    %v2026 = vshrl.u32 2102212464, %v2017
    %v2027 = vor.u32 %v2025, %v2026
    %v2028 = vshll.u32 2102212464, %v2016
    %v2029 = vshrl.u32 920167782, %v2017
    %v2030 = vor.u32 %v2028, %v2029
    %v2031 = vshll.u32 920167782, %v2016
    %v2032 = vshrl.u32 1326507024, %v2017
    %v2033 = vor.u32 %v2031, %v2032
    %vm2034 = vcmp.lt.s32.totalorder %v2015, 1
    %vm2035 = vcmp.lt.s32.totalorder %v2015, 2
    %vm2036 = vcmp.lt.s32.totalorder %v2015, 3
    %vm2037 = vcmp.lt.s32.totalorder %v2015, 4
    %v2038 = vsel %vm2034, %v2018, %v2021
    %v2039 = vsel %vm2037, %v2027, 2102212464
    %v2040 = vsel %vm2036, %v2024, %v2039
    %v2041 = vsel %vm2035, %v2038, %v2040
    %v2042 = vsel %vm2034, %v2021, %v2024
    %v2043 = vsel %vm2037, %v2030, 920167782
    %v2044 = vsel %vm2036, %v2027, %v2043
    %v2045 = vsel %vm2035, %v2042, %v2044
    %v2046 = vsel %vm2034, %v2024, %v2027
    %v2047 = vsel %vm2037, %v2033, 1326507024
    %v2048 = vsel %vm2036, %v2030, %v2047
    %v2049 = vsel %vm2035, %v2046, %v2048
    %v2050 = vshll.u32 %v2010, 8
    %v2051 = vmul.u32.u64.compose %v2050, %v2049
    %v2052 = vextract.low.u32 %v2051
    %v2053 = vextract.high.u32 %v2051
    %v2054 = vmul.u32.u64.compose %v2050, %v2045
    %v2055 = vextract.low.u32 %v2054
    %v2056 = vextract.high.u32 %v2054
    %v2057 = vmul.u32 %v2050, %v2041
    %v2058 = vadd.s32 %v2053, %v2055
    %vm2059 = vc.u32 %v2053, %v2055
    %v2060 = vadd.s32 %v2056, 1
    %v2061 = vsel %vm2059, %v2060, %v2056
    %v2062 = vadd.s32 %v2057, %v2061
    %v2063 = vadd.s32 %v2062, 536870912
    %v2064 = vshrl.u32 %v2063, 30
    %v2065 = vshll.u32 %v2064, 30
    %v2066 = vsub.s32 %v2062, %v2065
    %vm2067 = vcmp.lt.s32.totalorder %v2066, 0
    %v2068 = vsub.s32 0, %v2066
    %v2069 = vsel %vm2067, %v2068, %v2066
    %v2070 = vclz %v2069
    %v2071 = vsub.s32 %v2070, 2
    %vm2072 = vcmp.gt.s32.totalorder 0, %v2071
    %v2073 = vsel %vm2072, 0, %v2071
    %v2074 = vsub.s32 32, %v2073
    %v2075 = vshll.u32 %v2066, %v2073
    %v2076 = vshrl.u32 %v2058, %v2074
    %v2077 = vor.u32 %v2075, %v2076
    %v2078 = vsub.s32 4294967266, %v2073
    %v2079 = vadd.s32 %v2078, 127
    %v2080 = vshll.u32 %v2079, 23
    %v2081 = vor.u32 4788187, %v2080
    %v2082 = vand.u32 2147483647, %v2081
    %v2084 = vcvt.s32.f32 %v2077
    %v2085 = vmul.f32 %v2084, %v2082
    %v2086 = vxor.u32 %v2085, 2147483648
    %v2087 = vsel %vm2004, %v2086, %v2085
    %v2088 = vsub.s32 4, %v2064
    %v2089 = vsel %vm2004, %v2088, %v2064
    %v2090 = vsel %vm2003, %v239, %v2087
    %v2091 = vsel %vm2003, 0, %v2089
    %v2092 = vcosq.f32.pop %v2090
    %v2093 = vsinq.f32.pop %v2090
    %vm2094 = vweird.f32 %v239
    %v2095 = vand.u32 %v2091, 3
    %vm2096 = vcmp.lt.s32.totalorder %v2095, 2
    %vm2097 = vcmp.eq.s32.totalorder %v2095, 0
    %v2098 = vxor.u32 %v2093, 2147483648
    %v2099 = vsel %vm2097, %v2092, %v2098
    %vm2100 = vcmp.eq.s32.totalorder %v2095, 2
    %v2101 = vxor.u32 %v2092, 2147483648
    %v2102 = vsel %vm2100, %v2101, %v2093
    %v2103 = vsel %vm2096, %v2099, %v2102
    %v2104 = vsel %vm2094, nan, %v2103
    %v2105 = vld [vmem:[%s2] sm:$0xff]
    %v2106 = vld [vmem:[%s2 + $0x8] sm:$0xff]
    %v2107 = vld [vmem:[%s2 + $0x10] sm:$0xff]
    %v2108 = vld [vmem:[%s2 + $0x18] sm:$0xff]
    %v2109 = vld [vmem:[%s2 + $0x20] sm:$0xff]
    %v2110 = vld [vmem:[%s2 + $0x28] sm:$0xff]
    %v2111 = vld [vmem:[%s2 + $0x30] sm:$0xff]
    %v2112 = vld [vmem:[%s2 + $0x38] sm:$0xff]
    %v2113 = vld [vmem:[%s3] sm:$0xff]
    %v2114 = vld [vmem:[%s3 + $0x8] sm:$0xff]
    %v2115 = vld [vmem:[%s3 + $0x10] sm:$0xff]
    %v2116 = vld [vmem:[%s3 + $0x18] sm:$0xff]
    %v2117 = vld [vmem:[%s3 + $0x20] sm:$0xff]
    %v2118 = vld [vmem:[%s3 + $0x28] sm:$0xff]
    %v2119 = vld [vmem:[%s3 + $0x30] sm:$0xff]
    %v2120 = vld [vmem:[%s3 + $0x38] sm:$0xff]
    %vm2121 = vcmask 146432
    %v2123 = vsel %vm2121, %v2113, 0
    %v2126 = vsel %vm2121, %v2114, 0
    %v2129 = vsel %vm2121, %v2115, 0
    %v2132 = vsel %vm2121, %v2116, 0
    %v2135 = vsel %vm2121, %v2117, 0
    %v2138 = vsel %vm2121, %v2118, 0
    %v2141 = vsel %vm2121, %v2119, 0
    %v2144 = vsel %vm2121, %v2120, 0
    %vm2146 = vcmask 1041408
    %v2148 = vsel %vm2146, %v969, 0
    %v2151 = vsel %vm2146, %v1073, 0
    %v2154 = vsel %vm2146, %v1177, 0
    %2156 = vmatprep.subr.mxu0 %v449
    %2157 = vmatpush1.msra.mxu0 %v345
    %2158 = vmatprep.subr.mxu0 %v761
    %2159 = vmatpush1.msra.mxu0 %v657
    %2160 = vmatprep.subr.mxu0 %v2151
    %2161 = vmatpush1.msra.mxu0 %v2148
    %2162 = vmatprep.subr.mxu0 0.0
    %2163 = vmatpush1.msra.mxu0 0.0
    %2164 = vmatprep.subr.mxu0 0.0
    %2165 = vmatpush1.msra.mxu0 0.0
    %2166 = vmatprep.subr.mxu0 0.0
    %2167 = vmatpush1.msra.mxu0 0.0
    %2168 = vmatprep.subr.mxu0 0.0
    %2169 = vmatpush1.msra.mxu0 0.0
    %2170 = vmatprep.subr.mxu0 0.0
    %2171 = vmatpush1.msra.mxu0 0.0
    %2172 = vmatprep.subr.mxu0 0.0
    %2173 = vmatpush1.msra.mxu0 0.0
    %2174 = vmatprep.subr.mxu0 0.0
    %2175 = vmatpush1.msra.mxu0 0.0
    %2176 = vmatprep.subr.mxu0 0.0
    %2177 = vmatpush1.msra.mxu0 0.0
    %2178 = vmatprep.subr.mxu0 0.0
    %2179 = vmatpush1.msra.mxu0 0.0
    %2180 = vmatprep.subr.mxu0 0.0
    %2181 = vmatpush1.msra.mxu0 0.0
    %2182 = vmatprep.subr.mxu0 0.0
    %2183 = vmatpush1.msra.mxu0 0.0
    %2184 = vmatprep.subr.mxu0 0.0
    %2185 = vmatpush1.msra.mxu0 0.0
    %2186 = vmatprep.subr.mxu0 0.0
    %2187 = vmatpush1.msra.mxu0 0.0
    %2188 = vmatprep.subr.mxu0 0.0
    %2189 = vmatpush1.msra.mxu0 0.0
    %2190 = vmatprep.subr.mxu0 0.0
    %2191 = vmatpush1.msra.mxu0 0.0
    %2192 = vmatprep.subr.mxu0 0.0
    %2193 = vmatpush1.msra.mxu0 0.0
    %2194 = vmatprep.subr.mxu0 0.0
    %2195 = vmatpush1.msra.mxu0 0.0
    %2196 = vmatprep.subr.mxu0 0.0
    %2197 = vmatpush1.msra.mxu0 0.0
    %2198 = vmatprep.subr.mxu0 0.0
    %2199 = vmatpush1.msra.mxu0 0.0
    %2200 = vmatprep.subr.mxu0 0.0
    %2201 = vmatpush1.msra.mxu0 0.0
    %2202 = vmatprep.subr.mxu0 0.0
    %2203 = vmatpush1.msra.mxu0 0.0
    %2204 = vmatprep.subr.mxu0 0.0
    %2205 = vmatpush1.msra.mxu0 0.0
    %2206 = vmatprep.subr.mxu0 0.0
    %2207 = vmatpush1.msra.mxu0 0.0
    %2208 = vmatprep.subr.mxu0 0.0
    %2209 = vmatpush1.msra.mxu0 0.0
    %2210 = vmatprep.subr.mxu0 0.0
    %2211 = vmatpush1.msra.mxu0 0.0
    %2212 = vmatprep.subr.mxu0 0.0
    %2213 = vmatpush1.msra.mxu0 0.0
    %2214 = vmatprep.subr.mxu0 0.0
    %2215 = vmatpush1.msra.mxu0 0.0
    %2216 = vmatprep.subr.mxu0 0.0
    %2217 = vmatpush1.msra.mxu0 0.0
    %2218 = vmatprep.subr.mxu0 0.0
    %2219 = vmatpush1.msra.mxu0 0.0
    %2220 = vmatprep.mubr.f32.mxu0 0.0
    %2221 = vmatmul.mubr.f32.gmra.mrb[0].mxu0 %v2123
    %v2222 = vpop.f32.mrb[0].mxu0
    %v2223 = vadd.f32 0.0, %v2222
    %v2224 = vpop.f32.mrb[0].mxu0
    %v2225 = vadd.f32 0.0, %v2224
    %2226 = vmatprep.mubr.f32.mxu0 0.0
    %2227 = vmatmul.mubr.f32.gmra.mrb[0].mxu0 %v2126
    %v2228 = vpop.f32.mrb[0].mxu0
    %v2229 = vadd.f32 0.0, %v2228
    %v2230 = vpop.f32.mrb[0].mxu0
    %v2231 = vadd.f32 0.0, %v2230
    %2232 = vmatprep.mubr.f32.mxu0 0.0
    %2233 = vmatmul.mubr.f32.gmra.mrb[0].mxu0 %v2129
    %v2234 = vpop.f32.mrb[0].mxu0
    %v2235 = vadd.f32 0.0, %v2234
    %v2236 = vpop.f32.mrb[0].mxu0
    %v2237 = vadd.f32 0.0, %v2236
    %2238 = vmatprep.mubr.f32.mxu0 0.0
    %2239 = vmatmul.mubr.f32.gmra.mrb[0].mxu0 %v2132
    %v2240 = vpop.f32.mrb[0].mxu0
    %v2241 = vadd.f32 0.0, %v2240
    %v2242 = vpop.f32.mrb[0].mxu0
    %v2243 = vadd.f32 0.0, %v2242
    %2244 = vmatprep.mubr.f32.mxu0 0.0
    %2245 = vmatmul.mubr.f32.gmra.mrb[0].mxu0 %v2135
    %v2246 = vpop.f32.mrb[0].mxu0
    %v2247 = vadd.f32 0.0, %v2246
    %v2248 = vpop.f32.mrb[0].mxu0
    %v2249 = vadd.f32 0.0, %v2248
    %2250 = vmatprep.mubr.f32.mxu0 0.0
    %2251 = vmatmul.mubr.f32.gmra.mrb[0].mxu0 %v2138
    %v2252 = vpop.f32.mrb[0].mxu0
    %v2253 = vadd.f32 0.0, %v2252
    %v2254 = vpop.f32.mrb[0].mxu0
    %v2255 = vadd.f32 0.0, %v2254
    %2256 = vmatprep.mubr.f32.mxu0 0.0
    %2257 = vmatmul.mubr.f32.gmra.mrb[0].mxu0 %v2141
    %v2258 = vpop.f32.mrb[0].mxu0
    %v2259 = vadd.f32 0.0, %v2258
    %v2260 = vpop.f32.mrb[0].mxu0
    %v2261 = vadd.f32 0.0, %v2260
    %2262 = vmatprep.mubr.f32.mxu0 0.0
    %2263 = vmatmul.mubr.f32.gmra.mrb[0].mxu0 %v2144
    %v2264 = vpop.f32.mrb[0].mxu0
    %v2265 = vadd.f32 0.0, %v2264
    %v2266 = vpop.f32.mrb[0].mxu0
    %v2267 = vadd.f32 0.0, %v2266
    %2268 = vdwg.mxu0
    %2269 = vmatprep.subr.mxu0 0.0
    %2270 = vmatpush1.msra.mxu0 %v553
    %2271 = vmatprep.subr.mxu0 0.0
    %2272 = vmatpush1.msra.mxu0 %v865
    %2273 = vmatprep.subr.mxu0 0.0
    %2274 = vmatpush1.msra.mxu0 %v2154
    %2275 = vmatprep.subr.mxu0 0.0
    %2276 = vmatpush1.msra.mxu0 0.0
    %2277 = vmatprep.subr.mxu0 0.0
    %2278 = vmatpush1.msra.mxu0 0.0
    %2279 = vmatprep.subr.mxu0 0.0
    %2280 = vmatpush1.msra.mxu0 0.0
    %2281 = vmatprep.subr.mxu0 0.0
    %2282 = vmatpush1.msra.mxu0 0.0
    %2283 = vmatprep.subr.mxu0 0.0
    %2284 = vmatpush1.msra.mxu0 0.0
    %2285 = vmatprep.subr.mxu0 0.0
    %2286 = vmatpush1.msra.mxu0 0.0
    %2287 = vmatprep.subr.mxu0 0.0
    %2288 = vmatpush1.msra.mxu0 0.0
    %2289 = vmatprep.subr.mxu0 0.0
    %2290 = vmatpush1.msra.mxu0 0.0
    %2291 = vmatprep.subr.mxu0 0.0
    %2292 = vmatpush1.msra.mxu0 0.0
    %2293 = vmatprep.subr.mxu0 0.0
    %2294 = vmatpush1.msra.mxu0 0.0
    %2295 = vmatprep.subr.mxu0 0.0
    %2296 = vmatpush1.msra.mxu0 0.0
    %2297 = vmatprep.subr.mxu0 0.0
    %2298 = vmatpush1.msra.mxu0 0.0
    %2299 = vmatprep.subr.mxu0 0.0
    %2300 = vmatpush1.msra.mxu0 0.0
    %2301 = vmatprep.subr.mxu0 0.0
    %2302 = vmatpush1.msra.mxu0 0.0
    %2303 = vmatprep.subr.mxu0 0.0
    %2304 = vmatpush1.msra.mxu0 0.0
    %2305 = vmatprep.subr.mxu0 0.0
    %2306 = vmatpush1.msra.mxu0 0.0
    %2307 = vmatprep.subr.mxu0 0.0
    %2308 = vmatpush1.msra.mxu0 0.0
    %2309 = vmatprep.subr.mxu0 0.0
    %2310 = vmatpush1.msra.mxu0 0.0
    %2311 = vmatprep.subr.mxu0 0.0
    %2312 = vmatpush1.msra.mxu0 0.0
    %2313 = vmatprep.subr.mxu0 0.0
    %2314 = vmatpush1.msra.mxu0 0.0
    %2315 = vmatprep.subr.mxu0 0.0
    %2316 = vmatpush1.msra.mxu0 0.0
    %2317 = vmatprep.subr.mxu0 0.0
    %2318 = vmatpush1.msra.mxu0 0.0
    %2319 = vmatprep.subr.mxu0 0.0
    %2320 = vmatpush1.msra.mxu0 0.0
    %2321 = vmatprep.subr.mxu0 0.0
    %2322 = vmatpush1.msra.mxu0 0.0
    %2323 = vmatprep.subr.mxu0 0.0
    %2324 = vmatpush1.msra.mxu0 0.0
    %2325 = vmatprep.subr.mxu0 0.0
    %2326 = vmatpush1.msra.mxu0 0.0
    %2327 = vmatprep.subr.mxu0 0.0
    %2328 = vmatpush1.msra.mxu0 0.0
    %2329 = vmatprep.subr.mxu0 0.0
    %2330 = vmatpush1.msra.mxu0 0.0
    %2331 = vmatprep.subr.mxu0 0.0
    %2332 = vmatpush1.msra.mxu0 0.0
    %2333 = vmatprep.mubr.f32.mxu0 0.0
    %2334 = vmatmul.mubr.f32.gmra.mrb[0].mxu0 %v2123
    %v2335 = vpop.f32.mrb[0].mxu0
    %v2336 = vadd.f32 0.0, %v2335
    %v2337 = vpop.f32.mrb[0].mxu0
    %2338 = vmatprep.mubr.f32.mxu0 0.0
    %2339 = vmatmul.mubr.f32.gmra.mrb[0].mxu0 %v2126
    %v2340 = vpop.f32.mrb[0].mxu0
    %v2341 = vadd.f32 0.0, %v2340
    %v2342 = vpop.f32.mrb[0].mxu0
    %2343 = vmatprep.mubr.f32.mxu0 0.0
    %2344 = vmatmul.mubr.f32.gmra.mrb[0].mxu0 %v2129
    %v2345 = vpop.f32.mrb[0].mxu0
    %v2346 = vadd.f32 0.0, %v2345
    %v2347 = vpop.f32.mrb[0].mxu0
    %2348 = vmatprep.mubr.f32.mxu0 0.0
    %2349 = vmatmul.mubr.f32.gmra.mrb[0].mxu0 %v2132
    %v2350 = vpop.f32.mrb[0].mxu0
    %v2351 = vadd.f32 0.0, %v2350
    %v2352 = vpop.f32.mrb[0].mxu0
    %2353 = vmatprep.mubr.f32.mxu0 0.0
    %2354 = vmatmul.mubr.f32.gmra.mrb[0].mxu0 %v2135
    %v2355 = vpop.f32.mrb[0].mxu0
    %v2356 = vadd.f32 0.0, %v2355
    %v2357 = vpop.f32.mrb[0].mxu0
    %2358 = vmatprep.mubr.f32.mxu0 0.0
    %2359 = vmatmul.mubr.f32.gmra.mrb[0].mxu0 %v2138
    %v2360 = vpop.f32.mrb[0].mxu0
    %v2361 = vadd.f32 0.0, %v2360
    %v2362 = vpop.f32.mrb[0].mxu0
    %2363 = vmatprep.mubr.f32.mxu0 0.0
    %2364 = vmatmul.mubr.f32.gmra.mrb[0].mxu0 %v2141
    %v2365 = vpop.f32.mrb[0].mxu0
    %v2366 = vadd.f32 0.0, %v2365
    %v2367 = vpop.f32.mrb[0].mxu0
    %2368 = vmatprep.mubr.f32.mxu0 0.0
    %2369 = vmatmul.mubr.f32.gmra.mrb[0].mxu0 %v2144
    %v2370 = vpop.f32.mrb[0].mxu0
    %v2371 = vadd.f32 0.0, %v2370
    %v2372 = vpop.f32.mrb[0].mxu0
    %2373 = vdwg.mxu0
    %v2375 = vsel %vm62, %v2105, 0
    %v2378 = vsel %vm62, %v2106, 0
    %v2381 = vsel %vm62, %v2107, 0
    %v2384 = vsel %vm62, %v2108, 0
    %v2387 = vsel %vm62, %v2109, 0
    %v2390 = vsel %vm62, %v2110, 0
    %v2393 = vsel %vm62, %v2111, 0
    %v2396 = vsel %vm62, %v2112, 0
    %2398 = vmatprep.subr.mxu0 %v75
    %2399 = vmatpush1.msra.mxu0 %v73
    %2400 = vmatprep.subr.mxu0 0.0
    %2401 = vmatpush1.msra.mxu0 0.0
    %2402 = vmatprep.subr.mxu0 0.0
    %2403 = vmatpush1.msra.mxu0 0.0
    %2404 = vmatprep.subr.mxu0 0.0
    %2405 = vmatpush1.msra.mxu0 0.0
    %2406 = vmatprep.subr.mxu0 0.0
    %2407 = vmatpush1.msra.mxu0 0.0
    %2408 = vmatprep.subr.mxu0 0.0
    %2409 = vmatpush1.msra.mxu0 0.0
    %2410 = vmatprep.subr.mxu0 0.0
    %2411 = vmatpush1.msra.mxu0 0.0
    %2412 = vmatprep.subr.mxu0 0.0
    %2413 = vmatpush1.msra.mxu0 0.0
    %2414 = vmatprep.subr.mxu0 0.0
    %2415 = vmatpush1.msra.mxu0 0.0
    %2416 = vmatprep.subr.mxu0 0.0
    %2417 = vmatpush1.msra.mxu0 0.0
    %2418 = vmatprep.subr.mxu0 0.0
    %2419 = vmatpush1.msra.mxu0 0.0
    %2420 = vmatprep.subr.mxu0 0.0
    %2421 = vmatpush1.msra.mxu0 0.0
    %2422 = vmatprep.subr.mxu0 0.0
    %2423 = vmatpush1.msra.mxu0 0.0
    %2424 = vmatprep.subr.mxu0 0.0
    %2425 = vmatpush1.msra.mxu0 0.0
    %2426 = vmatprep.subr.mxu0 0.0
    %2427 = vmatpush1.msra.mxu0 0.0
    %2428 = vmatprep.subr.mxu0 0.0
    %2429 = vmatpush1.msra.mxu0 0.0
    %2430 = vmatprep.subr.mxu0 0.0
    %2431 = vmatpush1.msra.mxu0 0.0
    %2432 = vmatprep.subr.mxu0 0.0
    %2433 = vmatpush1.msra.mxu0 0.0
    %2434 = vmatprep.subr.mxu0 0.0
    %2435 = vmatpush1.msra.mxu0 0.0
    %2436 = vmatprep.subr.mxu0 0.0
    %2437 = vmatpush1.msra.mxu0 0.0
    %2438 = vmatprep.subr.mxu0 0.0
    %2439 = vmatpush1.msra.mxu0 0.0
    %2440 = vmatprep.subr.mxu0 0.0
    %2441 = vmatpush1.msra.mxu0 0.0
    %2442 = vmatprep.subr.mxu0 0.0
    %2443 = vmatpush1.msra.mxu0 0.0
    %2444 = vmatprep.subr.mxu0 0.0
    %2445 = vmatpush1.msra.mxu0 0.0
    %2446 = vmatprep.subr.mxu0 0.0
    %2447 = vmatpush1.msra.mxu0 0.0
    %2448 = vmatprep.subr.mxu0 0.0
    %2449 = vmatpush1.msra.mxu0 0.0
    %2450 = vmatprep.subr.mxu0 0.0
    %2451 = vmatpush1.msra.mxu0 0.0
    %2452 = vmatprep.subr.mxu0 0.0
    %2453 = vmatpush1.msra.mxu0 0.0
    %2454 = vmatprep.subr.mxu0 0.0
    %2455 = vmatpush1.msra.mxu0 0.0
    %2456 = vmatprep.subr.mxu0 0.0
    %2457 = vmatpush1.msra.mxu0 0.0
    %2458 = vmatprep.subr.mxu0 0.0
    %2459 = vmatpush1.msra.mxu0 0.0
    %2460 = vmatprep.subr.mxu0 0.0
    %2461 = vmatpush1.msra.mxu0 0.0
    %2462 = vmatprep.mubr.f32.mxu0 0.0
    %2463 = vmatmul.mubr.f32.gmra.mrb[0].mxu0 %v2375
    %v2464 = vpop.f32.mrb[0].mxu0
    %v2465 = vadd.f32 %v2223, %v2464
    %v2466 = vpop.f32.mrb[0].mxu0
    %v2467 = vadd.f32 %v2225, %v2466
    %2468 = vmatprep.mubr.f32.mxu0 0.0
    %2469 = vmatmul.mubr.f32.gmra.mrb[0].mxu0 %v2378
    %v2470 = vpop.f32.mrb[0].mxu0
    %v2471 = vadd.f32 %v2229, %v2470
    %v2472 = vpop.f32.mrb[0].mxu0
    %v2473 = vadd.f32 %v2231, %v2472
    %2474 = vmatprep.mubr.f32.mxu0 0.0
    %2475 = vmatmul.mubr.f32.gmra.mrb[0].mxu0 %v2381
    %v2476 = vpop.f32.mrb[0].mxu0
    %v2477 = vadd.f32 %v2235, %v2476
    %v2478 = vpop.f32.mrb[0].mxu0
    %v2479 = vadd.f32 %v2237, %v2478
    %2480 = vmatprep.mubr.f32.mxu0 0.0
    %2481 = vmatmul.mubr.f32.gmra.mrb[0].mxu0 %v2384
    %v2482 = vpop.f32.mrb[0].mxu0
    %v2483 = vadd.f32 %v2241, %v2482
    %v2484 = vpop.f32.mrb[0].mxu0
    %v2485 = vadd.f32 %v2243, %v2484
    %2486 = vmatprep.mubr.f32.mxu0 0.0
    %2487 = vmatmul.mubr.f32.gmra.mrb[0].mxu0 %v2387
    %v2488 = vpop.f32.mrb[0].mxu0
    %v2489 = vadd.f32 %v2247, %v2488
    %v2490 = vpop.f32.mrb[0].mxu0
    %v2491 = vadd.f32 %v2249, %v2490
    %2492 = vmatprep.mubr.f32.mxu0 0.0
    %2493 = vmatmul.mubr.f32.gmra.mrb[0].mxu0 %v2390
    %v2494 = vpop.f32.mrb[0].mxu0
    %v2495 = vadd.f32 %v2253, %v2494
    %v2496 = vpop.f32.mrb[0].mxu0
    %v2497 = vadd.f32 %v2255, %v2496
    %2498 = vmatprep.mubr.f32.mxu0 0.0
    %2499 = vmatmul.mubr.f32.gmra.mrb[0].mxu0 %v2393
    %v2500 = vpop.f32.mrb[0].mxu0
    %v2501 = vadd.f32 %v2259, %v2500
    %v2502 = vpop.f32.mrb[0].mxu0
    %v2503 = vadd.f32 %v2261, %v2502
    %2504 = vmatprep.mubr.f32.mxu0 0.0
    %2505 = vmatmul.mubr.f32.gmra.mrb[0].mxu0 %v2396
    %v2506 = vpop.f32.mrb[0].mxu0
    %v2507 = vadd.f32 %v2265, %v2506
    %v2508 = vpop.f32.mrb[0].mxu0
    %v2509 = vadd.f32 %v2267, %v2508
    %2510 = vdwg.mxu0
    %2511 = vmatprep.subr.mxu0 0.0
    %2512 = vmatpush1.msra.mxu0 %v77
    %2513 = vmatprep.subr.mxu0 0.0
    %2514 = vmatpush1.msra.mxu0 0.0
    %2515 = vmatprep.subr.mxu0 0.0
    %2516 = vmatpush1.msra.mxu0 0.0
    %2517 = vmatprep.subr.mxu0 0.0
    %2518 = vmatpush1.msra.mxu0 0.0
    %2519 = vmatprep.subr.mxu0 0.0
    %2520 = vmatpush1.msra.mxu0 0.0
    %2521 = vmatprep.subr.mxu0 0.0
    %2522 = vmatpush1.msra.mxu0 0.0
    %2523 = vmatprep.subr.mxu0 0.0
    %2524 = vmatpush1.msra.mxu0 0.0
    %2525 = vmatprep.subr.mxu0 0.0
    %2526 = vmatpush1.msra.mxu0 0.0
    %2527 = vmatprep.subr.mxu0 0.0
    %2528 = vmatpush1.msra.mxu0 0.0
    %2529 = vmatprep.subr.mxu0 0.0
    %2530 = vmatpush1.msra.mxu0 0.0
    %2531 = vmatprep.subr.mxu0 0.0
    %2532 = vmatpush1.msra.mxu0 0.0
    %2533 = vmatprep.subr.mxu0 0.0
    %2534 = vmatpush1.msra.mxu0 0.0
    %2535 = vmatprep.subr.mxu0 0.0
    %2536 = vmatpush1.msra.mxu0 0.0
    %2537 = vmatprep.subr.mxu0 0.0
    %2538 = vmatpush1.msra.mxu0 0.0
    %2539 = vmatprep.subr.mxu0 0.0
    %2540 = vmatpush1.msra.mxu0 0.0
    %2541 = vmatprep.subr.mxu0 0.0
    %2542 = vmatpush1.msra.mxu0 0.0
    %2543 = vmatprep.subr.mxu0 0.0
    %2544 = vmatpush1.msra.mxu0 0.0
    %2545 = vmatprep.subr.mxu0 0.0
    %2546 = vmatpush1.msra.mxu0 0.0
    %2547 = vmatprep.subr.mxu0 0.0
    %2548 = vmatpush1.msra.mxu0 0.0
    %2549 = vmatprep.subr.mxu0 0.0
    %2550 = vmatpush1.msra.mxu0 0.0
    %2551 = vmatprep.subr.mxu0 0.0
    %2552 = vmatpush1.msra.mxu0 0.0
    %2553 = vmatprep.subr.mxu0 0.0
    %2554 = vmatpush1.msra.mxu0 0.0
    %2555 = vmatprep.subr.mxu0 0.0
    %2556 = vmatpush1.msra.mxu0 0.0
    %2557 = vmatprep.subr.mxu0 0.0
    %2558 = vmatpush1.msra.mxu0 0.0
    %2559 = vmatprep.subr.mxu0 0.0
    %2560 = vmatpush1.msra.mxu0 0.0
    %2561 = vmatprep.subr.mxu0 0.0
    %2562 = vmatpush1.msra.mxu0 0.0
    %2563 = vmatprep.subr.mxu0 0.0
    %2564 = vmatpush1.msra.mxu0 0.0
    %2565 = vmatprep.subr.mxu0 0.0
    %2566 = vmatpush1.msra.mxu0 0.0
    %2567 = vmatprep.subr.mxu0 0.0
    %2568 = vmatpush1.msra.mxu0 0.0
    %2569 = vmatprep.subr.mxu0 0.0
    %2570 = vmatpush1.msra.mxu0 0.0
    %2571 = vmatprep.subr.mxu0 0.0
    %2572 = vmatpush1.msra.mxu0 0.0
    %2573 = vmatprep.subr.mxu0 0.0
    %2574 = vmatpush1.msra.mxu0 0.0
    %2575 = vmatprep.mubr.f32.mxu0 0.0
    %2576 = vmatmul.mubr.f32.gmra.mrb[0].mxu0 %v2375
    %v2577 = vpop.f32.mrb[0].mxu0
    %v2578 = vadd.f32 %v2336, %v2577
    %v2579 = vpop.f32.mrb[0].mxu0
    %2580 = vmatprep.mubr.f32.mxu0 0.0
    %2581 = vmatmul.mubr.f32.gmra.mrb[0].mxu0 %v2378
    %v2582 = vpop.f32.mrb[0].mxu0
    %v2583 = vadd.f32 %v2341, %v2582
    %v2584 = vpop.f32.mrb[0].mxu0
    %2585 = vmatprep.mubr.f32.mxu0 0.0
    %2586 = vmatmul.mubr.f32.gmra.mrb[0].mxu0 %v2381
    %v2587 = vpop.f32.mrb[0].mxu0
    %v2588 = vadd.f32 %v2346, %v2587
    %v2589 = vpop.f32.mrb[0].mxu0
    %2590 = vmatprep.mubr.f32.mxu0 0.0
    %2591 = vmatmul.mubr.f32.gmra.mrb[0].mxu0 %v2384
    %v2592 = vpop.f32.mrb[0].mxu0
    %v2593 = vadd.f32 %v2351, %v2592
    %v2594 = vpop.f32.mrb[0].mxu0
    %2595 = vmatprep.mubr.f32.mxu0 0.0
    %2596 = vmatmul.mubr.f32.gmra.mrb[0].mxu0 %v2387
    %v2597 = vpop.f32.mrb[0].mxu0
    %v2598 = vadd.f32 %v2356, %v2597
    %v2599 = vpop.f32.mrb[0].mxu0
    %2600 = vmatprep.mubr.f32.mxu0 0.0
    %2601 = vmatmul.mubr.f32.gmra.mrb[0].mxu0 %v2390
    %v2602 = vpop.f32.mrb[0].mxu0
    %v2603 = vadd.f32 %v2361, %v2602
    %v2604 = vpop.f32.mrb[0].mxu0
    %2605 = vmatprep.mubr.f32.mxu0 0.0
    %2606 = vmatmul.mubr.f32.gmra.mrb[0].mxu0 %v2393
    %v2607 = vpop.f32.mrb[0].mxu0
    %v2608 = vadd.f32 %v2366, %v2607
    %v2609 = vpop.f32.mrb[0].mxu0
    %2610 = vmatprep.mubr.f32.mxu0 0.0
    %2611 = vmatmul.mubr.f32.gmra.mrb[0].mxu0 %v2396
    %v2612 = vpop.f32.mrb[0].mxu0
    %v2613 = vadd.f32 %v2371, %v2612
    %v2614 = vpop.f32.mrb[0].mxu0
    %2615 = vdwg.mxu0
    %v2616 = vld [vmem:[%s4] sm:$0xff]
    %v2617 = vld [vmem:[%s4 + $0x8] sm:$0xff]
    %v2618 = vld [vmem:[%s4 + $0x10] sm:$0xff]
    %v2619 = vld [vmem:[%s4 + $0x18] sm:$0xff]
    %v2620 = vld [vmem:[%s4 + $0x20] sm:$0xff]
    %v2621 = vld [vmem:[%s4 + $0x28] sm:$0xff]
    %v2622 = vld [vmem:[%s4 + $0x30] sm:$0xff]
    %v2623 = vld [vmem:[%s4 + $0x38] sm:$0xff]
    %v2625 = vsel %vm2121, %v2616, 0
    %v2628 = vsel %vm2121, %v2617, 0
    %v2631 = vsel %vm2121, %v2618, 0
    %v2634 = vsel %vm2121, %v2619, 0
    %v2637 = vsel %vm2121, %v2620, 0
    %v2640 = vsel %vm2121, %v2621, 0
    %v2643 = vsel %vm2121, %v2622, 0
    %v2646 = vsel %vm2121, %v2623, 0
    %v2649 = vsel %vm2146, %v1898, 0
    %v2652 = vsel %vm2146, %v2001, 0
    %v2655 = vsel %vm2146, %v2104, 0
    %2657 = vmatprep.subr.mxu0 %v1383
    %2658 = vmatpush1.msra.mxu0 %v1280
    %2659 = vmatprep.subr.mxu0 %v1692
    %2660 = vmatpush1.msra.mxu0 %v1589
    %2661 = vmatprep.subr.mxu0 %v2652
    %2662 = vmatpush1.msra.mxu0 %v2649
    %2663 = vmatprep.subr.mxu0 0.0
    %2664 = vmatpush1.msra.mxu0 0.0
    %2665 = vmatprep.subr.mxu0 0.0
    %2666 = vmatpush1.msra.mxu0 0.0
    %2667 = vmatprep.subr.mxu0 0.0
    %2668 = vmatpush1.msra.mxu0 0.0
    %2669 = vmatprep.subr.mxu0 0.0
    %2670 = vmatpush1.msra.mxu0 0.0
    %2671 = vmatprep.subr.mxu0 0.0
    %2672 = vmatpush1.msra.mxu0 0.0
    %2673 = vmatprep.subr.mxu0 0.0
    %2674 = vmatpush1.msra.mxu0 0.0
    %2675 = vmatprep.subr.mxu0 0.0
    %2676 = vmatpush1.msra.mxu0 0.0
    %2677 = vmatprep.subr.mxu0 0.0
    %2678 = vmatpush1.msra.mxu0 0.0
    %2679 = vmatprep.subr.mxu0 0.0
    %2680 = vmatpush1.msra.mxu0 0.0
    %2681 = vmatprep.subr.mxu0 0.0
    %2682 = vmatpush1.msra.mxu0 0.0
    %2683 = vmatprep.subr.mxu0 0.0
    %2684 = vmatpush1.msra.mxu0 0.0
    %2685 = vmatprep.subr.mxu0 0.0
    %2686 = vmatpush1.msra.mxu0 0.0
    %2687 = vmatprep.subr.mxu0 0.0
    %2688 = vmatpush1.msra.mxu0 0.0
    %2689 = vmatprep.subr.mxu0 0.0
    %2690 = vmatpush1.msra.mxu0 0.0
    %2691 = vmatprep.subr.mxu0 0.0
    %2692 = vmatpush1.msra.mxu0 0.0
    %2693 = vmatprep.subr.mxu0 0.0
    %2694 = vmatpush1.msra.mxu0 0.0
    %2695 = vmatprep.subr.mxu0 0.0
    %2696 = vmatpush1.msra.mxu0 0.0
    %2697 = vmatprep.subr.mxu0 0.0
    %2698 = vmatpush1.msra.mxu0 0.0
    %2699 = vmatprep.subr.mxu0 0.0
    %2700 = vmatpush1.msra.mxu0 0.0
    %2701 = vmatprep.subr.mxu0 0.0
    %2702 = vmatpush1.msra.mxu0 0.0
    %2703 = vmatprep.subr.mxu0 0.0
    %2704 = vmatpush1.msra.mxu0 0.0
    %2705 = vmatprep.subr.mxu0 0.0
    %2706 = vmatpush1.msra.mxu0 0.0
    %2707 = vmatprep.subr.mxu0 0.0
    %2708 = vmatpush1.msra.mxu0 0.0
    %2709 = vmatprep.subr.mxu0 0.0
    %2710 = vmatpush1.msra.mxu0 0.0
    %2711 = vmatprep.subr.mxu0 0.0
    %2712 = vmatpush1.msra.mxu0 0.0
    %2713 = vmatprep.subr.mxu0 0.0
    %2714 = vmatpush1.msra.mxu0 0.0
    %2715 = vmatprep.subr.mxu0 0.0
    %2716 = vmatpush1.msra.mxu0 0.0
    %2717 = vmatprep.subr.mxu0 0.0
    %2718 = vmatpush1.msra.mxu0 0.0
    %2719 = vmatprep.subr.mxu0 0.0
    %2720 = vmatpush1.msra.mxu0 0.0
    %2721 = vmatprep.mubr.f32.mxu0 0.0
    %2722 = vmatmul.mubr.f32.gmra.mrb[0].mxu0 %v2625
    %v2723 = vpop.f32.mrb[0].mxu0
    %v2724 = vadd.f32 0.0, %v2723
    %v2725 = vpop.f32.mrb[0].mxu0
    %v2726 = vadd.f32 0.0, %v2725
    %2727 = vmatprep.mubr.f32.mxu0 0.0
    %2728 = vmatmul.mubr.f32.gmra.mrb[0].mxu0 %v2628
    %v2729 = vpop.f32.mrb[0].mxu0
    %v2730 = vadd.f32 0.0, %v2729
    %v2731 = vpop.f32.mrb[0].mxu0
    %v2732 = vadd.f32 0.0, %v2731
    %2733 = vmatprep.mubr.f32.mxu0 0.0
    %2734 = vmatmul.mubr.f32.gmra.mrb[0].mxu0 %v2631
    %v2735 = vpop.f32.mrb[0].mxu0
    %v2736 = vadd.f32 0.0, %v2735
    %v2737 = vpop.f32.mrb[0].mxu0
    %v2738 = vadd.f32 0.0, %v2737
    %2739 = vmatprep.mubr.f32.mxu0 0.0
    %2740 = vmatmul.mubr.f32.gmra.mrb[0].mxu0 %v2634
    %v2741 = vpop.f32.mrb[0].mxu0
    %v2742 = vadd.f32 0.0, %v2741
    %v2743 = vpop.f32.mrb[0].mxu0
    %v2744 = vadd.f32 0.0, %v2743
    %2745 = vmatprep.mubr.f32.mxu0 0.0
    %2746 = vmatmul.mubr.f32.gmra.mrb[0].mxu0 %v2637
    %v2747 = vpop.f32.mrb[0].mxu0
    %v2748 = vadd.f32 0.0, %v2747
    %v2749 = vpop.f32.mrb[0].mxu0
    %v2750 = vadd.f32 0.0, %v2749
    %2751 = vmatprep.mubr.f32.mxu0 0.0
    %2752 = vmatmul.mubr.f32.gmra.mrb[0].mxu0 %v2640
    %v2753 = vpop.f32.mrb[0].mxu0
    %v2754 = vadd.f32 0.0, %v2753
    %v2755 = vpop.f32.mrb[0].mxu0
    %v2756 = vadd.f32 0.0, %v2755
    %2757 = vmatprep.mubr.f32.mxu0 0.0
    %2758 = vmatmul.mubr.f32.gmra.mrb[0].mxu0 %v2643
    %v2759 = vpop.f32.mrb[0].mxu0
    %v2760 = vadd.f32 0.0, %v2759
    %v2761 = vpop.f32.mrb[0].mxu0
    %v2762 = vadd.f32 0.0, %v2761
    %2763 = vmatprep.mubr.f32.mxu0 0.0
    %2764 = vmatmul.mubr.f32.gmra.mrb[0].mxu0 %v2646
    %v2765 = vpop.f32.mrb[0].mxu0
    %v2766 = vadd.f32 0.0, %v2765
    %v2767 = vpop.f32.mrb[0].mxu0
    %v2768 = vadd.f32 0.0, %v2767
    %2769 = vdwg.mxu0
    %2770 = vmatprep.subr.mxu0 0.0
    %2771 = vmatpush1.msra.mxu0 %v1486
    %2772 = vmatprep.subr.mxu0 0.0
    %2773 = vmatpush1.msra.mxu0 %v1795
    %2774 = vmatprep.subr.mxu0 0.0
    %2775 = vmatpush1.msra.mxu0 %v2655
    %2776 = vmatprep.subr.mxu0 0.0
    %2777 = vmatpush1.msra.mxu0 0.0
    %2778 = vmatprep.subr.mxu0 0.0
    %2779 = vmatpush1.msra.mxu0 0.0
    %2780 = vmatprep.subr.mxu0 0.0
    %2781 = vmatpush1.msra.mxu0 0.0
    %2782 = vmatprep.subr.mxu0 0.0
    %2783 = vmatpush1.msra.mxu0 0.0
    %2784 = vmatprep.subr.mxu0 0.0
    %2785 = vmatpush1.msra.mxu0 0.0
    %2786 = vmatprep.subr.mxu0 0.0
    %2787 = vmatpush1.msra.mxu0 0.0
    %2788 = vmatprep.subr.mxu0 0.0
    %2789 = vmatpush1.msra.mxu0 0.0
    %2790 = vmatprep.subr.mxu0 0.0
    %2791 = vmatpush1.msra.mxu0 0.0
    %2792 = vmatprep.subr.mxu0 0.0
    %2793 = vmatpush1.msra.mxu0 0.0
    %2794 = vmatprep.subr.mxu0 0.0
    %2795 = vmatpush1.msra.mxu0 0.0
    %2796 = vmatprep.subr.mxu0 0.0
    %2797 = vmatpush1.msra.mxu0 0.0
    %2798 = vmatprep.subr.mxu0 0.0
    %2799 = vmatpush1.msra.mxu0 0.0
    %2800 = vmatprep.subr.mxu0 0.0
    %2801 = vmatpush1.msra.mxu0 0.0
    %2802 = vmatprep.subr.mxu0 0.0
    %2803 = vmatpush1.msra.mxu0 0.0
    %2804 = vmatprep.subr.mxu0 0.0
    %2805 = vmatpush1.msra.mxu0 0.0
    %2806 = vmatprep.subr.mxu0 0.0
    %2807 = vmatpush1.msra.mxu0 0.0
    %2808 = vmatprep.subr.mxu0 0.0
    %2809 = vmatpush1.msra.mxu0 0.0
    %2810 = vmatprep.subr.mxu0 0.0
    %2811 = vmatpush1.msra.mxu0 0.0
    %2812 = vmatprep.subr.mxu0 0.0
    %2813 = vmatpush1.msra.mxu0 0.0
    %2814 = vmatprep.subr.mxu0 0.0
    %2815 = vmatpush1.msra.mxu0 0.0
    %2816 = vmatprep.subr.mxu0 0.0
    %2817 = vmatpush1.msra.mxu0 0.0
    %2818 = vmatprep.subr.mxu0 0.0
    %2819 = vmatpush1.msra.mxu0 0.0
    %2820 = vmatprep.subr.mxu0 0.0
    %2821 = vmatpush1.msra.mxu0 0.0
    %2822 = vmatprep.subr.mxu0 0.0
    %2823 = vmatpush1.msra.mxu0 0.0
    %2824 = vmatprep.subr.mxu0 0.0
    %2825 = vmatpush1.msra.mxu0 0.0
    %2826 = vmatprep.subr.mxu0 0.0
    %2827 = vmatpush1.msra.mxu0 0.0
    %2828 = vmatprep.subr.mxu0 0.0
    %2829 = vmatpush1.msra.mxu0 0.0
    %2830 = vmatprep.subr.mxu0 0.0
    %2831 = vmatpush1.msra.mxu0 0.0
    %2832 = vmatprep.subr.mxu0 0.0
    %2833 = vmatpush1.msra.mxu0 0.0
    %2834 = vmatprep.mubr.f32.mxu0 0.0
    %2835 = vmatmul.mubr.f32.gmra.mrb[0].mxu0 %v2625
    %v2836 = vpop.f32.mrb[0].mxu0
    %v2837 = vadd.f32 0.0, %v2836
    %v2838 = vpop.f32.mrb[0].mxu0
    %2839 = vmatprep.mubr.f32.mxu0 0.0
    %2840 = vmatmul.mubr.f32.gmra.mrb[0].mxu0 %v2628
    %v2841 = vpop.f32.mrb[0].mxu0
    %v2842 = vadd.f32 0.0, %v2841
    %v2843 = vpop.f32.mrb[0].mxu0
    %2844 = vmatprep.mubr.f32.mxu0 0.0
    %2845 = vmatmul.mubr.f32.gmra.mrb[0].mxu0 %v2631
    %v2846 = vpop.f32.mrb[0].mxu0
    %v2847 = vadd.f32 0.0, %v2846
    %v2848 = vpop.f32.mrb[0].mxu0
    %2849 = vmatprep.mubr.f32.mxu0 0.0
    %2850 = vmatmul.mubr.f32.gmra.mrb[0].mxu0 %v2634
    %v2851 = vpop.f32.mrb[0].mxu0
    %v2852 = vadd.f32 0.0, %v2851
    %v2853 = vpop.f32.mrb[0].mxu0
    %2854 = vmatprep.mubr.f32.mxu0 0.0
    %2855 = vmatmul.mubr.f32.gmra.mrb[0].mxu0 %v2637
    %v2856 = vpop.f32.mrb[0].mxu0
    %v2857 = vadd.f32 0.0, %v2856
    %v2858 = vpop.f32.mrb[0].mxu0
    %2859 = vmatprep.mubr.f32.mxu0 0.0
    %2860 = vmatmul.mubr.f32.gmra.mrb[0].mxu0 %v2640
    %v2861 = vpop.f32.mrb[0].mxu0
    %v2862 = vadd.f32 0.0, %v2861
    %v2863 = vpop.f32.mrb[0].mxu0
    %2864 = vmatprep.mubr.f32.mxu0 0.0
    %2865 = vmatmul.mubr.f32.gmra.mrb[0].mxu0 %v2643
    %v2866 = vpop.f32.mrb[0].mxu0
    %v2867 = vadd.f32 0.0, %v2866
    %v2868 = vpop.f32.mrb[0].mxu0
    %2869 = vmatprep.mubr.f32.mxu0 0.0
    %2870 = vmatmul.mubr.f32.gmra.mrb[0].mxu0 %v2646
    %v2871 = vpop.f32.mrb[0].mxu0
    %v2872 = vadd.f32 0.0, %v2871
    %v2873 = vpop.f32.mrb[0].mxu0
    %2874 = vdwg.mxu0
    %v2875 = vadd.f32 %v2465, %v2724
    %v2876 = vadd.f32 %v2467, %v2726
    %v2877 = vadd.f32 %v2578, %v2837
    %v2878 = vadd.f32 %v2471, %v2730
    %v2879 = vadd.f32 %v2473, %v2732
    %v2880 = vadd.f32 %v2583, %v2842
    %v2881 = vadd.f32 %v2477, %v2736
    %v2882 = vadd.f32 %v2479, %v2738
    %v2883 = vadd.f32 %v2588, %v2847
    %v2884 = vadd.f32 %v2483, %v2742
    %v2885 = vadd.f32 %v2485, %v2744
    %v2886 = vadd.f32 %v2593, %v2852
    %v2887 = vadd.f32 %v2489, %v2748
    %v2888 = vadd.f32 %v2491, %v2750
    %v2889 = vadd.f32 %v2598, %v2857
    %v2890 = vadd.f32 %v2495, %v2754
    %v2891 = vadd.f32 %v2497, %v2756
    %v2892 = vadd.f32 %v2603, %v2862
    %v2893 = vadd.f32 %v2501, %v2760
    %v2894 = vadd.f32 %v2503, %v2762
    %v2895 = vadd.f32 %v2608, %v2867
    %v2896 = vadd.f32 %v2507, %v2766
    %v2897 = vadd.f32 %v2509, %v2768
    %v2898 = vadd.f32 %v2613, %v2872
    %v2899 = vld [vmem:[%s5] sm:$0xff]
    %v2900 = vld [vmem:[%s5 + $0x8] sm:$0xff]
    %v2901 = vld [vmem:[%s5 + $0x10] sm:$0xff]
    %v2902 = vld [vmem:[%s5 + $0x18] sm:$0xff]
    %v2903 = vld [vmem:[%s5 + $0x20] sm:$0xff]
    %v2904 = vld [vmem:[%s5 + $0x28] sm:$0xff]
    %v2905 = vld [vmem:[%s5 + $0x30] sm:$0xff]
    %v2906 = vld [vmem:[%s5 + $0x38] sm:$0xff]
    %2908 = vset.pattern.permute.xlu0 0
    %2909 = vperm.xlu0 %2908, %v2899
    %v2910 = vpop.permute.xlu0 %2909
    %2913 = vset.pattern.permute.xlu0 0
    %2914 = vperm.xlu0 %2913, %v2900
    %v2915 = vpop.permute.xlu0 %2914
    %2918 = vset.pattern.permute.xlu0 0
    %2919 = vperm.xlu0 %2918, %v2901
    %v2920 = vpop.permute.xlu0 %2919
    %2923 = vset.pattern.permute.xlu0 0
    %2924 = vperm.xlu0 %2923, %v2902
    %v2925 = vpop.permute.xlu0 %2924
    %2928 = vset.pattern.permute.xlu0 0
    %2929 = vperm.xlu0 %2928, %v2903
    %v2930 = vpop.permute.xlu0 %2929
    %2933 = vset.pattern.permute.xlu0 0
    %2934 = vperm.xlu0 %2933, %v2904
    %v2935 = vpop.permute.xlu0 %2934
    %2938 = vset.pattern.permute.xlu0 0
    %2939 = vperm.xlu0 %2938, %v2905
    %v2940 = vpop.permute.xlu0 %2939
    %2943 = vset.pattern.permute.xlu0 0
    %2944 = vperm.xlu0 %2943, %v2906
    %v2945 = vpop.permute.xlu0 %2944
    %v2947 = vadd.f32 %v2875, %v2910
    %v2948 = vadd.f32 %v2876, %v2910
    %v2949 = vadd.f32 %v2877, %v2910
    %v2950 = vadd.f32 %v2878, %v2915
    %v2951 = vadd.f32 %v2879, %v2915
    %v2952 = vadd.f32 %v2880, %v2915
    %v2953 = vadd.f32 %v2881, %v2920
    %v2954 = vadd.f32 %v2882, %v2920
    %v2955 = vadd.f32 %v2883, %v2920
    %v2956 = vadd.f32 %v2884, %v2925
    %v2957 = vadd.f32 %v2885, %v2925
    %v2958 = vadd.f32 %v2886, %v2925
    %v2959 = vadd.f32 %v2887, %v2930
    %v2960 = vadd.f32 %v2888, %v2930
    %v2961 = vadd.f32 %v2889, %v2930
    %v2962 = vadd.f32 %v2890, %v2935
    %v2963 = vadd.f32 %v2891, %v2935
    %v2964 = vadd.f32 %v2892, %v2935
    %v2965 = vadd.f32 %v2893, %v2940
    %v2966 = vadd.f32 %v2894, %v2940
    %v2967 = vadd.f32 %v2895, %v2940
    %v2968 = vadd.f32 %v2896, %v2945
    %v2969 = vadd.f32 %v2897, %v2945
    %v2970 = vadd.f32 %v2898, %v2945
    %v2971 = vadd.f32 %v2947, %v2950
    %v2972 = vadd.f32 %v2971, %v2953
    %v2973 = vadd.f32 %v2972, %v2956
    %v2974 = vadd.f32 %v2973, %v2959
    %v2975 = vadd.f32 %v2974, %v2962
    %v2976 = vadd.f32 %v2975, %v2965
    %v2977 = vadd.f32 %v2976, %v2968
    %v2978 = vrot.slane %v2977, 4
    %v2979 = vadd.f32 %v2977, %v2978
    %v2980 = vrot.slane %v2979, 2
    %v2981 = vadd.f32 %v2979, %v2980
    %v2982 = vrot.slane %v2981, 1
    %v2983 = vadd.f32 %v2981, %v2982
    %v2984 = vadd.f32 %v2948, %v2951
    %v2985 = vadd.f32 %v2984, %v2954
    %v2986 = vadd.f32 %v2985, %v2957
    %v2987 = vadd.f32 %v2986, %v2960
    %v2988 = vadd.f32 %v2987, %v2963
    %v2989 = vadd.f32 %v2988, %v2966
    %v2990 = vadd.f32 %v2989, %v2969
    %v2991 = vrot.slane %v2990, 4
    %v2992 = vadd.f32 %v2990, %v2991
    %v2993 = vrot.slane %v2992, 2
    %v2994 = vadd.f32 %v2992, %v2993
    %v2995 = vrot.slane %v2994, 1
    %v2996 = vadd.f32 %v2994, %v2995
    %v2997 = vadd.f32 %v2949, %v2952
    %v2998 = vadd.f32 %v2997, %v2955
    %v2999 = vadd.f32 %v2998, %v2958
    %v3000 = vadd.f32 %v2999, %v2961
    %v3001 = vadd.f32 %v3000, %v2964
    %v3002 = vadd.f32 %v3001, %v2967
    %v3003 = vadd.f32 %v3002, %v2970
    %v3004 = vrot.slane %v3003, 4
    %v3005 = vadd.f32 %v3003, %v3004
    %v3006 = vrot.slane %v3005, 2
    %v3007 = vadd.f32 %v3005, %v3006
    %v3008 = vrot.slane %v3007, 1
    %v3009 = vadd.f32 %v3007, %v3008
    %v3010 = vrcp.pop 64.0
    %v3011 = vmul.f32 %v2983, %v3010
    %v3012 = vmul.f32 %v2996, %v3010
    %v3013 = vmul.f32 %v3009, %v3010
    %v3014 = vsub.f32 %v2947, %v3011
    %v3015 = vsub.f32 %v2948, %v3012
    %v3016 = vsub.f32 %v2949, %v3013
    %v3017 = vsub.f32 %v2950, %v3011
    %v3018 = vsub.f32 %v2951, %v3012
    %v3019 = vsub.f32 %v2952, %v3013
    %v3020 = vsub.f32 %v2953, %v3011
    %v3021 = vsub.f32 %v2954, %v3012
    %v3022 = vsub.f32 %v2955, %v3013
    %v3023 = vsub.f32 %v2956, %v3011
    %v3024 = vsub.f32 %v2957, %v3012
    %v3025 = vsub.f32 %v2958, %v3013
    %v3026 = vsub.f32 %v2959, %v3011
    %v3027 = vsub.f32 %v2960, %v3012
    %v3028 = vsub.f32 %v2961, %v3013
    %v3029 = vsub.f32 %v2962, %v3011
    %v3030 = vsub.f32 %v2963, %v3012
    %v3031 = vsub.f32 %v2964, %v3013
    %v3032 = vsub.f32 %v2965, %v3011
    %v3033 = vsub.f32 %v2966, %v3012
    %v3034 = vsub.f32 %v2967, %v3013
    %v3035 = vsub.f32 %v2968, %v3011
    %v3036 = vsub.f32 %v2969, %v3012
    %v3037 = vsub.f32 %v2970, %v3013
    %v3038 = vmul.f32 %v3014, %v3014
    %v3039 = vmul.f32 %v3015, %v3015
    %v3040 = vmul.f32 %v3016, %v3016
    %v3041 = vmul.f32 %v3017, %v3017
    %v3042 = vmul.f32 %v3018, %v3018
    %v3043 = vmul.f32 %v3019, %v3019
    %v3044 = vmul.f32 %v3020, %v3020
    %v3045 = vmul.f32 %v3021, %v3021
    %v3046 = vmul.f32 %v3022, %v3022
    %v3047 = vmul.f32 %v3023, %v3023
    %v3048 = vmul.f32 %v3024, %v3024
    %v3049 = vmul.f32 %v3025, %v3025
    %v3050 = vmul.f32 %v3026, %v3026
    %v3051 = vmul.f32 %v3027, %v3027
    %v3052 = vmul.f32 %v3028, %v3028
    %v3053 = vmul.f32 %v3029, %v3029
    %v3054 = vmul.f32 %v3030, %v3030
    %v3055 = vmul.f32 %v3031, %v3031
    %v3056 = vmul.f32 %v3032, %v3032
    %v3057 = vmul.f32 %v3033, %v3033
    %v3058 = vmul.f32 %v3034, %v3034
    %v3059 = vmul.f32 %v3035, %v3035
    %v3060 = vmul.f32 %v3036, %v3036
    %v3061 = vmul.f32 %v3037, %v3037
    %v3062 = vadd.f32 %v3038, %v3041
    %v3063 = vadd.f32 %v3062, %v3044
    %v3064 = vadd.f32 %v3063, %v3047
    %v3065 = vadd.f32 %v3064, %v3050
    %v3066 = vadd.f32 %v3065, %v3053
    %v3067 = vadd.f32 %v3066, %v3056
    %v3068 = vadd.f32 %v3067, %v3059
    %v3069 = vrot.slane %v3068, 4
    %v3070 = vadd.f32 %v3068, %v3069
    %v3071 = vrot.slane %v3070, 2
    %v3072 = vadd.f32 %v3070, %v3071
    %v3073 = vrot.slane %v3072, 1
    %v3074 = vadd.f32 %v3072, %v3073
    %v3075 = vadd.f32 %v3039, %v3042
    %v3076 = vadd.f32 %v3075, %v3045
    %v3077 = vadd.f32 %v3076, %v3048
    %v3078 = vadd.f32 %v3077, %v3051
    %v3079 = vadd.f32 %v3078, %v3054
    %v3080 = vadd.f32 %v3079, %v3057
    %v3081 = vadd.f32 %v3080, %v3060
    %v3082 = vrot.slane %v3081, 4
    %v3083 = vadd.f32 %v3081, %v3082
    %v3084 = vrot.slane %v3083, 2
    %v3085 = vadd.f32 %v3083, %v3084
    %v3086 = vrot.slane %v3085, 1
    %v3087 = vadd.f32 %v3085, %v3086
    %v3088 = vadd.f32 %v3040, %v3043
    %v3089 = vadd.f32 %v3088, %v3046
    %v3090 = vadd.f32 %v3089, %v3049
    %v3091 = vadd.f32 %v3090, %v3052
    %v3092 = vadd.f32 %v3091, %v3055
    %v3093 = vadd.f32 %v3092, %v3058
    %v3094 = vadd.f32 %v3093, %v3061
    %v3095 = vrot.slane %v3094, 4
    %v3096 = vadd.f32 %v3094, %v3095
    %v3097 = vrot.slane %v3096, 2
    %v3098 = vadd.f32 %v3096, %v3097
    %v3099 = vrot.slane %v3098, 1
    %v3100 = vadd.f32 %v3098, %v3099
    %v3101 = vmul.f32 %v3074, %v3010
    %v3102 = vmul.f32 %v3087, %v3010
    %v3103 = vmul.f32 %v3100, %v3010
    %v3104 = vadd.f32 %v3101, 1e-05
    %v3105 = vadd.f32 %v3102, 1e-05
    %v3106 = vadd.f32 %v3103, 1e-05
    %v3107 = vrsqrt.pop %v3104
    %v3108 = vrsqrt.pop %v3105
    %v3109 = vrsqrt.pop %v3106
    %v3110 = vmul.f32 %v3014, %v3107
    %v3111 = vmul.f32 %v3015, %v3108
    %v3112 = vmul.f32 %v3016, %v3109
    %v3113 = vmul.f32 %v3017, %v3107
    %v3114 = vmul.f32 %v3018, %v3108
    %v3115 = vmul.f32 %v3019, %v3109
    %v3116 = vmul.f32 %v3020, %v3107
    %v3117 = vmul.f32 %v3021, %v3108
    %v3118 = vmul.f32 %v3022, %v3109
    %v3119 = vmul.f32 %v3023, %v3107
    %v3120 = vmul.f32 %v3024, %v3108
    %v3121 = vmul.f32 %v3025, %v3109
    %v3122 = vmul.f32 %v3026, %v3107
    %v3123 = vmul.f32 %v3027, %v3108
    %v3124 = vmul.f32 %v3028, %v3109
    %v3125 = vmul.f32 %v3029, %v3107
    %v3126 = vmul.f32 %v3030, %v3108
    %v3127 = vmul.f32 %v3031, %v3109
    %v3128 = vmul.f32 %v3032, %v3107
    %v3129 = vmul.f32 %v3033, %v3108
    %v3130 = vmul.f32 %v3034, %v3109
    %v3131 = vmul.f32 %v3035, %v3107
    %v3132 = vmul.f32 %v3036, %v3108
    %v3133 = vmul.f32 %v3037, %v3109
    %v3134 = vmul.f32 %v3110, 100.0
    %v3135 = vmul.f32 %v3111, 100.0
    %v3136 = vmul.f32 %v3112, 100.0
    %v3137 = vmul.f32 %v3113, 100.0
    %v3138 = vmul.f32 %v3114, 100.0
    %v3139 = vmul.f32 %v3115, 100.0
    %v3140 = vmul.f32 %v3116, 100.0
    %v3141 = vmul.f32 %v3117, 100.0
    %v3142 = vmul.f32 %v3118, 100.0
    %v3143 = vmul.f32 %v3119, 100.0
    %v3144 = vmul.f32 %v3120, 100.0
    %v3145 = vmul.f32 %v3121, 100.0
    %v3146 = vmul.f32 %v3122, 100.0
    %v3147 = vmul.f32 %v3123, 100.0
    %v3148 = vmul.f32 %v3124, 100.0
    %v3149 = vmul.f32 %v3125, 100.0
    %v3150 = vmul.f32 %v3126, 100.0
    %v3151 = vmul.f32 %v3127, 100.0
    %v3152 = vmul.f32 %v3128, 100.0
    %v3153 = vmul.f32 %v3129, 100.0
    %v3154 = vmul.f32 %v3130, 100.0
    %v3155 = vmul.f32 %v3131, 100.0
    %v3156 = vmul.f32 %v3132, 100.0
    %v3157 = vmul.f32 %v3133, 100.0
    %v3158 = vmin.f32 %v3134, 20.0
    %v3159 = vmin.f32 %v3135, 20.0
    %v3160 = vmin.f32 %v3136, 20.0
    %v3161 = vmin.f32 %v3137, 20.0
    %v3162 = vmin.f32 %v3138, 20.0
    %v3163 = vmin.f32 %v3139, 20.0
    %v3164 = vmin.f32 %v3140, 20.0
    %v3165 = vmin.f32 %v3141, 20.0
    %v3166 = vmin.f32 %v3142, 20.0
    %v3167 = vmin.f32 %v3143, 20.0
    %v3168 = vmin.f32 %v3144, 20.0
    %v3169 = vmin.f32 %v3145, 20.0
    %v3170 = vmin.f32 %v3146, 20.0
    %v3171 = vmin.f32 %v3147, 20.0
    %v3172 = vmin.f32 %v3148, 20.0
    %v3173 = vmin.f32 %v3149, 20.0
    %v3174 = vmin.f32 %v3150, 20.0
    %v3175 = vmin.f32 %v3151, 20.0
    %v3176 = vmin.f32 %v3152, 20.0
    %v3177 = vmin.f32 %v3153, 20.0
    %v3178 = vmin.f32 %v3154, 20.0
    %v3179 = vmin.f32 %v3155, 20.0
    %v3180 = vmin.f32 %v3156, 20.0
    %v3181 = vmin.f32 %v3157, 20.0
    %v3182 = vmul.f32 %v3158, 1.442695
    %v3183 = vpow.pop %v3182
    %v3184 = vmul.f32 %v3159, 1.442695
    %v3185 = vpow.pop %v3184
    %v3186 = vmul.f32 %v3160, 1.442695
    %v3187 = vpow.pop %v3186
    %v3188 = vmul.f32 %v3161, 1.442695
    %v3189 = vpow.pop %v3188
    %v3190 = vmul.f32 %v3162, 1.442695
    %v3191 = vpow.pop %v3190
    %v3192 = vmul.f32 %v3163, 1.442695
    %v3193 = vpow.pop %v3192
    %v3194 = vmul.f32 %v3164, 1.442695
    %v3195 = vpow.pop %v3194
    %v3196 = vmul.f32 %v3165, 1.442695
    %v3197 = vpow.pop %v3196
    %v3198 = vmul.f32 %v3166, 1.442695
    %v3199 = vpow.pop %v3198
    %v3200 = vmul.f32 %v3167, 1.442695
    %v3201 = vpow.pop %v3200
    %v3202 = vmul.f32 %v3168, 1.442695
    %v3203 = vpow.pop %v3202
    %v3204 = vmul.f32 %v3169, 1.442695
    %v3205 = vpow.pop %v3204
    %v3206 = vmul.f32 %v3170, 1.442695
    %v3207 = vpow.pop %v3206
    %v3208 = vmul.f32 %v3171, 1.442695
    %v3209 = vpow.pop %v3208
    %v3210 = vmul.f32 %v3172, 1.442695
    %v3211 = vpow.pop %v3210
    %v3212 = vmul.f32 %v3173, 1.442695
    %v3213 = vpow.pop %v3212
    %v3214 = vmul.f32 %v3174, 1.442695
    %v3215 = vpow.pop %v3214
    %v3216 = vmul.f32 %v3175, 1.442695
    %v3217 = vpow.pop %v3216
    %v3218 = vmul.f32 %v3176, 1.442695
    %v3219 = vpow.pop %v3218
    %v3220 = vmul.f32 %v3177, 1.442695
    %v3221 = vpow.pop %v3220
    %v3222 = vmul.f32 %v3178, 1.442695
    %v3223 = vpow.pop %v3222
    %v3224 = vmul.f32 %v3179, 1.442695
    %v3225 = vpow.pop %v3224
    %v3226 = vmul.f32 %v3180, 1.442695
    %v3227 = vpow.pop %v3226
    %v3228 = vmul.f32 %v3181, 1.442695
    %v3229 = vpow.pop %v3228
    %v3230 = vadd.f32 %v3183, 1.0
    %v3231 = vlog2.pop %v3230
    %v3232 = vmul.f32 %v3231, 0.6931472
    %v3233 = vmul.f32 -0.5, %v3183
    %v3234 = vadd.f32 %v3233, 1.0
    %v3235 = vmul.f32 %v3234, %v3183
    %v3236 = vand.u32 2147483647, %v3183
    %vm3237 = vcmp.lt.f32.partialorder %v3236, 0.0004427343
    %v3238 = vsel %vm3237, %v3235, %v3232
    %v3239 = vadd.f32 %v3185, 1.0
    %v3240 = vlog2.pop %v3239
    %v3241 = vmul.f32 %v3240, 0.6931472
    %v3242 = vmul.f32 -0.5, %v3185
    %v3243 = vadd.f32 %v3242, 1.0
    %v3244 = vmul.f32 %v3243, %v3185
    %v3245 = vand.u32 2147483647, %v3185
    %vm3246 = vcmp.lt.f32.partialorder %v3245, 0.0004427343
    %v3247 = vsel %vm3246, %v3244, %v3241
    %v3248 = vadd.f32 %v3187, 1.0
    %v3249 = vlog2.pop %v3248
    %v3250 = vmul.f32 %v3249, 0.6931472
    %v3251 = vmul.f32 -0.5, %v3187
    %v3252 = vadd.f32 %v3251, 1.0
    %v3253 = vmul.f32 %v3252, %v3187
    %v3254 = vand.u32 2147483647, %v3187
    %vm3255 = vcmp.lt.f32.partialorder %v3254, 0.0004427343
    %v3256 = vsel %vm3255, %v3253, %v3250
    %v3257 = vadd.f32 %v3189, 1.0
    %v3258 = vlog2.pop %v3257
    %v3259 = vmul.f32 %v3258, 0.6931472
    %v3260 = vmul.f32 -0.5, %v3189
    %v3261 = vadd.f32 %v3260, 1.0
    %v3262 = vmul.f32 %v3261, %v3189
    %v3263 = vand.u32 2147483647, %v3189
    %vm3264 = vcmp.lt.f32.partialorder %v3263, 0.0004427343
    %v3265 = vsel %vm3264, %v3262, %v3259
    %v3266 = vadd.f32 %v3191, 1.0
    %v3267 = vlog2.pop %v3266
    %v3268 = vmul.f32 %v3267, 0.6931472
    %v3269 = vmul.f32 -0.5, %v3191
    %v3270 = vadd.f32 %v3269, 1.0
    %v3271 = vmul.f32 %v3270, %v3191
    %v3272 = vand.u32 2147483647, %v3191
    %vm3273 = vcmp.lt.f32.partialorder %v3272, 0.0004427343
    %v3274 = vsel %vm3273, %v3271, %v3268
    %v3275 = vadd.f32 %v3193, 1.0
    %v3276 = vlog2.pop %v3275
    %v3277 = vmul.f32 %v3276, 0.6931472
    %v3278 = vmul.f32 -0.5, %v3193
    %v3279 = vadd.f32 %v3278, 1.0
    %v3280 = vmul.f32 %v3279, %v3193
    %v3281 = vand.u32 2147483647, %v3193
    %vm3282 = vcmp.lt.f32.partialorder %v3281, 0.0004427343
    %v3283 = vsel %vm3282, %v3280, %v3277
    %v3284 = vadd.f32 %v3195, 1.0
    %v3285 = vlog2.pop %v3284
    %v3286 = vmul.f32 %v3285, 0.6931472
    %v3287 = vmul.f32 -0.5, %v3195
    %v3288 = vadd.f32 %v3287, 1.0
    %v3289 = vmul.f32 %v3288, %v3195
    %v3290 = vand.u32 2147483647, %v3195
    %vm3291 = vcmp.lt.f32.partialorder %v3290, 0.0004427343
    %v3292 = vsel %vm3291, %v3289, %v3286
    %v3293 = vadd.f32 %v3197, 1.0
    %v3294 = vlog2.pop %v3293
    %v3295 = vmul.f32 %v3294, 0.6931472
    %v3296 = vmul.f32 -0.5, %v3197
    %v3297 = vadd.f32 %v3296, 1.0
    %v3298 = vmul.f32 %v3297, %v3197
    %v3299 = vand.u32 2147483647, %v3197
    %vm3300 = vcmp.lt.f32.partialorder %v3299, 0.0004427343
    %v3301 = vsel %vm3300, %v3298, %v3295
    %v3302 = vadd.f32 %v3199, 1.0
    %v3303 = vlog2.pop %v3302
    %v3304 = vmul.f32 %v3303, 0.6931472
    %v3305 = vmul.f32 -0.5, %v3199
    %v3306 = vadd.f32 %v3305, 1.0
    %v3307 = vmul.f32 %v3306, %v3199
    %v3308 = vand.u32 2147483647, %v3199
    %vm3309 = vcmp.lt.f32.partialorder %v3308, 0.0004427343
    %v3310 = vsel %vm3309, %v3307, %v3304
    %v3311 = vadd.f32 %v3201, 1.0
    %v3312 = vlog2.pop %v3311
    %v3313 = vmul.f32 %v3312, 0.6931472
    %v3314 = vmul.f32 -0.5, %v3201
    %v3315 = vadd.f32 %v3314, 1.0
    %v3316 = vmul.f32 %v3315, %v3201
    %v3317 = vand.u32 2147483647, %v3201
    %vm3318 = vcmp.lt.f32.partialorder %v3317, 0.0004427343
    %v3319 = vsel %vm3318, %v3316, %v3313
    %v3320 = vadd.f32 %v3203, 1.0
    %v3321 = vlog2.pop %v3320
    %v3322 = vmul.f32 %v3321, 0.6931472
    %v3323 = vmul.f32 -0.5, %v3203
    %v3324 = vadd.f32 %v3323, 1.0
    %v3325 = vmul.f32 %v3324, %v3203
    %v3326 = vand.u32 2147483647, %v3203
    %vm3327 = vcmp.lt.f32.partialorder %v3326, 0.0004427343
    %v3328 = vsel %vm3327, %v3325, %v3322
    %v3329 = vadd.f32 %v3205, 1.0
    %v3330 = vlog2.pop %v3329
    %v3331 = vmul.f32 %v3330, 0.6931472
    %v3332 = vmul.f32 -0.5, %v3205
    %v3333 = vadd.f32 %v3332, 1.0
    %v3334 = vmul.f32 %v3333, %v3205
    %v3335 = vand.u32 2147483647, %v3205
    %vm3336 = vcmp.lt.f32.partialorder %v3335, 0.0004427343
    %v3337 = vsel %vm3336, %v3334, %v3331
    %v3338 = vadd.f32 %v3207, 1.0
    %v3339 = vlog2.pop %v3338
    %v3340 = vmul.f32 %v3339, 0.6931472
    %v3341 = vmul.f32 -0.5, %v3207
    %v3342 = vadd.f32 %v3341, 1.0
    %v3343 = vmul.f32 %v3342, %v3207
    %v3344 = vand.u32 2147483647, %v3207
    %vm3345 = vcmp.lt.f32.partialorder %v3344, 0.0004427343
    %v3346 = vsel %vm3345, %v3343, %v3340
    %v3347 = vadd.f32 %v3209, 1.0
    %v3348 = vlog2.pop %v3347
    %v3349 = vmul.f32 %v3348, 0.6931472
    %v3350 = vmul.f32 -0.5, %v3209
    %v3351 = vadd.f32 %v3350, 1.0
    %v3352 = vmul.f32 %v3351, %v3209
    %v3353 = vand.u32 2147483647, %v3209
    %vm3354 = vcmp.lt.f32.partialorder %v3353, 0.0004427343
    %v3355 = vsel %vm3354, %v3352, %v3349
    %v3356 = vadd.f32 %v3211, 1.0
    %v3357 = vlog2.pop %v3356
    %v3358 = vmul.f32 %v3357, 0.6931472
    %v3359 = vmul.f32 -0.5, %v3211
    %v3360 = vadd.f32 %v3359, 1.0
    %v3361 = vmul.f32 %v3360, %v3211
    %v3362 = vand.u32 2147483647, %v3211
    %vm3363 = vcmp.lt.f32.partialorder %v3362, 0.0004427343
    %v3364 = vsel %vm3363, %v3361, %v3358
    %v3365 = vadd.f32 %v3213, 1.0
    %v3366 = vlog2.pop %v3365
    %v3367 = vmul.f32 %v3366, 0.6931472
    %v3368 = vmul.f32 -0.5, %v3213
    %v3369 = vadd.f32 %v3368, 1.0
    %v3370 = vmul.f32 %v3369, %v3213
    %v3371 = vand.u32 2147483647, %v3213
    %vm3372 = vcmp.lt.f32.partialorder %v3371, 0.0004427343
    %v3373 = vsel %vm3372, %v3370, %v3367
    %v3374 = vadd.f32 %v3215, 1.0
    %v3375 = vlog2.pop %v3374
    %v3376 = vmul.f32 %v3375, 0.6931472
    %v3377 = vmul.f32 -0.5, %v3215
    %v3378 = vadd.f32 %v3377, 1.0
    %v3379 = vmul.f32 %v3378, %v3215
    %v3380 = vand.u32 2147483647, %v3215
    %vm3381 = vcmp.lt.f32.partialorder %v3380, 0.0004427343
    %v3382 = vsel %vm3381, %v3379, %v3376
    %v3383 = vadd.f32 %v3217, 1.0
    %v3384 = vlog2.pop %v3383
    %v3385 = vmul.f32 %v3384, 0.6931472
    %v3386 = vmul.f32 -0.5, %v3217
    %v3387 = vadd.f32 %v3386, 1.0
    %v3388 = vmul.f32 %v3387, %v3217
    %v3389 = vand.u32 2147483647, %v3217
    %vm3390 = vcmp.lt.f32.partialorder %v3389, 0.0004427343
    %v3391 = vsel %vm3390, %v3388, %v3385
    %v3392 = vadd.f32 %v3219, 1.0
    %v3393 = vlog2.pop %v3392
    %v3394 = vmul.f32 %v3393, 0.6931472
    %v3395 = vmul.f32 -0.5, %v3219
    %v3396 = vadd.f32 %v3395, 1.0
    %v3397 = vmul.f32 %v3396, %v3219
    %v3398 = vand.u32 2147483647, %v3219
    %vm3399 = vcmp.lt.f32.partialorder %v3398, 0.0004427343
    %v3400 = vsel %vm3399, %v3397, %v3394
    %v3401 = vadd.f32 %v3221, 1.0
    %v3402 = vlog2.pop %v3401
    %v3403 = vmul.f32 %v3402, 0.6931472
    %v3404 = vmul.f32 -0.5, %v3221
    %v3405 = vadd.f32 %v3404, 1.0
    %v3406 = vmul.f32 %v3405, %v3221
    %v3407 = vand.u32 2147483647, %v3221
    %vm3408 = vcmp.lt.f32.partialorder %v3407, 0.0004427343
    %v3409 = vsel %vm3408, %v3406, %v3403
    %v3410 = vadd.f32 %v3223, 1.0
    %v3411 = vlog2.pop %v3410
    %v3412 = vmul.f32 %v3411, 0.6931472
    %v3413 = vmul.f32 -0.5, %v3223
    %v3414 = vadd.f32 %v3413, 1.0
    %v3415 = vmul.f32 %v3414, %v3223
    %v3416 = vand.u32 2147483647, %v3223
    %vm3417 = vcmp.lt.f32.partialorder %v3416, 0.0004427343
    %v3418 = vsel %vm3417, %v3415, %v3412
    %v3419 = vadd.f32 %v3225, 1.0
    %v3420 = vlog2.pop %v3419
    %v3421 = vmul.f32 %v3420, 0.6931472
    %v3422 = vmul.f32 -0.5, %v3225
    %v3423 = vadd.f32 %v3422, 1.0
    %v3424 = vmul.f32 %v3423, %v3225
    %v3425 = vand.u32 2147483647, %v3225
    %vm3426 = vcmp.lt.f32.partialorder %v3425, 0.0004427343
    %v3427 = vsel %vm3426, %v3424, %v3421
    %v3428 = vadd.f32 %v3227, 1.0
    %v3429 = vlog2.pop %v3428
    %v3430 = vmul.f32 %v3429, 0.6931472
    %v3431 = vmul.f32 -0.5, %v3227
    %v3432 = vadd.f32 %v3431, 1.0
    %v3433 = vmul.f32 %v3432, %v3227
    %v3434 = vand.u32 2147483647, %v3227
    %vm3435 = vcmp.lt.f32.partialorder %v3434, 0.0004427343
    %v3436 = vsel %vm3435, %v3433, %v3430
    %v3437 = vadd.f32 %v3229, 1.0
    %v3438 = vlog2.pop %v3437
    %v3439 = vmul.f32 %v3438, 0.6931472
    %v3440 = vmul.f32 -0.5, %v3229
    %v3441 = vadd.f32 %v3440, 1.0
    %v3442 = vmul.f32 %v3441, %v3229
    %v3443 = vand.u32 2147483647, %v3229
    %vm3444 = vcmp.lt.f32.partialorder %v3443, 0.0004427343
    %v3445 = vsel %vm3444, %v3442, %v3439
    %v3446 = vrcp.pop 100.0
    %v3447 = vmul.f32 %v3238, %v3446
    %v3448 = vmul.f32 %v3247, %v3446
    %v3449 = vmul.f32 %v3256, %v3446
    %v3450 = vmul.f32 %v3265, %v3446
    %v3451 = vmul.f32 %v3274, %v3446
    %v3452 = vmul.f32 %v3283, %v3446
    %v3453 = vmul.f32 %v3292, %v3446
    %v3454 = vmul.f32 %v3301, %v3446
    %v3455 = vmul.f32 %v3310, %v3446
    %v3456 = vmul.f32 %v3319, %v3446
    %v3457 = vmul.f32 %v3328, %v3446
    %v3458 = vmul.f32 %v3337, %v3446
    %v3459 = vmul.f32 %v3346, %v3446
    %v3460 = vmul.f32 %v3355, %v3446
    %v3461 = vmul.f32 %v3364, %v3446
    %v3462 = vmul.f32 %v3373, %v3446
    %v3463 = vmul.f32 %v3382, %v3446
    %v3464 = vmul.f32 %v3391, %v3446
    %v3465 = vmul.f32 %v3400, %v3446
    %v3466 = vmul.f32 %v3409, %v3446
    %v3467 = vmul.f32 %v3418, %v3446
    %v3468 = vmul.f32 %v3427, %v3446
    %v3469 = vmul.f32 %v3436, %v3446
    %v3470 = vmul.f32 %v3445, %v3446
    %vm3471 = vcmp.gt.f32.partialorder %v3134, 20.0
    %vm3472 = vcmp.gt.f32.partialorder %v3135, 20.0
    %vm3473 = vcmp.gt.f32.partialorder %v3136, 20.0
    %vm3474 = vcmp.gt.f32.partialorder %v3137, 20.0
    %vm3475 = vcmp.gt.f32.partialorder %v3138, 20.0
    %vm3476 = vcmp.gt.f32.partialorder %v3139, 20.0
    %vm3477 = vcmp.gt.f32.partialorder %v3140, 20.0
    %vm3478 = vcmp.gt.f32.partialorder %v3141, 20.0
    %vm3479 = vcmp.gt.f32.partialorder %v3142, 20.0
    %vm3480 = vcmp.gt.f32.partialorder %v3143, 20.0
    %vm3481 = vcmp.gt.f32.partialorder %v3144, 20.0
    %vm3482 = vcmp.gt.f32.partialorder %v3145, 20.0
    %vm3483 = vcmp.gt.f32.partialorder %v3146, 20.0
    %vm3484 = vcmp.gt.f32.partialorder %v3147, 20.0
    %vm3485 = vcmp.gt.f32.partialorder %v3148, 20.0
    %vm3486 = vcmp.gt.f32.partialorder %v3149, 20.0
    %vm3487 = vcmp.gt.f32.partialorder %v3150, 20.0
    %vm3488 = vcmp.gt.f32.partialorder %v3151, 20.0
    %vm3489 = vcmp.gt.f32.partialorder %v3152, 20.0
    %vm3490 = vcmp.gt.f32.partialorder %v3153, 20.0
    %vm3491 = vcmp.gt.f32.partialorder %v3154, 20.0
    %vm3492 = vcmp.gt.f32.partialorder %v3155, 20.0
    %vm3493 = vcmp.gt.f32.partialorder %v3156, 20.0
    %vm3494 = vcmp.gt.f32.partialorder %v3157, 20.0
    %v3495 = vsel %vm3471, %v3110, %v3447
    %v3496 = vsel %vm3472, %v3111, %v3448
    %v3497 = vsel %vm3473, %v3112, %v3449
    %v3498 = vsel %vm3474, %v3113, %v3450
    %v3499 = vsel %vm3475, %v3114, %v3451
    %v3500 = vsel %vm3476, %v3115, %v3452
    %v3501 = vsel %vm3477, %v3116, %v3453
    %v3502 = vsel %vm3478, %v3117, %v3454
    %v3503 = vsel %vm3479, %v3118, %v3455
    %v3504 = vsel %vm3480, %v3119, %v3456
    %v3505 = vsel %vm3481, %v3120, %v3457
    %v3506 = vsel %vm3482, %v3121, %v3458
    %v3507 = vsel %vm3483, %v3122, %v3459
    %v3508 = vsel %vm3484, %v3123, %v3460
    %v3509 = vsel %vm3485, %v3124, %v3461
    %v3510 = vsel %vm3486, %v3125, %v3462
    %v3511 = vsel %vm3487, %v3126, %v3463
    %v3512 = vsel %vm3488, %v3127, %v3464
    %v3513 = vsel %vm3489, %v3128, %v3465
    %v3514 = vsel %vm3490, %v3129, %v3466
    %v3515 = vsel %vm3491, %v3130, %v3467
    %v3516 = vsel %vm3492, %v3131, %v3468
    %v3517 = vsel %vm3493, %v3132, %v3469
    %v3518 = vsel %vm3494, %v3133, %v3470
    %v3519 = vld [vmem:[%s6] sm:$0xff]
    %v3520 = vld [vmem:[%s6 + $0x8] sm:$0xff]
    %v3521 = vld [vmem:[%s6 + $0x10] sm:$0xff]
    %v3522 = vld [vmem:[%s6 + $0x18] sm:$0xff]
    %v3523 = vld [vmem:[%s6 + $0x20] sm:$0xff]
    %v3524 = vld [vmem:[%s6 + $0x28] sm:$0xff]
    %v3525 = vld [vmem:[%s6 + $0x30] sm:$0xff]
    %v3526 = vld [vmem:[%s6 + $0x38] sm:$0xff]
    %v3527 = vld [vmem:[%s7] sm:$0xff]
    %v3528 = vld [vmem:[%s7 + $0x8] sm:$0xff]
    %v3529 = vld [vmem:[%s7 + $0x10] sm:$0xff]
    %v3530 = vld [vmem:[%s7 + $0x18] sm:$0xff]
    %v3531 = vld [vmem:[%s7 + $0x20] sm:$0xff]
    %v3532 = vld [vmem:[%s7 + $0x28] sm:$0xff]
    %v3533 = vld [vmem:[%s7 + $0x30] sm:$0xff]
    %v3534 = vld [vmem:[%s7 + $0x38] sm:$0xff]
    %v3535 = vld [vmem:[%s8] sm:$0xff]
    %v3536 = vld [vmem:[%s8 + $0x8] sm:$0xff]
    %v3537 = vld [vmem:[%s8 + $0x10] sm:$0xff]
    %v3538 = vld [vmem:[%s8 + $0x18] sm:$0xff]
    %v3539 = vld [vmem:[%s8 + $0x20] sm:$0xff]
    %v3540 = vld [vmem:[%s8 + $0x28] sm:$0xff]
    %v3541 = vld [vmem:[%s8 + $0x30] sm:$0xff]
    %v3542 = vld [vmem:[%s8 + $0x38] sm:$0xff]
    %v3544 = vsel %vm2121, %v3535, 0
    %v3547 = vsel %vm2121, %v3536, 0
    %v3550 = vsel %vm2121, %v3537, 0
    %v3553 = vsel %vm2121, %v3538, 0
    %v3556 = vsel %vm2121, %v3539, 0
    %v3559 = vsel %vm2121, %v3540, 0
    %v3562 = vsel %vm2121, %v3541, 0
    %v3565 = vsel %vm2121, %v3542, 0
    %3567 = vmatprep.subr.mxu0 %v449
    %3568 = vmatpush1.msra.mxu0 %v345
    %3569 = vmatprep.subr.mxu0 %v761
    %3570 = vmatpush1.msra.mxu0 %v657
    %3571 = vmatprep.subr.mxu0 %v2151
    %3572 = vmatpush1.msra.mxu0 %v2148
    %3573 = vmatprep.subr.mxu0 0.0
    %3574 = vmatpush1.msra.mxu0 0.0
    %3575 = vmatprep.subr.mxu0 0.0
    %3576 = vmatpush1.msra.mxu0 0.0
    %3577 = vmatprep.subr.mxu0 0.0
    %3578 = vmatpush1.msra.mxu0 0.0
    %3579 = vmatprep.subr.mxu0 0.0
    %3580 = vmatpush1.msra.mxu0 0.0
    %3581 = vmatprep.subr.mxu0 0.0
    %3582 = vmatpush1.msra.mxu0 0.0
    %3583 = vmatprep.subr.mxu0 0.0
    %3584 = vmatpush1.msra.mxu0 0.0
    %3585 = vmatprep.subr.mxu0 0.0
    %3586 = vmatpush1.msra.mxu0 0.0
    %3587 = vmatprep.subr.mxu0 0.0
    %3588 = vmatpush1.msra.mxu0 0.0
    %3589 = vmatprep.subr.mxu0 0.0
    %3590 = vmatpush1.msra.mxu0 0.0
    %3591 = vmatprep.subr.mxu0 0.0
    %3592 = vmatpush1.msra.mxu0 0.0
    %3593 = vmatprep.subr.mxu0 0.0
    %3594 = vmatpush1.msra.mxu0 0.0
    %3595 = vmatprep.subr.mxu0 0.0
    %3596 = vmatpush1.msra.mxu0 0.0
    %3597 = vmatprep.subr.mxu0 0.0
    %3598 = vmatpush1.msra.mxu0 0.0
    %3599 = vmatprep.subr.mxu0 0.0
    %3600 = vmatpush1.msra.mxu0 0.0
    %3601 = vmatprep.subr.mxu0 0.0
    %3602 = vmatpush1.msra.mxu0 0.0
    %3603 = vmatprep.subr.mxu0 0.0
    %3604 = vmatpush1.msra.mxu0 0.0
    %3605 = vmatprep.subr.mxu0 0.0
    %3606 = vmatpush1.msra.mxu0 0.0
    %3607 = vmatprep.subr.mxu0 0.0
    %3608 = vmatpush1.msra.mxu0 0.0
    %3609 = vmatprep.subr.mxu0 0.0
    %3610 = vmatpush1.msra.mxu0 0.0
    %3611 = vmatprep.subr.mxu0 0.0
    %3612 = vmatpush1.msra.mxu0 0.0
    %3613 = vmatprep.subr.mxu0 0.0
    %3614 = vmatpush1.msra.mxu0 0.0
    %3615 = vmatprep.subr.mxu0 0.0
    %3616 = vmatpush1.msra.mxu0 0.0
    %3617 = vmatprep.subr.mxu0 0.0
    %3618 = vmatpush1.msra.mxu0 0.0
    %3619 = vmatprep.subr.mxu0 0.0
    %3620 = vmatpush1.msra.mxu0 0.0
    %3621 = vmatprep.subr.mxu0 0.0
    %3622 = vmatpush1.msra.mxu0 0.0
    %3623 = vmatprep.subr.mxu0 0.0
    %3624 = vmatpush1.msra.mxu0 0.0
    %3625 = vmatprep.subr.mxu0 0.0
    %3626 = vmatpush1.msra.mxu0 0.0
    %3627 = vmatprep.subr.mxu0 0.0
    %3628 = vmatpush1.msra.mxu0 0.0
    %3629 = vmatprep.subr.mxu0 0.0
    %3630 = vmatpush1.msra.mxu0 0.0
    %3631 = vmatprep.mubr.f32.mxu0 0.0
    %3632 = vmatmul.mubr.f32.gmra.mrb[0].mxu0 %v3544
    %v3633 = vpop.f32.mrb[0].mxu0
    %v3634 = vadd.f32 0.0, %v3633
    %v3635 = vpop.f32.mrb[0].mxu0
    %v3636 = vadd.f32 0.0, %v3635
    %3637 = vmatprep.mubr.f32.mxu0 0.0
    %3638 = vmatmul.mubr.f32.gmra.mrb[0].mxu0 %v3547
    %v3639 = vpop.f32.mrb[0].mxu0
    %v3640 = vadd.f32 0.0, %v3639
    %v3641 = vpop.f32.mrb[0].mxu0
    %v3642 = vadd.f32 0.0, %v3641
    %3643 = vmatprep.mubr.f32.mxu0 0.0
    %3644 = vmatmul.mubr.f32.gmra.mrb[0].mxu0 %v3550
    %v3645 = vpop.f32.mrb[0].mxu0
    %v3646 = vadd.f32 0.0, %v3645
    %v3647 = vpop.f32.mrb[0].mxu0
    %v3648 = vadd.f32 0.0, %v3647
    %3649 = vmatprep.mubr.f32.mxu0 0.0
    %3650 = vmatmul.mubr.f32.gmra.mrb[0].mxu0 %v3553
    %v3651 = vpop.f32.mrb[0].mxu0
    %v3652 = vadd.f32 0.0, %v3651
    %v3653 = vpop.f32.mrb[0].mxu0
    %v3654 = vadd.f32 0.0, %v3653
    %3655 = vmatprep.mubr.f32.mxu0 0.0
    %3656 = vmatmul.mubr.f32.gmra.mrb[0].mxu0 %v3556
    %v3657 = vpop.f32.mrb[0].mxu0
    %v3658 = vadd.f32 0.0, %v3657
    %v3659 = vpop.f32.mrb[0].mxu0
    %v3660 = vadd.f32 0.0, %v3659
    %3661 = vmatprep.mubr.f32.mxu0 0.0
    %3662 = vmatmul.mubr.f32.gmra.mrb[0].mxu0 %v3559
    %v3663 = vpop.f32.mrb[0].mxu0
    %v3664 = vadd.f32 0.0, %v3663
    %v3665 = vpop.f32.mrb[0].mxu0
    %v3666 = vadd.f32 0.0, %v3665
    %3667 = vmatprep.mubr.f32.mxu0 0.0
    %3668 = vmatmul.mubr.f32.gmra.mrb[0].mxu0 %v3562
    %v3669 = vpop.f32.mrb[0].mxu0
    %v3670 = vadd.f32 0.0, %v3669
    %v3671 = vpop.f32.mrb[0].mxu0
    %v3672 = vadd.f32 0.0, %v3671
    %3673 = vmatprep.mubr.f32.mxu0 0.0
    %3674 = vmatmul.mubr.f32.gmra.mrb[0].mxu0 %v3565
    %v3675 = vpop.f32.mrb[0].mxu0
    %v3676 = vadd.f32 0.0, %v3675
    %v3677 = vpop.f32.mrb[0].mxu0
    %v3678 = vadd.f32 0.0, %v3677
    %3679 = vdwg.mxu0
    %3680 = vmatprep.subr.mxu0 0.0
    %3681 = vmatpush1.msra.mxu0 %v553
    %3682 = vmatprep.subr.mxu0 0.0
    %3683 = vmatpush1.msra.mxu0 %v865
    %3684 = vmatprep.subr.mxu0 0.0
    %3685 = vmatpush1.msra.mxu0 %v2154
    %3686 = vmatprep.subr.mxu0 0.0
    %3687 = vmatpush1.msra.mxu0 0.0
    %3688 = vmatprep.subr.mxu0 0.0
    %3689 = vmatpush1.msra.mxu0 0.0
    %3690 = vmatprep.subr.mxu0 0.0
    %3691 = vmatpush1.msra.mxu0 0.0
    %3692 = vmatprep.subr.mxu0 0.0
    %3693 = vmatpush1.msra.mxu0 0.0
    %3694 = vmatprep.subr.mxu0 0.0
    %3695 = vmatpush1.msra.mxu0 0.0
    %3696 = vmatprep.subr.mxu0 0.0
    %3697 = vmatpush1.msra.mxu0 0.0
    %3698 = vmatprep.subr.mxu0 0.0
    %3699 = vmatpush1.msra.mxu0 0.0
    %3700 = vmatprep.subr.mxu0 0.0
    %3701 = vmatpush1.msra.mxu0 0.0
    %3702 = vmatprep.subr.mxu0 0.0
    %3703 = vmatpush1.msra.mxu0 0.0
    %3704 = vmatprep.subr.mxu0 0.0
    %3705 = vmatpush1.msra.mxu0 0.0
    %3706 = vmatprep.subr.mxu0 0.0
    %3707 = vmatpush1.msra.mxu0 0.0
    %3708 = vmatprep.subr.mxu0 0.0
    %3709 = vmatpush1.msra.mxu0 0.0
    %3710 = vmatprep.subr.mxu0 0.0
    %3711 = vmatpush1.msra.mxu0 0.0
    %3712 = vmatprep.subr.mxu0 0.0
    %3713 = vmatpush1.msra.mxu0 0.0
    %3714 = vmatprep.subr.mxu0 0.0
    %3715 = vmatpush1.msra.mxu0 0.0
    %3716 = vmatprep.subr.mxu0 0.0
    %3717 = vmatpush1.msra.mxu0 0.0
    %3718 = vmatprep.subr.mxu0 0.0
    %3719 = vmatpush1.msra.mxu0 0.0
    %3720 = vmatprep.subr.mxu0 0.0
    %3721 = vmatpush1.msra.mxu0 0.0
    %3722 = vmatprep.subr.mxu0 0.0
    %3723 = vmatpush1.msra.mxu0 0.0
    %3724 = vmatprep.subr.mxu0 0.0
    %3725 = vmatpush1.msra.mxu0 0.0
    %3726 = vmatprep.subr.mxu0 0.0
    %3727 = vmatpush1.msra.mxu0 0.0
    %3728 = vmatprep.subr.mxu0 0.0
    %3729 = vmatpush1.msra.mxu0 0.0
    %3730 = vmatprep.subr.mxu0 0.0
    %3731 = vmatpush1.msra.mxu0 0.0
    %3732 = vmatprep.subr.mxu0 0.0
    %3733 = vmatpush1.msra.mxu0 0.0
    %3734 = vmatprep.subr.mxu0 0.0
    %3735 = vmatpush1.msra.mxu0 0.0
    %3736 = vmatprep.subr.mxu0 0.0
    %3737 = vmatpush1.msra.mxu0 0.0
    %3738 = vmatprep.subr.mxu0 0.0
    %3739 = vmatpush1.msra.mxu0 0.0
    %3740 = vmatprep.subr.mxu0 0.0
    %3741 = vmatpush1.msra.mxu0 0.0
    %3742 = vmatprep.subr.mxu0 0.0
    %3743 = vmatpush1.msra.mxu0 0.0
    %3744 = vmatprep.mubr.f32.mxu0 0.0
    %3745 = vmatmul.mubr.f32.gmra.mrb[0].mxu0 %v3544
    %v3746 = vpop.f32.mrb[0].mxu0
    %v3747 = vadd.f32 0.0, %v3746
    %v3748 = vpop.f32.mrb[0].mxu0
    %3749 = vmatprep.mubr.f32.mxu0 0.0
    %3750 = vmatmul.mubr.f32.gmra.mrb[0].mxu0 %v3547
    %v3751 = vpop.f32.mrb[0].mxu0
    %v3752 = vadd.f32 0.0, %v3751
    %v3753 = vpop.f32.mrb[0].mxu0
    %3754 = vmatprep.mubr.f32.mxu0 0.0
    %3755 = vmatmul.mubr.f32.gmra.mrb[0].mxu0 %v3550
    %v3756 = vpop.f32.mrb[0].mxu0
    %v3757 = vadd.f32 0.0, %v3756
    %v3758 = vpop.f32.mrb[0].mxu0
    %3759 = vmatprep.mubr.f32.mxu0 0.0
    %3760 = vmatmul.mubr.f32.gmra.mrb[0].mxu0 %v3553
    %v3761 = vpop.f32.mrb[0].mxu0
    %v3762 = vadd.f32 0.0, %v3761
    %v3763 = vpop.f32.mrb[0].mxu0
    %3764 = vmatprep.mubr.f32.mxu0 0.0
    %3765 = vmatmul.mubr.f32.gmra.mrb[0].mxu0 %v3556
    %v3766 = vpop.f32.mrb[0].mxu0
    %v3767 = vadd.f32 0.0, %v3766
    %v3768 = vpop.f32.mrb[0].mxu0
    %3769 = vmatprep.mubr.f32.mxu0 0.0
    %3770 = vmatmul.mubr.f32.gmra.mrb[0].mxu0 %v3559
    %v3771 = vpop.f32.mrb[0].mxu0
    %v3772 = vadd.f32 0.0, %v3771
    %v3773 = vpop.f32.mrb[0].mxu0
    %3774 = vmatprep.mubr.f32.mxu0 0.0
    %3775 = vmatmul.mubr.f32.gmra.mrb[0].mxu0 %v3562
    %v3776 = vpop.f32.mrb[0].mxu0
    %v3777 = vadd.f32 0.0, %v3776
    %v3778 = vpop.f32.mrb[0].mxu0
    %3779 = vmatprep.mubr.f32.mxu0 0.0
    %3780 = vmatmul.mubr.f32.gmra.mrb[0].mxu0 %v3565
    %v3781 = vpop.f32.mrb[0].mxu0
    %v3782 = vadd.f32 0.0, %v3781
    %v3783 = vpop.f32.mrb[0].mxu0
    %3784 = vdwg.mxu0
    %v3786 = vsel %vm62, %v3527, 0
    %v3789 = vsel %vm62, %v3528, 0
    %v3792 = vsel %vm62, %v3529, 0
    %v3795 = vsel %vm62, %v3530, 0
    %v3798 = vsel %vm62, %v3531, 0
    %v3801 = vsel %vm62, %v3532, 0
    %v3804 = vsel %vm62, %v3533, 0
    %v3807 = vsel %vm62, %v3534, 0
    %3809 = vmatprep.subr.mxu0 %v75
    %3810 = vmatpush1.msra.mxu0 %v73
    %3811 = vmatprep.subr.mxu0 0.0
    %3812 = vmatpush1.msra.mxu0 0.0
    %3813 = vmatprep.subr.mxu0 0.0
    %3814 = vmatpush1.msra.mxu0 0.0
    %3815 = vmatprep.subr.mxu0 0.0
    %3816 = vmatpush1.msra.mxu0 0.0
    %3817 = vmatprep.subr.mxu0 0.0
    %3818 = vmatpush1.msra.mxu0 0.0
    %3819 = vmatprep.subr.mxu0 0.0
    %3820 = vmatpush1.msra.mxu0 0.0
    %3821 = vmatprep.subr.mxu0 0.0
    %3822 = vmatpush1.msra.mxu0 0.0
    %3823 = vmatprep.subr.mxu0 0.0
    %3824 = vmatpush1.msra.mxu0 0.0
    %3825 = vmatprep.subr.mxu0 0.0
    %3826 = vmatpush1.msra.mxu0 0.0
    %3827 = vmatprep.subr.mxu0 0.0
    %3828 = vmatpush1.msra.mxu0 0.0
    %3829 = vmatprep.subr.mxu0 0.0
    %3830 = vmatpush1.msra.mxu0 0.0
    %3831 = vmatprep.subr.mxu0 0.0
    %3832 = vmatpush1.msra.mxu0 0.0
    %3833 = vmatprep.subr.mxu0 0.0
    %3834 = vmatpush1.msra.mxu0 0.0
    %3835 = vmatprep.subr.mxu0 0.0
    %3836 = vmatpush1.msra.mxu0 0.0
    %3837 = vmatprep.subr.mxu0 0.0
    %3838 = vmatpush1.msra.mxu0 0.0
    %3839 = vmatprep.subr.mxu0 0.0
    %3840 = vmatpush1.msra.mxu0 0.0
    %3841 = vmatprep.subr.mxu0 0.0
    %3842 = vmatpush1.msra.mxu0 0.0
    %3843 = vmatprep.subr.mxu0 0.0
    %3844 = vmatpush1.msra.mxu0 0.0
    %3845 = vmatprep.subr.mxu0 0.0
    %3846 = vmatpush1.msra.mxu0 0.0
    %3847 = vmatprep.subr.mxu0 0.0
    %3848 = vmatpush1.msra.mxu0 0.0
    %3849 = vmatprep.subr.mxu0 0.0
    %3850 = vmatpush1.msra.mxu0 0.0
    %3851 = vmatprep.subr.mxu0 0.0
    %3852 = vmatpush1.msra.mxu0 0.0
    %3853 = vmatprep.subr.mxu0 0.0
    %3854 = vmatpush1.msra.mxu0 0.0
    %3855 = vmatprep.subr.mxu0 0.0
    %3856 = vmatpush1.msra.mxu0 0.0
    %3857 = vmatprep.subr.mxu0 0.0
    %3858 = vmatpush1.msra.mxu0 0.0
    %3859 = vmatprep.subr.mxu0 0.0
    %3860 = vmatpush1.msra.mxu0 0.0
    %3861 = vmatprep.subr.mxu0 0.0
    %3862 = vmatpush1.msra.mxu0 0.0
    %3863 = vmatprep.subr.mxu0 0.0
    %3864 = vmatpush1.msra.mxu0 0.0
    %3865 = vmatprep.subr.mxu0 0.0
    %3866 = vmatpush1.msra.mxu0 0.0
    %3867 = vmatprep.subr.mxu0 0.0
    %3868 = vmatpush1.msra.mxu0 0.0
    %3869 = vmatprep.subr.mxu0 0.0
    %3870 = vmatpush1.msra.mxu0 0.0
    %3871 = vmatprep.subr.mxu0 0.0
    %3872 = vmatpush1.msra.mxu0 0.0
    %3873 = vmatprep.mubr.f32.mxu0 0.0
    %3874 = vmatmul.mubr.f32.gmra.mrb[0].mxu0 %v3786
    %v3875 = vpop.f32.mrb[0].mxu0
    %v3876 = vadd.f32 %v3634, %v3875
    %v3877 = vpop.f32.mrb[0].mxu0
    %v3878 = vadd.f32 %v3636, %v3877
    %3879 = vmatprep.mubr.f32.mxu0 0.0
    %3880 = vmatmul.mubr.f32.gmra.mrb[0].mxu0 %v3789
    %v3881 = vpop.f32.mrb[0].mxu0
    %v3882 = vadd.f32 %v3640, %v3881
    %v3883 = vpop.f32.mrb[0].mxu0
    %v3884 = vadd.f32 %v3642, %v3883
    %3885 = vmatprep.mubr.f32.mxu0 0.0
    %3886 = vmatmul.mubr.f32.gmra.mrb[0].mxu0 %v3792
    %v3887 = vpop.f32.mrb[0].mxu0
    %v3888 = vadd.f32 %v3646, %v3887
    %v3889 = vpop.f32.mrb[0].mxu0
    %v3890 = vadd.f32 %v3648, %v3889
    %3891 = vmatprep.mubr.f32.mxu0 0.0
    %3892 = vmatmul.mubr.f32.gmra.mrb[0].mxu0 %v3795
    %v3893 = vpop.f32.mrb[0].mxu0
    %v3894 = vadd.f32 %v3652, %v3893
    %v3895 = vpop.f32.mrb[0].mxu0
    %v3896 = vadd.f32 %v3654, %v3895
    %3897 = vmatprep.mubr.f32.mxu0 0.0
    %3898 = vmatmul.mubr.f32.gmra.mrb[0].mxu0 %v3798
    %v3899 = vpop.f32.mrb[0].mxu0
    %v3900 = vadd.f32 %v3658, %v3899
    %v3901 = vpop.f32.mrb[0].mxu0
    %v3902 = vadd.f32 %v3660, %v3901
    %3903 = vmatprep.mubr.f32.mxu0 0.0
    %3904 = vmatmul.mubr.f32.gmra.mrb[0].mxu0 %v3801
    %v3905 = vpop.f32.mrb[0].mxu0
    %v3906 = vadd.f32 %v3664, %v3905
    %v3907 = vpop.f32.mrb[0].mxu0
    %v3908 = vadd.f32 %v3666, %v3907
    %3909 = vmatprep.mubr.f32.mxu0 0.0
    %3910 = vmatmul.mubr.f32.gmra.mrb[0].mxu0 %v3804
    %v3911 = vpop.f32.mrb[0].mxu0
    %v3912 = vadd.f32 %v3670, %v3911
    %v3913 = vpop.f32.mrb[0].mxu0
    %v3914 = vadd.f32 %v3672, %v3913
    %3915 = vmatprep.mubr.f32.mxu0 0.0
    %3916 = vmatmul.mubr.f32.gmra.mrb[0].mxu0 %v3807
    %v3917 = vpop.f32.mrb[0].mxu0
    %v3918 = vadd.f32 %v3676, %v3917
    %v3919 = vpop.f32.mrb[0].mxu0
    %v3920 = vadd.f32 %v3678, %v3919
    %3921 = vdwg.mxu0
    %3922 = vmatprep.subr.mxu0 0.0
    %3923 = vmatpush1.msra.mxu0 %v77
    %3924 = vmatprep.subr.mxu0 0.0
    %3925 = vmatpush1.msra.mxu0 0.0
    %3926 = vmatprep.subr.mxu0 0.0
    %3927 = vmatpush1.msra.mxu0 0.0
    %3928 = vmatprep.subr.mxu0 0.0
    %3929 = vmatpush1.msra.mxu0 0.0
    %3930 = vmatprep.subr.mxu0 0.0
    %3931 = vmatpush1.msra.mxu0 0.0
    %3932 = vmatprep.subr.mxu0 0.0
    %3933 = vmatpush1.msra.mxu0 0.0
    %3934 = vmatprep.subr.mxu0 0.0
    %3935 = vmatpush1.msra.mxu0 0.0
    %3936 = vmatprep.subr.mxu0 0.0
    %3937 = vmatpush1.msra.mxu0 0.0
    %3938 = vmatprep.subr.mxu0 0.0
    %3939 = vmatpush1.msra.mxu0 0.0
    %3940 = vmatprep.subr.mxu0 0.0
    %3941 = vmatpush1.msra.mxu0 0.0
    %3942 = vmatprep.subr.mxu0 0.0
    %3943 = vmatpush1.msra.mxu0 0.0
    %3944 = vmatprep.subr.mxu0 0.0
    %3945 = vmatpush1.msra.mxu0 0.0
    %3946 = vmatprep.subr.mxu0 0.0
    %3947 = vmatpush1.msra.mxu0 0.0
    %3948 = vmatprep.subr.mxu0 0.0
    %3949 = vmatpush1.msra.mxu0 0.0
    %3950 = vmatprep.subr.mxu0 0.0
    %3951 = vmatpush1.msra.mxu0 0.0
    %3952 = vmatprep.subr.mxu0 0.0
    %3953 = vmatpush1.msra.mxu0 0.0
    %3954 = vmatprep.subr.mxu0 0.0
    %3955 = vmatpush1.msra.mxu0 0.0
    %3956 = vmatprep.subr.mxu0 0.0
    %3957 = vmatpush1.msra.mxu0 0.0
    %3958 = vmatprep.subr.mxu0 0.0
    %3959 = vmatpush1.msra.mxu0 0.0
    %3960 = vmatprep.subr.mxu0 0.0
    %3961 = vmatpush1.msra.mxu0 0.0
    %3962 = vmatprep.subr.mxu0 0.0
    %3963 = vmatpush1.msra.mxu0 0.0
    %3964 = vmatprep.subr.mxu0 0.0
    %3965 = vmatpush1.msra.mxu0 0.0
    %3966 = vmatprep.subr.mxu0 0.0
    %3967 = vmatpush1.msra.mxu0 0.0
    %3968 = vmatprep.subr.mxu0 0.0
    %3969 = vmatpush1.msra.mxu0 0.0
    %3970 = vmatprep.subr.mxu0 0.0
    %3971 = vmatpush1.msra.mxu0 0.0
    %3972 = vmatprep.subr.mxu0 0.0
    %3973 = vmatpush1.msra.mxu0 0.0
    %3974 = vmatprep.subr.mxu0 0.0
    %3975 = vmatpush1.msra.mxu0 0.0
    %3976 = vmatprep.subr.mxu0 0.0
    %3977 = vmatpush1.msra.mxu0 0.0
    %3978 = vmatprep.subr.mxu0 0.0
    %3979 = vmatpush1.msra.mxu0 0.0
    %3980 = vmatprep.subr.mxu0 0.0
    %3981 = vmatpush1.msra.mxu0 0.0
    %3982 = vmatprep.subr.mxu0 0.0
    %3983 = vmatpush1.msra.mxu0 0.0
    %3984 = vmatprep.subr.mxu0 0.0
    %3985 = vmatpush1.msra.mxu0 0.0
    %3986 = vmatprep.mubr.f32.mxu0 0.0
    %3987 = vmatmul.mubr.f32.gmra.mrb[0].mxu0 %v3786
    %v3988 = vpop.f32.mrb[0].mxu0
    %v3989 = vadd.f32 %v3747, %v3988
    %v3990 = vpop.f32.mrb[0].mxu0
    %3991 = vmatprep.mubr.f32.mxu0 0.0
    %3992 = vmatmul.mubr.f32.gmra.mrb[0].mxu0 %v3789
    %v3993 = vpop.f32.mrb[0].mxu0
    %v3994 = vadd.f32 %v3752, %v3993
    %v3995 = vpop.f32.mrb[0].mxu0
    %3996 = vmatprep.mubr.f32.mxu0 0.0
    %3997 = vmatmul.mubr.f32.gmra.mrb[0].mxu0 %v3792
    %v3998 = vpop.f32.mrb[0].mxu0
    %v3999 = vadd.f32 %v3757, %v3998
    %v4000 = vpop.f32.mrb[0].mxu0
    %4001 = vmatprep.mubr.f32.mxu0 0.0
    %4002 = vmatmul.mubr.f32.gmra.mrb[0].mxu0 %v3795
    %v4003 = vpop.f32.mrb[0].mxu0
    %v4004 = vadd.f32 %v3762, %v4003
    %v4005 = vpop.f32.mrb[0].mxu0
    %4006 = vmatprep.mubr.f32.mxu0 0.0
    %4007 = vmatmul.mubr.f32.gmra.mrb[0].mxu0 %v3798
    %v4008 = vpop.f32.mrb[0].mxu0
    %v4009 = vadd.f32 %v3767, %v4008
    %v4010 = vpop.f32.mrb[0].mxu0
    %4011 = vmatprep.mubr.f32.mxu0 0.0
    %4012 = vmatmul.mubr.f32.gmra.mrb[0].mxu0 %v3801
    %v4013 = vpop.f32.mrb[0].mxu0
    %v4014 = vadd.f32 %v3772, %v4013
    %v4015 = vpop.f32.mrb[0].mxu0
    %4016 = vmatprep.mubr.f32.mxu0 0.0
    %4017 = vmatmul.mubr.f32.gmra.mrb[0].mxu0 %v3804
    %v4018 = vpop.f32.mrb[0].mxu0
    %v4019 = vadd.f32 %v3777, %v4018
    %v4020 = vpop.f32.mrb[0].mxu0
    %4021 = vmatprep.mubr.f32.mxu0 0.0
    %4022 = vmatmul.mubr.f32.gmra.mrb[0].mxu0 %v3807
    %v4023 = vpop.f32.mrb[0].mxu0
    %v4024 = vadd.f32 %v3782, %v4023
    %v4025 = vpop.f32.mrb[0].mxu0
    %4026 = vdwg.mxu0
    %v4027 = vld [vmem:[%s9] sm:$0xff]
    %v4028 = vld [vmem:[%s9 + $0x8] sm:$0xff]
    %v4029 = vld [vmem:[%s9 + $0x10] sm:$0xff]
    %v4030 = vld [vmem:[%s9 + $0x18] sm:$0xff]
    %v4031 = vld [vmem:[%s9 + $0x20] sm:$0xff]
    %v4032 = vld [vmem:[%s9 + $0x28] sm:$0xff]
    %v4033 = vld [vmem:[%s9 + $0x30] sm:$0xff]
    %v4034 = vld [vmem:[%s9 + $0x38] sm:$0xff]
    %v4036 = vsel %vm2121, %v4027, 0
    %v4039 = vsel %vm2121, %v4028, 0
    %v4042 = vsel %vm2121, %v4029, 0
    %v4045 = vsel %vm2121, %v4030, 0
    %v4048 = vsel %vm2121, %v4031, 0
    %v4051 = vsel %vm2121, %v4032, 0
    %v4054 = vsel %vm2121, %v4033, 0
    %v4057 = vsel %vm2121, %v4034, 0
    %4059 = vmatprep.subr.mxu0 %v1383
    %4060 = vmatpush1.msra.mxu0 %v1280
    %4061 = vmatprep.subr.mxu0 %v1692
    %4062 = vmatpush1.msra.mxu0 %v1589
    %4063 = vmatprep.subr.mxu0 %v2652
    %4064 = vmatpush1.msra.mxu0 %v2649
    %4065 = vmatprep.subr.mxu0 0.0
    %4066 = vmatpush1.msra.mxu0 0.0
    %4067 = vmatprep.subr.mxu0 0.0
    %4068 = vmatpush1.msra.mxu0 0.0
    %4069 = vmatprep.subr.mxu0 0.0
    %4070 = vmatpush1.msra.mxu0 0.0
    %4071 = vmatprep.subr.mxu0 0.0
    %4072 = vmatpush1.msra.mxu0 0.0
    %4073 = vmatprep.subr.mxu0 0.0
    %4074 = vmatpush1.msra.mxu0 0.0
    %4075 = vmatprep.subr.mxu0 0.0
    %4076 = vmatpush1.msra.mxu0 0.0
    %4077 = vmatprep.subr.mxu0 0.0
    %4078 = vmatpush1.msra.mxu0 0.0
    %4079 = vmatprep.subr.mxu0 0.0
    %4080 = vmatpush1.msra.mxu0 0.0
    %4081 = vmatprep.subr.mxu0 0.0
    %4082 = vmatpush1.msra.mxu0 0.0
    %4083 = vmatprep.subr.mxu0 0.0
    %4084 = vmatpush1.msra.mxu0 0.0
    %4085 = vmatprep.subr.mxu0 0.0
    %4086 = vmatpush1.msra.mxu0 0.0
    %4087 = vmatprep.subr.mxu0 0.0
    %4088 = vmatpush1.msra.mxu0 0.0
    %4089 = vmatprep.subr.mxu0 0.0
    %4090 = vmatpush1.msra.mxu0 0.0
    %4091 = vmatprep.subr.mxu0 0.0
    %4092 = vmatpush1.msra.mxu0 0.0
    %4093 = vmatprep.subr.mxu0 0.0
    %4094 = vmatpush1.msra.mxu0 0.0
    %4095 = vmatprep.subr.mxu0 0.0
    %4096 = vmatpush1.msra.mxu0 0.0
    %4097 = vmatprep.subr.mxu0 0.0
    %4098 = vmatpush1.msra.mxu0 0.0
    %4099 = vmatprep.subr.mxu0 0.0
    %4100 = vmatpush1.msra.mxu0 0.0
    %4101 = vmatprep.subr.mxu0 0.0
    %4102 = vmatpush1.msra.mxu0 0.0
    %4103 = vmatprep.subr.mxu0 0.0
    %4104 = vmatpush1.msra.mxu0 0.0
    %4105 = vmatprep.subr.mxu0 0.0
    %4106 = vmatpush1.msra.mxu0 0.0
    %4107 = vmatprep.subr.mxu0 0.0
    %4108 = vmatpush1.msra.mxu0 0.0
    %4109 = vmatprep.subr.mxu0 0.0
    %4110 = vmatpush1.msra.mxu0 0.0
    %4111 = vmatprep.subr.mxu0 0.0
    %4112 = vmatpush1.msra.mxu0 0.0
    %4113 = vmatprep.subr.mxu0 0.0
    %4114 = vmatpush1.msra.mxu0 0.0
    %4115 = vmatprep.subr.mxu0 0.0
    %4116 = vmatpush1.msra.mxu0 0.0
    %4117 = vmatprep.subr.mxu0 0.0
    %4118 = vmatpush1.msra.mxu0 0.0
    %4119 = vmatprep.subr.mxu0 0.0
    %4120 = vmatpush1.msra.mxu0 0.0
    %4121 = vmatprep.subr.mxu0 0.0
    %4122 = vmatpush1.msra.mxu0 0.0
    %4123 = vmatprep.mubr.f32.mxu0 0.0
    %4124 = vmatmul.mubr.f32.gmra.mrb[0].mxu0 %v4036
    %v4125 = vpop.f32.mrb[0].mxu0
    %v4126 = vadd.f32 0.0, %v4125
    %v4127 = vpop.f32.mrb[0].mxu0
    %v4128 = vadd.f32 0.0, %v4127
    %4129 = vmatprep.mubr.f32.mxu0 0.0
    %4130 = vmatmul.mubr.f32.gmra.mrb[0].mxu0 %v4039
    %v4131 = vpop.f32.mrb[0].mxu0
    %v4132 = vadd.f32 0.0, %v4131
    %v4133 = vpop.f32.mrb[0].mxu0
    %v4134 = vadd.f32 0.0, %v4133
    %4135 = vmatprep.mubr.f32.mxu0 0.0
    %4136 = vmatmul.mubr.f32.gmra.mrb[0].mxu0 %v4042
    %v4137 = vpop.f32.mrb[0].mxu0
    %v4138 = vadd.f32 0.0, %v4137
    %v4139 = vpop.f32.mrb[0].mxu0
    %v4140 = vadd.f32 0.0, %v4139
    %4141 = vmatprep.mubr.f32.mxu0 0.0
    %4142 = vmatmul.mubr.f32.gmra.mrb[0].mxu0 %v4045
    %v4143 = vpop.f32.mrb[0].mxu0
    %v4144 = vadd.f32 0.0, %v4143
    %v4145 = vpop.f32.mrb[0].mxu0
    %v4146 = vadd.f32 0.0, %v4145
    %4147 = vmatprep.mubr.f32.mxu0 0.0
    %4148 = vmatmul.mubr.f32.gmra.mrb[0].mxu0 %v4048
    %v4149 = vpop.f32.mrb[0].mxu0
    %v4150 = vadd.f32 0.0, %v4149
    %v4151 = vpop.f32.mrb[0].mxu0
    %v4152 = vadd.f32 0.0, %v4151
    %4153 = vmatprep.mubr.f32.mxu0 0.0
    %4154 = vmatmul.mubr.f32.gmra.mrb[0].mxu0 %v4051
    %v4155 = vpop.f32.mrb[0].mxu0
    %v4156 = vadd.f32 0.0, %v4155
    %v4157 = vpop.f32.mrb[0].mxu0
    %v4158 = vadd.f32 0.0, %v4157
    %4159 = vmatprep.mubr.f32.mxu0 0.0
    %4160 = vmatmul.mubr.f32.gmra.mrb[0].mxu0 %v4054
    %v4161 = vpop.f32.mrb[0].mxu0
    %v4162 = vadd.f32 0.0, %v4161
    %v4163 = vpop.f32.mrb[0].mxu0
    %v4164 = vadd.f32 0.0, %v4163
    %4165 = vmatprep.mubr.f32.mxu0 0.0
    %4166 = vmatmul.mubr.f32.gmra.mrb[0].mxu0 %v4057
    %v4167 = vpop.f32.mrb[0].mxu0
    %v4168 = vadd.f32 0.0, %v4167
    %v4169 = vpop.f32.mrb[0].mxu0
    %v4170 = vadd.f32 0.0, %v4169
    %4171 = vdwg.mxu0
    %4172 = vmatprep.subr.mxu0 0.0
    %4173 = vmatpush1.msra.mxu0 %v1486
    %4174 = vmatprep.subr.mxu0 0.0
    %4175 = vmatpush1.msra.mxu0 %v1795
    %4176 = vmatprep.subr.mxu0 0.0
    %4177 = vmatpush1.msra.mxu0 %v2655
    %4178 = vmatprep.subr.mxu0 0.0
    %4179 = vmatpush1.msra.mxu0 0.0
    %4180 = vmatprep.subr.mxu0 0.0
    %4181 = vmatpush1.msra.mxu0 0.0
    %4182 = vmatprep.subr.mxu0 0.0
    %4183 = vmatpush1.msra.mxu0 0.0
    %4184 = vmatprep.subr.mxu0 0.0
    %4185 = vmatpush1.msra.mxu0 0.0
    %4186 = vmatprep.subr.mxu0 0.0
    %4187 = vmatpush1.msra.mxu0 0.0
    %4188 = vmatprep.subr.mxu0 0.0
    %4189 = vmatpush1.msra.mxu0 0.0
    %4190 = vmatprep.subr.mxu0 0.0
    %4191 = vmatpush1.msra.mxu0 0.0
    %4192 = vmatprep.subr.mxu0 0.0
    %4193 = vmatpush1.msra.mxu0 0.0
    %4194 = vmatprep.subr.mxu0 0.0
    %4195 = vmatpush1.msra.mxu0 0.0
    %4196 = vmatprep.subr.mxu0 0.0
    %4197 = vmatpush1.msra.mxu0 0.0
    %4198 = vmatprep.subr.mxu0 0.0
    %4199 = vmatpush1.msra.mxu0 0.0
    %4200 = vmatprep.subr.mxu0 0.0
    %4201 = vmatpush1.msra.mxu0 0.0
    %4202 = vmatprep.subr.mxu0 0.0
    %4203 = vmatpush1.msra.mxu0 0.0
    %4204 = vmatprep.subr.mxu0 0.0
    %4205 = vmatpush1.msra.mxu0 0.0
    %4206 = vmatprep.subr.mxu0 0.0
    %4207 = vmatpush1.msra.mxu0 0.0
    %4208 = vmatprep.subr.mxu0 0.0
    %4209 = vmatpush1.msra.mxu0 0.0
    %4210 = vmatprep.subr.mxu0 0.0
    %4211 = vmatpush1.msra.mxu0 0.0
    %4212 = vmatprep.subr.mxu0 0.0
    %4213 = vmatpush1.msra.mxu0 0.0
    %4214 = vmatprep.subr.mxu0 0.0
    %4215 = vmatpush1.msra.mxu0 0.0
    %4216 = vmatprep.subr.mxu0 0.0
    %4217 = vmatpush1.msra.mxu0 0.0
    %4218 = vmatprep.subr.mxu0 0.0
    %4219 = vmatpush1.msra.mxu0 0.0
    %4220 = vmatprep.subr.mxu0 0.0
    %4221 = vmatpush1.msra.mxu0 0.0
    %4222 = vmatprep.subr.mxu0 0.0
    %4223 = vmatpush1.msra.mxu0 0.0
    %4224 = vmatprep.subr.mxu0 0.0
    %4225 = vmatpush1.msra.mxu0 0.0
    %4226 = vmatprep.subr.mxu0 0.0
    %4227 = vmatpush1.msra.mxu0 0.0
    %4228 = vmatprep.subr.mxu0 0.0
    %4229 = vmatpush1.msra.mxu0 0.0
    %4230 = vmatprep.subr.mxu0 0.0
    %4231 = vmatpush1.msra.mxu0 0.0
    %4232 = vmatprep.subr.mxu0 0.0
    %4233 = vmatpush1.msra.mxu0 0.0
    %4234 = vmatprep.subr.mxu0 0.0
    %4235 = vmatpush1.msra.mxu0 0.0
    %4236 = vmatprep.mubr.f32.mxu0 0.0
    %4237 = vmatmul.mubr.f32.gmra.mrb[0].mxu0 %v4036
    %v4238 = vpop.f32.mrb[0].mxu0
    %v4239 = vadd.f32 0.0, %v4238
    %v4240 = vpop.f32.mrb[0].mxu0
    %4241 = vmatprep.mubr.f32.mxu0 0.0
    %4242 = vmatmul.mubr.f32.gmra.mrb[0].mxu0 %v4039
    %v4243 = vpop.f32.mrb[0].mxu0
    %v4244 = vadd.f32 0.0, %v4243
    %v4245 = vpop.f32.mrb[0].mxu0
    %4246 = vmatprep.mubr.f32.mxu0 0.0
    %4247 = vmatmul.mubr.f32.gmra.mrb[0].mxu0 %v4042
    %v4248 = vpop.f32.mrb[0].mxu0
    %v4249 = vadd.f32 0.0, %v4248
    %v4250 = vpop.f32.mrb[0].mxu0
    %4251 = vmatprep.mubr.f32.mxu0 0.0
    %4252 = vmatmul.mubr.f32.gmra.mrb[0].mxu0 %v4045
    %v4253 = vpop.f32.mrb[0].mxu0
    %v4254 = vadd.f32 0.0, %v4253
    %v4255 = vpop.f32.mrb[0].mxu0
    %4256 = vmatprep.mubr.f32.mxu0 0.0
    %4257 = vmatmul.mubr.f32.gmra.mrb[0].mxu0 %v4048
    %v4258 = vpop.f32.mrb[0].mxu0
    %v4259 = vadd.f32 0.0, %v4258
    %v4260 = vpop.f32.mrb[0].mxu0
    %4261 = vmatprep.mubr.f32.mxu0 0.0
    %4262 = vmatmul.mubr.f32.gmra.mrb[0].mxu0 %v4051
    %v4263 = vpop.f32.mrb[0].mxu0
    %v4264 = vadd.f32 0.0, %v4263
    %v4265 = vpop.f32.mrb[0].mxu0
    %4266 = vmatprep.mubr.f32.mxu0 0.0
    %4267 = vmatmul.mubr.f32.gmra.mrb[0].mxu0 %v4054
    %v4268 = vpop.f32.mrb[0].mxu0
    %v4269 = vadd.f32 0.0, %v4268
    %v4270 = vpop.f32.mrb[0].mxu0
    %4271 = vmatprep.mubr.f32.mxu0 0.0
    %4272 = vmatmul.mubr.f32.gmra.mrb[0].mxu0 %v4057
    %v4273 = vpop.f32.mrb[0].mxu0
    %v4274 = vadd.f32 0.0, %v4273
    %v4275 = vpop.f32.mrb[0].mxu0
    %4276 = vdwg.mxu0
    %v4277 = vadd.f32 %v3876, %v4126
    %v4278 = vadd.f32 %v3878, %v4128
    %v4279 = vadd.f32 %v3989, %v4239
    %v4280 = vadd.f32 %v3882, %v4132
    %v4281 = vadd.f32 %v3884, %v4134
    %v4282 = vadd.f32 %v3994, %v4244
    %v4283 = vadd.f32 %v3888, %v4138
    %v4284 = vadd.f32 %v3890, %v4140
    %v4285 = vadd.f32 %v3999, %v4249
    %v4286 = vadd.f32 %v3894, %v4144
    %v4287 = vadd.f32 %v3896, %v4146
    %v4288 = vadd.f32 %v4004, %v4254
    %v4289 = vadd.f32 %v3900, %v4150
    %v4290 = vadd.f32 %v3902, %v4152
    %v4291 = vadd.f32 %v4009, %v4259
    %v4292 = vadd.f32 %v3906, %v4156
    %v4293 = vadd.f32 %v3908, %v4158
    %v4294 = vadd.f32 %v4014, %v4264
    %v4295 = vadd.f32 %v3912, %v4162
    %v4296 = vadd.f32 %v3914, %v4164
    %v4297 = vadd.f32 %v4019, %v4269
    %v4298 = vadd.f32 %v3918, %v4168
    %v4299 = vadd.f32 %v3920, %v4170
    %v4300 = vadd.f32 %v4024, %v4274
    %vm4301 = vcmask 523264
    %v4303 = vsel %vm4301, %v3519, 0
    %v4306 = vsel %vm4301, %v3520, 0
    %v4309 = vsel %vm4301, %v3521, 0
    %v4312 = vsel %vm4301, %v3522, 0
    %v4315 = vsel %vm4301, %v3523, 0
    %v4318 = vsel %vm4301, %v3524, 0
    %v4321 = vsel %vm4301, %v3525, 0
    %v4324 = vsel %vm4301, %v3526, 0
    %4326 = vmatprep.subr.mxu0 %v3496
    %4327 = vmatpush1.msra.mxu0 %v3495
    %4328 = vmatprep.subr.mxu0 %v3499
    %4329 = vmatpush1.msra.mxu0 %v3498
    %4330 = vmatprep.subr.mxu0 %v3502
    %4331 = vmatpush1.msra.mxu0 %v3501
    %4332 = vmatprep.subr.mxu0 %v3505
    %4333 = vmatpush1.msra.mxu0 %v3504
    %4334 = vmatprep.subr.mxu0 %v3508
    %4335 = vmatpush1.msra.mxu0 %v3507
    %4336 = vmatprep.subr.mxu0 %v3511
    %4337 = vmatpush1.msra.mxu0 %v3510
    %4338 = vmatprep.subr.mxu0 %v3514
    %4339 = vmatpush1.msra.mxu0 %v3513
    %4340 = vmatprep.subr.mxu0 %v3517
    %4341 = vmatpush1.msra.mxu0 %v3516
    %4342 = vmatprep.subr.mxu0 0.0
    %4343 = vmatpush1.msra.mxu0 0.0
    %4344 = vmatprep.subr.mxu0 0.0
    %4345 = vmatpush1.msra.mxu0 0.0
    %4346 = vmatprep.subr.mxu0 0.0
    %4347 = vmatpush1.msra.mxu0 0.0
    %4348 = vmatprep.subr.mxu0 0.0
    %4349 = vmatpush1.msra.mxu0 0.0
    %4350 = vmatprep.subr.mxu0 0.0
    %4351 = vmatpush1.msra.mxu0 0.0
    %4352 = vmatprep.subr.mxu0 0.0
    %4353 = vmatpush1.msra.mxu0 0.0
    %4354 = vmatprep.subr.mxu0 0.0
    %4355 = vmatpush1.msra.mxu0 0.0
    %4356 = vmatprep.subr.mxu0 0.0
    %4357 = vmatpush1.msra.mxu0 0.0
    %4358 = vmatprep.subr.mxu0 0.0
    %4359 = vmatpush1.msra.mxu0 0.0
    %4360 = vmatprep.subr.mxu0 0.0
    %4361 = vmatpush1.msra.mxu0 0.0
    %4362 = vmatprep.subr.mxu0 0.0
    %4363 = vmatpush1.msra.mxu0 0.0
    %4364 = vmatprep.subr.mxu0 0.0
    %4365 = vmatpush1.msra.mxu0 0.0
    %4366 = vmatprep.subr.mxu0 0.0
    %4367 = vmatpush1.msra.mxu0 0.0
    %4368 = vmatprep.subr.mxu0 0.0
    %4369 = vmatpush1.msra.mxu0 0.0
    %4370 = vmatprep.subr.mxu0 0.0
    %4371 = vmatpush1.msra.mxu0 0.0
    %4372 = vmatprep.subr.mxu0 0.0
    %4373 = vmatpush1.msra.mxu0 0.0
    %4374 = vmatprep.subr.mxu0 0.0
    %4375 = vmatpush1.msra.mxu0 0.0
    %4376 = vmatprep.subr.mxu0 0.0
    %4377 = vmatpush1.msra.mxu0 0.0
    %4378 = vmatprep.subr.mxu0 0.0
    %4379 = vmatpush1.msra.mxu0 0.0
    %4380 = vmatprep.subr.mxu0 0.0
    %4381 = vmatpush1.msra.mxu0 0.0
    %4382 = vmatprep.subr.mxu0 0.0
    %4383 = vmatpush1.msra.mxu0 0.0
    %4384 = vmatprep.subr.mxu0 0.0
    %4385 = vmatpush1.msra.mxu0 0.0
    %4386 = vmatprep.subr.mxu0 0.0
    %4387 = vmatpush1.msra.mxu0 0.0
    %4388 = vmatprep.subr.mxu0 0.0
    %4389 = vmatpush1.msra.mxu0 0.0
    %4390 = vmatprep.mubr.f32.mxu0 0.0
    %4391 = vmatmul.mubr.f32.gmra.mrb[0].mxu0 %v4303
    %v4392 = vpop.f32.mrb[0].mxu0
    %v4393 = vadd.f32 %v4277, %v4392
    %v4394 = vpop.f32.mrb[0].mxu0
    %v4395 = vadd.f32 %v4278, %v4394
    %4396 = vmatprep.mubr.f32.mxu0 0.0
    %4397 = vmatmul.mubr.f32.gmra.mrb[0].mxu0 %v4306
    %v4398 = vpop.f32.mrb[0].mxu0
    %v4399 = vadd.f32 %v4280, %v4398
    %v4400 = vpop.f32.mrb[0].mxu0
    %v4401 = vadd.f32 %v4281, %v4400
    %4402 = vmatprep.mubr.f32.mxu0 0.0
    %4403 = vmatmul.mubr.f32.gmra.mrb[0].mxu0 %v4309
    %v4404 = vpop.f32.mrb[0].mxu0
    %v4405 = vadd.f32 %v4283, %v4404
    %v4406 = vpop.f32.mrb[0].mxu0
    %v4407 = vadd.f32 %v4284, %v4406
    %4408 = vmatprep.mubr.f32.mxu0 0.0
    %4409 = vmatmul.mubr.f32.gmra.mrb[0].mxu0 %v4312
    %v4410 = vpop.f32.mrb[0].mxu0
    %v4411 = vadd.f32 %v4286, %v4410
    %v4412 = vpop.f32.mrb[0].mxu0
    %v4413 = vadd.f32 %v4287, %v4412
    %4414 = vmatprep.mubr.f32.mxu0 0.0
    %4415 = vmatmul.mubr.f32.gmra.mrb[0].mxu0 %v4315
    %v4416 = vpop.f32.mrb[0].mxu0
    %v4417 = vadd.f32 %v4289, %v4416
    %v4418 = vpop.f32.mrb[0].mxu0
    %v4419 = vadd.f32 %v4290, %v4418
    %4420 = vmatprep.mubr.f32.mxu0 0.0
    %4421 = vmatmul.mubr.f32.gmra.mrb[0].mxu0 %v4318
    %v4422 = vpop.f32.mrb[0].mxu0
    %v4423 = vadd.f32 %v4292, %v4422
    %v4424 = vpop.f32.mrb[0].mxu0
    %v4425 = vadd.f32 %v4293, %v4424
    %4426 = vmatprep.mubr.f32.mxu0 0.0
    %4427 = vmatmul.mubr.f32.gmra.mrb[0].mxu0 %v4321
    %v4428 = vpop.f32.mrb[0].mxu0
    %v4429 = vadd.f32 %v4295, %v4428
    %v4430 = vpop.f32.mrb[0].mxu0
    %v4431 = vadd.f32 %v4296, %v4430
    %4432 = vmatprep.mubr.f32.mxu0 0.0
    %4433 = vmatmul.mubr.f32.gmra.mrb[0].mxu0 %v4324
    %v4434 = vpop.f32.mrb[0].mxu0
    %v4435 = vadd.f32 %v4298, %v4434
    %v4436 = vpop.f32.mrb[0].mxu0
    %v4437 = vadd.f32 %v4299, %v4436
    %4438 = vdwg.mxu0
    %4439 = vmatprep.subr.mxu0 0.0
    %4440 = vmatpush1.msra.mxu0 %v3497
    %4441 = vmatprep.subr.mxu0 0.0
    %4442 = vmatpush1.msra.mxu0 %v3500
    %4443 = vmatprep.subr.mxu0 0.0
    %4444 = vmatpush1.msra.mxu0 %v3503
    %4445 = vmatprep.subr.mxu0 0.0
    %4446 = vmatpush1.msra.mxu0 %v3506
    %4447 = vmatprep.subr.mxu0 0.0
    %4448 = vmatpush1.msra.mxu0 %v3509
    %4449 = vmatprep.subr.mxu0 0.0
    %4450 = vmatpush1.msra.mxu0 %v3512
    %4451 = vmatprep.subr.mxu0 0.0
    %4452 = vmatpush1.msra.mxu0 %v3515
    %4453 = vmatprep.subr.mxu0 0.0
    %4454 = vmatpush1.msra.mxu0 %v3518
    %4455 = vmatprep.subr.mxu0 0.0
    %4456 = vmatpush1.msra.mxu0 0.0
    %4457 = vmatprep.subr.mxu0 0.0
    %4458 = vmatpush1.msra.mxu0 0.0
    %4459 = vmatprep.subr.mxu0 0.0
    %4460 = vmatpush1.msra.mxu0 0.0
    %4461 = vmatprep.subr.mxu0 0.0
    %4462 = vmatpush1.msra.mxu0 0.0
    %4463 = vmatprep.subr.mxu0 0.0
    %4464 = vmatpush1.msra.mxu0 0.0
    %4465 = vmatprep.subr.mxu0 0.0
    %4466 = vmatpush1.msra.mxu0 0.0
    %4467 = vmatprep.subr.mxu0 0.0
    %4468 = vmatpush1.msra.mxu0 0.0
    %4469 = vmatprep.subr.mxu0 0.0
    %4470 = vmatpush1.msra.mxu0 0.0
    %4471 = vmatprep.subr.mxu0 0.0
    %4472 = vmatpush1.msra.mxu0 0.0
    %4473 = vmatprep.subr.mxu0 0.0
    %4474 = vmatpush1.msra.mxu0 0.0
    %4475 = vmatprep.subr.mxu0 0.0
    %4476 = vmatpush1.msra.mxu0 0.0
    %4477 = vmatprep.subr.mxu0 0.0
    %4478 = vmatpush1.msra.mxu0 0.0
    %4479 = vmatprep.subr.mxu0 0.0
    %4480 = vmatpush1.msra.mxu0 0.0
    %4481 = vmatprep.subr.mxu0 0.0
    %4482 = vmatpush1.msra.mxu0 0.0
    %4483 = vmatprep.subr.mxu0 0.0
    %4484 = vmatpush1.msra.mxu0 0.0
    %4485 = vmatprep.subr.mxu0 0.0
    %4486 = vmatpush1.msra.mxu0 0.0
    %4487 = vmatprep.subr.mxu0 0.0
    %4488 = vmatpush1.msra.mxu0 0.0
    %4489 = vmatprep.subr.mxu0 0.0
    %4490 = vmatpush1.msra.mxu0 0.0
    %4491 = vmatprep.subr.mxu0 0.0
    %4492 = vmatpush1.msra.mxu0 0.0
    %4493 = vmatprep.subr.mxu0 0.0
    %4494 = vmatpush1.msra.mxu0 0.0
    %4495 = vmatprep.subr.mxu0 0.0
    %4496 = vmatpush1.msra.mxu0 0.0
    %4497 = vmatprep.subr.mxu0 0.0
    %4498 = vmatpush1.msra.mxu0 0.0
    %4499 = vmatprep.subr.mxu0 0.0
    %4500 = vmatpush1.msra.mxu0 0.0
    %4501 = vmatprep.subr.mxu0 0.0
    %4502 = vmatpush1.msra.mxu0 0.0
    %4503 = vmatprep.mubr.f32.mxu0 0.0
    %4504 = vmatmul.mubr.f32.gmra.mrb[0].mxu0 %v4303
    %v4505 = vpop.f32.mrb[0].mxu0
    %v4506 = vadd.f32 %v4279, %v4505
    %v4507 = vpop.f32.mrb[0].mxu0
    %4508 = vmatprep.mubr.f32.mxu0 0.0
    %4509 = vmatmul.mubr.f32.gmra.mrb[0].mxu0 %v4306
    %v4510 = vpop.f32.mrb[0].mxu0
    %v4511 = vadd.f32 %v4282, %v4510
    %v4512 = vpop.f32.mrb[0].mxu0
    %4513 = vmatprep.mubr.f32.mxu0 0.0
    %4514 = vmatmul.mubr.f32.gmra.mrb[0].mxu0 %v4309
    %v4515 = vpop.f32.mrb[0].mxu0
    %v4516 = vadd.f32 %v4285, %v4515
    %v4517 = vpop.f32.mrb[0].mxu0
    %4518 = vmatprep.mubr.f32.mxu0 0.0
    %4519 = vmatmul.mubr.f32.gmra.mrb[0].mxu0 %v4312
    %v4520 = vpop.f32.mrb[0].mxu0
    %v4521 = vadd.f32 %v4288, %v4520
    %v4522 = vpop.f32.mrb[0].mxu0
    %4523 = vmatprep.mubr.f32.mxu0 0.0
    %4524 = vmatmul.mubr.f32.gmra.mrb[0].mxu0 %v4315
    %v4525 = vpop.f32.mrb[0].mxu0
    %v4526 = vadd.f32 %v4291, %v4525
    %v4527 = vpop.f32.mrb[0].mxu0
    %4528 = vmatprep.mubr.f32.mxu0 0.0
    %4529 = vmatmul.mubr.f32.gmra.mrb[0].mxu0 %v4318
    %v4530 = vpop.f32.mrb[0].mxu0
    %v4531 = vadd.f32 %v4294, %v4530
    %v4532 = vpop.f32.mrb[0].mxu0
    %4533 = vmatprep.mubr.f32.mxu0 0.0
    %4534 = vmatmul.mubr.f32.gmra.mrb[0].mxu0 %v4321
    %v4535 = vpop.f32.mrb[0].mxu0
    %v4536 = vadd.f32 %v4297, %v4535
    %v4537 = vpop.f32.mrb[0].mxu0
    %4538 = vmatprep.mubr.f32.mxu0 0.0
    %4539 = vmatmul.mubr.f32.gmra.mrb[0].mxu0 %v4324
    %v4540 = vpop.f32.mrb[0].mxu0
    %v4541 = vadd.f32 %v4300, %v4540
    %v4542 = vpop.f32.mrb[0].mxu0
    %4543 = vdwg.mxu0
    %v4544 = vld [vmem:[%s10] sm:$0xff]
    %v4545 = vld [vmem:[%s10 + $0x8] sm:$0xff]
    %v4546 = vld [vmem:[%s10 + $0x10] sm:$0xff]
    %v4547 = vld [vmem:[%s10 + $0x18] sm:$0xff]
    %v4548 = vld [vmem:[%s10 + $0x20] sm:$0xff]
    %v4549 = vld [vmem:[%s10 + $0x28] sm:$0xff]
    %v4550 = vld [vmem:[%s10 + $0x30] sm:$0xff]
    %v4551 = vld [vmem:[%s10 + $0x38] sm:$0xff]
    %4553 = vset.pattern.permute.xlu0 0
    %4554 = vperm.xlu0 %4553, %v4544
    %v4555 = vpop.permute.xlu0 %4554
    %4558 = vset.pattern.permute.xlu0 0
    %4559 = vperm.xlu0 %4558, %v4545
    %v4560 = vpop.permute.xlu0 %4559
    %4563 = vset.pattern.permute.xlu0 0
    %4564 = vperm.xlu0 %4563, %v4546
    %v4565 = vpop.permute.xlu0 %4564
    %4568 = vset.pattern.permute.xlu0 0
    %4569 = vperm.xlu0 %4568, %v4547
    %v4570 = vpop.permute.xlu0 %4569
    %4573 = vset.pattern.permute.xlu0 0
    %4574 = vperm.xlu0 %4573, %v4548
    %v4575 = vpop.permute.xlu0 %4574
    %4578 = vset.pattern.permute.xlu0 0
    %4579 = vperm.xlu0 %4578, %v4549
    %v4580 = vpop.permute.xlu0 %4579
    %4583 = vset.pattern.permute.xlu0 0
    %4584 = vperm.xlu0 %4583, %v4550
    %v4585 = vpop.permute.xlu0 %4584
    %4588 = vset.pattern.permute.xlu0 0
    %4589 = vperm.xlu0 %4588, %v4551
    %v4590 = vpop.permute.xlu0 %4589
    %v4592 = vadd.f32 %v4393, %v4555
    %v4593 = vadd.f32 %v4395, %v4555
    %v4594 = vadd.f32 %v4506, %v4555
    %v4595 = vadd.f32 %v4399, %v4560
    %v4596 = vadd.f32 %v4401, %v4560
    %v4597 = vadd.f32 %v4511, %v4560
    %v4598 = vadd.f32 %v4405, %v4565
    %v4599 = vadd.f32 %v4407, %v4565
    %v4600 = vadd.f32 %v4516, %v4565
    %v4601 = vadd.f32 %v4411, %v4570
    %v4602 = vadd.f32 %v4413, %v4570
    %v4603 = vadd.f32 %v4521, %v4570
    %v4604 = vadd.f32 %v4417, %v4575
    %v4605 = vadd.f32 %v4419, %v4575
    %v4606 = vadd.f32 %v4526, %v4575
    %v4607 = vadd.f32 %v4423, %v4580
    %v4608 = vadd.f32 %v4425, %v4580
    %v4609 = vadd.f32 %v4531, %v4580
    %v4610 = vadd.f32 %v4429, %v4585
    %v4611 = vadd.f32 %v4431, %v4585
    %v4612 = vadd.f32 %v4536, %v4585
    %v4613 = vadd.f32 %v4435, %v4590
    %v4614 = vadd.f32 %v4437, %v4590
    %v4615 = vadd.f32 %v4541, %v4590
    %v4616 = vadd.f32 %v4592, %v4595
    %v4617 = vadd.f32 %v4616, %v4598
    %v4618 = vadd.f32 %v4617, %v4601
    %v4619 = vadd.f32 %v4618, %v4604
    %v4620 = vadd.f32 %v4619, %v4607
    %v4621 = vadd.f32 %v4620, %v4610
    %v4622 = vadd.f32 %v4621, %v4613
    %v4623 = vrot.slane %v4622, 4
    %v4624 = vadd.f32 %v4622, %v4623
    %v4625 = vrot.slane %v4624, 2
    %v4626 = vadd.f32 %v4624, %v4625
    %v4627 = vrot.slane %v4626, 1
    %v4628 = vadd.f32 %v4626, %v4627
    %v4629 = vadd.f32 %v4593, %v4596
    %v4630 = vadd.f32 %v4629, %v4599
    %v4631 = vadd.f32 %v4630, %v4602
    %v4632 = vadd.f32 %v4631, %v4605
    %v4633 = vadd.f32 %v4632, %v4608
    %v4634 = vadd.f32 %v4633, %v4611
    %v4635 = vadd.f32 %v4634, %v4614
    %v4636 = vrot.slane %v4635, 4
    %v4637 = vadd.f32 %v4635, %v4636
    %v4638 = vrot.slane %v4637, 2
    %v4639 = vadd.f32 %v4637, %v4638
    %v4640 = vrot.slane %v4639, 1
    %v4641 = vadd.f32 %v4639, %v4640
    %v4642 = vadd.f32 %v4594, %v4597
    %v4643 = vadd.f32 %v4642, %v4600
    %v4644 = vadd.f32 %v4643, %v4603
    %v4645 = vadd.f32 %v4644, %v4606
    %v4646 = vadd.f32 %v4645, %v4609
    %v4647 = vadd.f32 %v4646, %v4612
    %v4648 = vadd.f32 %v4647, %v4615
    %v4649 = vrot.slane %v4648, 4
    %v4650 = vadd.f32 %v4648, %v4649
    %v4651 = vrot.slane %v4650, 2
    %v4652 = vadd.f32 %v4650, %v4651
    %v4653 = vrot.slane %v4652, 1
    %v4654 = vadd.f32 %v4652, %v4653
    %v4655 = vmul.f32 %v4628, %v3010
    %v4656 = vmul.f32 %v4641, %v3010
    %v4657 = vmul.f32 %v4654, %v3010
    %v4658 = vsub.f32 %v4592, %v4655
    %v4659 = vsub.f32 %v4593, %v4656
    %v4660 = vsub.f32 %v4594, %v4657
    %v4661 = vsub.f32 %v4595, %v4655
    %v4662 = vsub.f32 %v4596, %v4656
    %v4663 = vsub.f32 %v4597, %v4657
    %v4664 = vsub.f32 %v4598, %v4655
    %v4665 = vsub.f32 %v4599, %v4656
    %v4666 = vsub.f32 %v4600, %v4657
    %v4667 = vsub.f32 %v4601, %v4655
    %v4668 = vsub.f32 %v4602, %v4656
    %v4669 = vsub.f32 %v4603, %v4657
    %v4670 = vsub.f32 %v4604, %v4655
    %v4671 = vsub.f32 %v4605, %v4656
    %v4672 = vsub.f32 %v4606, %v4657
    %v4673 = vsub.f32 %v4607, %v4655
    %v4674 = vsub.f32 %v4608, %v4656
    %v4675 = vsub.f32 %v4609, %v4657
    %v4676 = vsub.f32 %v4610, %v4655
    %v4677 = vsub.f32 %v4611, %v4656
    %v4678 = vsub.f32 %v4612, %v4657
    %v4679 = vsub.f32 %v4613, %v4655
    %v4680 = vsub.f32 %v4614, %v4656
    %v4681 = vsub.f32 %v4615, %v4657
    %v4682 = vmul.f32 %v4658, %v4658
    %v4683 = vmul.f32 %v4659, %v4659
    %v4684 = vmul.f32 %v4660, %v4660
    %v4685 = vmul.f32 %v4661, %v4661
    %v4686 = vmul.f32 %v4662, %v4662
    %v4687 = vmul.f32 %v4663, %v4663
    %v4688 = vmul.f32 %v4664, %v4664
    %v4689 = vmul.f32 %v4665, %v4665
    %v4690 = vmul.f32 %v4666, %v4666
    %v4691 = vmul.f32 %v4667, %v4667
    %v4692 = vmul.f32 %v4668, %v4668
    %v4693 = vmul.f32 %v4669, %v4669
    %v4694 = vmul.f32 %v4670, %v4670
    %v4695 = vmul.f32 %v4671, %v4671
    %v4696 = vmul.f32 %v4672, %v4672
    %v4697 = vmul.f32 %v4673, %v4673
    %v4698 = vmul.f32 %v4674, %v4674
    %v4699 = vmul.f32 %v4675, %v4675
    %v4700 = vmul.f32 %v4676, %v4676
    %v4701 = vmul.f32 %v4677, %v4677
    %v4702 = vmul.f32 %v4678, %v4678
    %v4703 = vmul.f32 %v4679, %v4679
    %v4704 = vmul.f32 %v4680, %v4680
    %v4705 = vmul.f32 %v4681, %v4681
    %v4706 = vadd.f32 %v4682, %v4685
    %v4707 = vadd.f32 %v4706, %v4688
    %v4708 = vadd.f32 %v4707, %v4691
    %v4709 = vadd.f32 %v4708, %v4694
    %v4710 = vadd.f32 %v4709, %v4697
    %v4711 = vadd.f32 %v4710, %v4700
    %v4712 = vadd.f32 %v4711, %v4703
    %v4713 = vrot.slane %v4712, 4
    %v4714 = vadd.f32 %v4712, %v4713
    %v4715 = vrot.slane %v4714, 2
    %v4716 = vadd.f32 %v4714, %v4715
    %v4717 = vrot.slane %v4716, 1
    %v4718 = vadd.f32 %v4716, %v4717
    %v4719 = vadd.f32 %v4683, %v4686
    %v4720 = vadd.f32 %v4719, %v4689
    %v4721 = vadd.f32 %v4720, %v4692
    %v4722 = vadd.f32 %v4721, %v4695
    %v4723 = vadd.f32 %v4722, %v4698
    %v4724 = vadd.f32 %v4723, %v4701
    %v4725 = vadd.f32 %v4724, %v4704
    %v4726 = vrot.slane %v4725, 4
    %v4727 = vadd.f32 %v4725, %v4726
    %v4728 = vrot.slane %v4727, 2
    %v4729 = vadd.f32 %v4727, %v4728
    %v4730 = vrot.slane %v4729, 1
    %v4731 = vadd.f32 %v4729, %v4730
    %v4732 = vadd.f32 %v4684, %v4687
    %v4733 = vadd.f32 %v4732, %v4690
    %v4734 = vadd.f32 %v4733, %v4693
    %v4735 = vadd.f32 %v4734, %v4696
    %v4736 = vadd.f32 %v4735, %v4699
    %v4737 = vadd.f32 %v4736, %v4702
    %v4738 = vadd.f32 %v4737, %v4705
    %v4739 = vrot.slane %v4738, 4
    %v4740 = vadd.f32 %v4738, %v4739
    %v4741 = vrot.slane %v4740, 2
    %v4742 = vadd.f32 %v4740, %v4741
    %v4743 = vrot.slane %v4742, 1
    %v4744 = vadd.f32 %v4742, %v4743
    %v4745 = vmul.f32 %v4718, %v3010
    %v4746 = vmul.f32 %v4731, %v3010
    %v4747 = vmul.f32 %v4744, %v3010
    %v4748 = vadd.f32 %v4745, 1e-05
    %v4749 = vadd.f32 %v4746, 1e-05
    %v4750 = vadd.f32 %v4747, 1e-05
    %v4751 = vrsqrt.pop %v4748
    %v4752 = vrsqrt.pop %v4749
    %v4753 = vrsqrt.pop %v4750
    %v4754 = vmul.f32 %v4658, %v4751
    %v4755 = vmul.f32 %v4659, %v4752
    %v4756 = vmul.f32 %v4660, %v4753
    %v4757 = vmul.f32 %v4661, %v4751
    %v4758 = vmul.f32 %v4662, %v4752
    %v4759 = vmul.f32 %v4663, %v4753
    %v4760 = vmul.f32 %v4664, %v4751
    %v4761 = vmul.f32 %v4665, %v4752
    %v4762 = vmul.f32 %v4666, %v4753
    %v4763 = vmul.f32 %v4667, %v4751
    %v4764 = vmul.f32 %v4668, %v4752
    %v4765 = vmul.f32 %v4669, %v4753
    %v4766 = vmul.f32 %v4670, %v4751
    %v4767 = vmul.f32 %v4671, %v4752
    %v4768 = vmul.f32 %v4672, %v4753
    %v4769 = vmul.f32 %v4673, %v4751
    %v4770 = vmul.f32 %v4674, %v4752
    %v4771 = vmul.f32 %v4675, %v4753
    %v4772 = vmul.f32 %v4676, %v4751
    %v4773 = vmul.f32 %v4677, %v4752
    %v4774 = vmul.f32 %v4678, %v4753
    %v4775 = vmul.f32 %v4679, %v4751
    %v4776 = vmul.f32 %v4680, %v4752
    %v4777 = vmul.f32 %v4681, %v4753
    %v4778 = vmul.f32 %v4754, 100.0
    %v4779 = vmul.f32 %v4755, 100.0
    %v4780 = vmul.f32 %v4756, 100.0
    %v4781 = vmul.f32 %v4757, 100.0
    %v4782 = vmul.f32 %v4758, 100.0
    %v4783 = vmul.f32 %v4759, 100.0
    %v4784 = vmul.f32 %v4760, 100.0
    %v4785 = vmul.f32 %v4761, 100.0
    %v4786 = vmul.f32 %v4762, 100.0
    %v4787 = vmul.f32 %v4763, 100.0
    %v4788 = vmul.f32 %v4764, 100.0
    %v4789 = vmul.f32 %v4765, 100.0
    %v4790 = vmul.f32 %v4766, 100.0
    %v4791 = vmul.f32 %v4767, 100.0
    %v4792 = vmul.f32 %v4768, 100.0
    %v4793 = vmul.f32 %v4769, 100.0
    %v4794 = vmul.f32 %v4770, 100.0
    %v4795 = vmul.f32 %v4771, 100.0
    %v4796 = vmul.f32 %v4772, 100.0
    %v4797 = vmul.f32 %v4773, 100.0
    %v4798 = vmul.f32 %v4774, 100.0
    %v4799 = vmul.f32 %v4775, 100.0
    %v4800 = vmul.f32 %v4776, 100.0
    %v4801 = vmul.f32 %v4777, 100.0
    %v4802 = vmin.f32 %v4778, 20.0
    %v4803 = vmin.f32 %v4779, 20.0
    %v4804 = vmin.f32 %v4780, 20.0
    %v4805 = vmin.f32 %v4781, 20.0
    %v4806 = vmin.f32 %v4782, 20.0
    %v4807 = vmin.f32 %v4783, 20.0
    %v4808 = vmin.f32 %v4784, 20.0
    %v4809 = vmin.f32 %v4785, 20.0
    %v4810 = vmin.f32 %v4786, 20.0
    %v4811 = vmin.f32 %v4787, 20.0
    %v4812 = vmin.f32 %v4788, 20.0
    %v4813 = vmin.f32 %v4789, 20.0
    %v4814 = vmin.f32 %v4790, 20.0
    %v4815 = vmin.f32 %v4791, 20.0
    %v4816 = vmin.f32 %v4792, 20.0
    %v4817 = vmin.f32 %v4793, 20.0
    %v4818 = vmin.f32 %v4794, 20.0
    %v4819 = vmin.f32 %v4795, 20.0
    %v4820 = vmin.f32 %v4796, 20.0
    %v4821 = vmin.f32 %v4797, 20.0
    %v4822 = vmin.f32 %v4798, 20.0
    %v4823 = vmin.f32 %v4799, 20.0
    %v4824 = vmin.f32 %v4800, 20.0
    %v4825 = vmin.f32 %v4801, 20.0
    %v4826 = vmul.f32 %v4802, 1.442695
    %v4827 = vpow.pop %v4826
    %v4828 = vmul.f32 %v4803, 1.442695
    %v4829 = vpow.pop %v4828
    %v4830 = vmul.f32 %v4804, 1.442695
    %v4831 = vpow.pop %v4830
    %v4832 = vmul.f32 %v4805, 1.442695
    %v4833 = vpow.pop %v4832
    %v4834 = vmul.f32 %v4806, 1.442695
    %v4835 = vpow.pop %v4834
    %v4836 = vmul.f32 %v4807, 1.442695
    %v4837 = vpow.pop %v4836
    %v4838 = vmul.f32 %v4808, 1.442695
    %v4839 = vpow.pop %v4838
    %v4840 = vmul.f32 %v4809, 1.442695
    %v4841 = vpow.pop %v4840
    %v4842 = vmul.f32 %v4810, 1.442695
    %v4843 = vpow.pop %v4842
    %v4844 = vmul.f32 %v4811, 1.442695
    %v4845 = vpow.pop %v4844
    %v4846 = vmul.f32 %v4812, 1.442695
    %v4847 = vpow.pop %v4846
    %v4848 = vmul.f32 %v4813, 1.442695
    %v4849 = vpow.pop %v4848
    %v4850 = vmul.f32 %v4814, 1.442695
    %v4851 = vpow.pop %v4850
    %v4852 = vmul.f32 %v4815, 1.442695
    %v4853 = vpow.pop %v4852
    %v4854 = vmul.f32 %v4816, 1.442695
    %v4855 = vpow.pop %v4854
    %v4856 = vmul.f32 %v4817, 1.442695
    %v4857 = vpow.pop %v4856
    %v4858 = vmul.f32 %v4818, 1.442695
    %v4859 = vpow.pop %v4858
    %v4860 = vmul.f32 %v4819, 1.442695
    %v4861 = vpow.pop %v4860
    %v4862 = vmul.f32 %v4820, 1.442695
    %v4863 = vpow.pop %v4862
    %v4864 = vmul.f32 %v4821, 1.442695
    %v4865 = vpow.pop %v4864
    %v4866 = vmul.f32 %v4822, 1.442695
    %v4867 = vpow.pop %v4866
    %v4868 = vmul.f32 %v4823, 1.442695
    %v4869 = vpow.pop %v4868
    %v4870 = vmul.f32 %v4824, 1.442695
    %v4871 = vpow.pop %v4870
    %v4872 = vmul.f32 %v4825, 1.442695
    %v4873 = vpow.pop %v4872
    %v4874 = vadd.f32 %v4827, 1.0
    %v4875 = vlog2.pop %v4874
    %v4876 = vmul.f32 %v4875, 0.6931472
    %v4877 = vmul.f32 -0.5, %v4827
    %v4878 = vadd.f32 %v4877, 1.0
    %v4879 = vmul.f32 %v4878, %v4827
    %v4880 = vand.u32 2147483647, %v4827
    %vm4881 = vcmp.lt.f32.partialorder %v4880, 0.0004427343
    %v4882 = vsel %vm4881, %v4879, %v4876
    %v4883 = vadd.f32 %v4829, 1.0
    %v4884 = vlog2.pop %v4883
    %v4885 = vmul.f32 %v4884, 0.6931472
    %v4886 = vmul.f32 -0.5, %v4829
    %v4887 = vadd.f32 %v4886, 1.0
    %v4888 = vmul.f32 %v4887, %v4829
    %v4889 = vand.u32 2147483647, %v4829
    %vm4890 = vcmp.lt.f32.partialorder %v4889, 0.0004427343
    %v4891 = vsel %vm4890, %v4888, %v4885
    %v4892 = vadd.f32 %v4831, 1.0
    %v4893 = vlog2.pop %v4892
    %v4894 = vmul.f32 %v4893, 0.6931472
    %v4895 = vmul.f32 -0.5, %v4831
    %v4896 = vadd.f32 %v4895, 1.0
    %v4897 = vmul.f32 %v4896, %v4831
    %v4898 = vand.u32 2147483647, %v4831
    %vm4899 = vcmp.lt.f32.partialorder %v4898, 0.0004427343
    %v4900 = vsel %vm4899, %v4897, %v4894
    %v4901 = vadd.f32 %v4833, 1.0
    %v4902 = vlog2.pop %v4901
    %v4903 = vmul.f32 %v4902, 0.6931472
    %v4904 = vmul.f32 -0.5, %v4833
    %v4905 = vadd.f32 %v4904, 1.0
    %v4906 = vmul.f32 %v4905, %v4833
    %v4907 = vand.u32 2147483647, %v4833
    %vm4908 = vcmp.lt.f32.partialorder %v4907, 0.0004427343
    %v4909 = vsel %vm4908, %v4906, %v4903
    %v4910 = vadd.f32 %v4835, 1.0
    %v4911 = vlog2.pop %v4910
    %v4912 = vmul.f32 %v4911, 0.6931472
    %v4913 = vmul.f32 -0.5, %v4835
    %v4914 = vadd.f32 %v4913, 1.0
    %v4915 = vmul.f32 %v4914, %v4835
    %v4916 = vand.u32 2147483647, %v4835
    %vm4917 = vcmp.lt.f32.partialorder %v4916, 0.0004427343
    %v4918 = vsel %vm4917, %v4915, %v4912
    %v4919 = vadd.f32 %v4837, 1.0
    %v4920 = vlog2.pop %v4919
    %v4921 = vmul.f32 %v4920, 0.6931472
    %v4922 = vmul.f32 -0.5, %v4837
    %v4923 = vadd.f32 %v4922, 1.0
    %v4924 = vmul.f32 %v4923, %v4837
    %v4925 = vand.u32 2147483647, %v4837
    %vm4926 = vcmp.lt.f32.partialorder %v4925, 0.0004427343
    %v4927 = vsel %vm4926, %v4924, %v4921
    %v4928 = vadd.f32 %v4839, 1.0
    %v4929 = vlog2.pop %v4928
    %v4930 = vmul.f32 %v4929, 0.6931472
    %v4931 = vmul.f32 -0.5, %v4839
    %v4932 = vadd.f32 %v4931, 1.0
    %v4933 = vmul.f32 %v4932, %v4839
    %v4934 = vand.u32 2147483647, %v4839
    %vm4935 = vcmp.lt.f32.partialorder %v4934, 0.0004427343
    %v4936 = vsel %vm4935, %v4933, %v4930
    %v4937 = vadd.f32 %v4841, 1.0
    %v4938 = vlog2.pop %v4937
    %v4939 = vmul.f32 %v4938, 0.6931472
    %v4940 = vmul.f32 -0.5, %v4841
    %v4941 = vadd.f32 %v4940, 1.0
    %v4942 = vmul.f32 %v4941, %v4841
    %v4943 = vand.u32 2147483647, %v4841
    %vm4944 = vcmp.lt.f32.partialorder %v4943, 0.0004427343
    %v4945 = vsel %vm4944, %v4942, %v4939
    %v4946 = vadd.f32 %v4843, 1.0
    %v4947 = vlog2.pop %v4946
    %v4948 = vmul.f32 %v4947, 0.6931472
    %v4949 = vmul.f32 -0.5, %v4843
    %v4950 = vadd.f32 %v4949, 1.0
    %v4951 = vmul.f32 %v4950, %v4843
    %v4952 = vand.u32 2147483647, %v4843
    %vm4953 = vcmp.lt.f32.partialorder %v4952, 0.0004427343
    %v4954 = vsel %vm4953, %v4951, %v4948
    %v4955 = vadd.f32 %v4845, 1.0
    %v4956 = vlog2.pop %v4955
    %v4957 = vmul.f32 %v4956, 0.6931472
    %v4958 = vmul.f32 -0.5, %v4845
    %v4959 = vadd.f32 %v4958, 1.0
    %v4960 = vmul.f32 %v4959, %v4845
    %v4961 = vand.u32 2147483647, %v4845
    %vm4962 = vcmp.lt.f32.partialorder %v4961, 0.0004427343
    %v4963 = vsel %vm4962, %v4960, %v4957
    %v4964 = vadd.f32 %v4847, 1.0
    %v4965 = vlog2.pop %v4964
    %v4966 = vmul.f32 %v4965, 0.6931472
    %v4967 = vmul.f32 -0.5, %v4847
    %v4968 = vadd.f32 %v4967, 1.0
    %v4969 = vmul.f32 %v4968, %v4847
    %v4970 = vand.u32 2147483647, %v4847
    %vm4971 = vcmp.lt.f32.partialorder %v4970, 0.0004427343
    %v4972 = vsel %vm4971, %v4969, %v4966
    %v4973 = vadd.f32 %v4849, 1.0
    %v4974 = vlog2.pop %v4973
    %v4975 = vmul.f32 %v4974, 0.6931472
    %v4976 = vmul.f32 -0.5, %v4849
    %v4977 = vadd.f32 %v4976, 1.0
    %v4978 = vmul.f32 %v4977, %v4849
    %v4979 = vand.u32 2147483647, %v4849
    %vm4980 = vcmp.lt.f32.partialorder %v4979, 0.0004427343
    %v4981 = vsel %vm4980, %v4978, %v4975
    %v4982 = vadd.f32 %v4851, 1.0
    %v4983 = vlog2.pop %v4982
    %v4984 = vmul.f32 %v4983, 0.6931472
    %v4985 = vmul.f32 -0.5, %v4851
    %v4986 = vadd.f32 %v4985, 1.0
    %v4987 = vmul.f32 %v4986, %v4851
    %v4988 = vand.u32 2147483647, %v4851
    %vm4989 = vcmp.lt.f32.partialorder %v4988, 0.0004427343
    %v4990 = vsel %vm4989, %v4987, %v4984
    %v4991 = vadd.f32 %v4853, 1.0
    %v4992 = vlog2.pop %v4991
    %v4993 = vmul.f32 %v4992, 0.6931472
    %v4994 = vmul.f32 -0.5, %v4853
    %v4995 = vadd.f32 %v4994, 1.0
    %v4996 = vmul.f32 %v4995, %v4853
    %v4997 = vand.u32 2147483647, %v4853
    %vm4998 = vcmp.lt.f32.partialorder %v4997, 0.0004427343
    %v4999 = vsel %vm4998, %v4996, %v4993
    %v5000 = vadd.f32 %v4855, 1.0
    %v5001 = vlog2.pop %v5000
    %v5002 = vmul.f32 %v5001, 0.6931472
    %v5003 = vmul.f32 -0.5, %v4855
    %v5004 = vadd.f32 %v5003, 1.0
    %v5005 = vmul.f32 %v5004, %v4855
    %v5006 = vand.u32 2147483647, %v4855
    %vm5007 = vcmp.lt.f32.partialorder %v5006, 0.0004427343
    %v5008 = vsel %vm5007, %v5005, %v5002
    %v5009 = vadd.f32 %v4857, 1.0
    %v5010 = vlog2.pop %v5009
    %v5011 = vmul.f32 %v5010, 0.6931472
    %v5012 = vmul.f32 -0.5, %v4857
    %v5013 = vadd.f32 %v5012, 1.0
    %v5014 = vmul.f32 %v5013, %v4857
    %v5015 = vand.u32 2147483647, %v4857
    %vm5016 = vcmp.lt.f32.partialorder %v5015, 0.0004427343
    %v5017 = vsel %vm5016, %v5014, %v5011
    %v5018 = vadd.f32 %v4859, 1.0
    %v5019 = vlog2.pop %v5018
    %v5020 = vmul.f32 %v5019, 0.6931472
    %v5021 = vmul.f32 -0.5, %v4859
    %v5022 = vadd.f32 %v5021, 1.0
    %v5023 = vmul.f32 %v5022, %v4859
    %v5024 = vand.u32 2147483647, %v4859
    %vm5025 = vcmp.lt.f32.partialorder %v5024, 0.0004427343
    %v5026 = vsel %vm5025, %v5023, %v5020
    %v5027 = vadd.f32 %v4861, 1.0
    %v5028 = vlog2.pop %v5027
    %v5029 = vmul.f32 %v5028, 0.6931472
    %v5030 = vmul.f32 -0.5, %v4861
    %v5031 = vadd.f32 %v5030, 1.0
    %v5032 = vmul.f32 %v5031, %v4861
    %v5033 = vand.u32 2147483647, %v4861
    %vm5034 = vcmp.lt.f32.partialorder %v5033, 0.0004427343
    %v5035 = vsel %vm5034, %v5032, %v5029
    %v5036 = vadd.f32 %v4863, 1.0
    %v5037 = vlog2.pop %v5036
    %v5038 = vmul.f32 %v5037, 0.6931472
    %v5039 = vmul.f32 -0.5, %v4863
    %v5040 = vadd.f32 %v5039, 1.0
    %v5041 = vmul.f32 %v5040, %v4863
    %v5042 = vand.u32 2147483647, %v4863
    %vm5043 = vcmp.lt.f32.partialorder %v5042, 0.0004427343
    %v5044 = vsel %vm5043, %v5041, %v5038
    %v5045 = vadd.f32 %v4865, 1.0
    %v5046 = vlog2.pop %v5045
    %v5047 = vmul.f32 %v5046, 0.6931472
    %v5048 = vmul.f32 -0.5, %v4865
    %v5049 = vadd.f32 %v5048, 1.0
    %v5050 = vmul.f32 %v5049, %v4865
    %v5051 = vand.u32 2147483647, %v4865
    %vm5052 = vcmp.lt.f32.partialorder %v5051, 0.0004427343
    %v5053 = vsel %vm5052, %v5050, %v5047
    %v5054 = vadd.f32 %v4867, 1.0
    %v5055 = vlog2.pop %v5054
    %v5056 = vmul.f32 %v5055, 0.6931472
    %v5057 = vmul.f32 -0.5, %v4867
    %v5058 = vadd.f32 %v5057, 1.0
    %v5059 = vmul.f32 %v5058, %v4867
    %v5060 = vand.u32 2147483647, %v4867
    %vm5061 = vcmp.lt.f32.partialorder %v5060, 0.0004427343
    %v5062 = vsel %vm5061, %v5059, %v5056
    %v5063 = vadd.f32 %v4869, 1.0
    %v5064 = vlog2.pop %v5063
    %v5065 = vmul.f32 %v5064, 0.6931472
    %v5066 = vmul.f32 -0.5, %v4869
    %v5067 = vadd.f32 %v5066, 1.0
    %v5068 = vmul.f32 %v5067, %v4869
    %v5069 = vand.u32 2147483647, %v4869
    %vm5070 = vcmp.lt.f32.partialorder %v5069, 0.0004427343
    %v5071 = vsel %vm5070, %v5068, %v5065
    %v5072 = vadd.f32 %v4871, 1.0
    %v5073 = vlog2.pop %v5072
    %v5074 = vmul.f32 %v5073, 0.6931472
    %v5075 = vmul.f32 -0.5, %v4871
    %v5076 = vadd.f32 %v5075, 1.0
    %v5077 = vmul.f32 %v5076, %v4871
    %v5078 = vand.u32 2147483647, %v4871
    %vm5079 = vcmp.lt.f32.partialorder %v5078, 0.0004427343
    %v5080 = vsel %vm5079, %v5077, %v5074
    %v5081 = vadd.f32 %v4873, 1.0
    %v5082 = vlog2.pop %v5081
    %v5083 = vmul.f32 %v5082, 0.6931472
    %v5084 = vmul.f32 -0.5, %v4873
    %v5085 = vadd.f32 %v5084, 1.0
    %v5086 = vmul.f32 %v5085, %v4873
    %v5087 = vand.u32 2147483647, %v4873
    %vm5088 = vcmp.lt.f32.partialorder %v5087, 0.0004427343
    %v5089 = vsel %vm5088, %v5086, %v5083
    %v5090 = vmul.f32 %v4882, %v3446
    %v5091 = vmul.f32 %v4891, %v3446
    %v5092 = vmul.f32 %v4900, %v3446
    %v5093 = vmul.f32 %v4909, %v3446
    %v5094 = vmul.f32 %v4918, %v3446
    %v5095 = vmul.f32 %v4927, %v3446
    %v5096 = vmul.f32 %v4936, %v3446
    %v5097 = vmul.f32 %v4945, %v3446
    %v5098 = vmul.f32 %v4954, %v3446
    %v5099 = vmul.f32 %v4963, %v3446
    %v5100 = vmul.f32 %v4972, %v3446
    %v5101 = vmul.f32 %v4981, %v3446
    %v5102 = vmul.f32 %v4990, %v3446
    %v5103 = vmul.f32 %v4999, %v3446
    %v5104 = vmul.f32 %v5008, %v3446
    %v5105 = vmul.f32 %v5017, %v3446
    %v5106 = vmul.f32 %v5026, %v3446
    %v5107 = vmul.f32 %v5035, %v3446
    %v5108 = vmul.f32 %v5044, %v3446
    %v5109 = vmul.f32 %v5053, %v3446
    %v5110 = vmul.f32 %v5062, %v3446
    %v5111 = vmul.f32 %v5071, %v3446
    %v5112 = vmul.f32 %v5080, %v3446
    %v5113 = vmul.f32 %v5089, %v3446
    %vm5114 = vcmp.gt.f32.partialorder %v4778, 20.0
    %vm5115 = vcmp.gt.f32.partialorder %v4779, 20.0
    %vm5116 = vcmp.gt.f32.partialorder %v4780, 20.0
    %vm5117 = vcmp.gt.f32.partialorder %v4781, 20.0
    %vm5118 = vcmp.gt.f32.partialorder %v4782, 20.0
    %vm5119 = vcmp.gt.f32.partialorder %v4783, 20.0
    %vm5120 = vcmp.gt.f32.partialorder %v4784, 20.0
    %vm5121 = vcmp.gt.f32.partialorder %v4785, 20.0
    %vm5122 = vcmp.gt.f32.partialorder %v4786, 20.0
    %vm5123 = vcmp.gt.f32.partialorder %v4787, 20.0
    %vm5124 = vcmp.gt.f32.partialorder %v4788, 20.0
    %vm5125 = vcmp.gt.f32.partialorder %v4789, 20.0
    %vm5126 = vcmp.gt.f32.partialorder %v4790, 20.0
    %vm5127 = vcmp.gt.f32.partialorder %v4791, 20.0
    %vm5128 = vcmp.gt.f32.partialorder %v4792, 20.0
    %vm5129 = vcmp.gt.f32.partialorder %v4793, 20.0
    %vm5130 = vcmp.gt.f32.partialorder %v4794, 20.0
    %vm5131 = vcmp.gt.f32.partialorder %v4795, 20.0
    %vm5132 = vcmp.gt.f32.partialorder %v4796, 20.0
    %vm5133 = vcmp.gt.f32.partialorder %v4797, 20.0
    %vm5134 = vcmp.gt.f32.partialorder %v4798, 20.0
    %vm5135 = vcmp.gt.f32.partialorder %v4799, 20.0
    %vm5136 = vcmp.gt.f32.partialorder %v4800, 20.0
    %vm5137 = vcmp.gt.f32.partialorder %v4801, 20.0
    %v5138 = vsel %vm5114, %v4754, %v5090
    %v5139 = vsel %vm5115, %v4755, %v5091
    %v5140 = vsel %vm5116, %v4756, %v5092
    %v5141 = vsel %vm5117, %v4757, %v5093
    %v5142 = vsel %vm5118, %v4758, %v5094
    %v5143 = vsel %vm5119, %v4759, %v5095
    %v5144 = vsel %vm5120, %v4760, %v5096
    %v5145 = vsel %vm5121, %v4761, %v5097
    %v5146 = vsel %vm5122, %v4762, %v5098
    %v5147 = vsel %vm5123, %v4763, %v5099
    %v5148 = vsel %vm5124, %v4764, %v5100
    %v5149 = vsel %vm5125, %v4765, %v5101
    %v5150 = vsel %vm5126, %v4766, %v5102
    %v5151 = vsel %vm5127, %v4767, %v5103
    %v5152 = vsel %vm5128, %v4768, %v5104
    %v5153 = vsel %vm5129, %v4769, %v5105
    %v5154 = vsel %vm5130, %v4770, %v5106
    %v5155 = vsel %vm5131, %v4771, %v5107
    %v5156 = vsel %vm5132, %v4772, %v5108
    %v5157 = vsel %vm5133, %v4773, %v5109
    %v5158 = vsel %vm5134, %v4774, %v5110
    %v5159 = vsel %vm5135, %v4775, %v5111
    %v5160 = vsel %vm5136, %v4776, %v5112
    %v5161 = vsel %vm5137, %v4777, %v5113
    %v5162 = vld [vmem:[%s11] sm:$0xf]
    %v5163 = vld [vmem:[%s12] sm:$0xf]
    %v5164 = vld [vmem:[%s13] sm:$0xf]
    %v5166 = vsel %vm2121, %v5164, 0
    %5168 = vmatprep.subr.mxu0 %v449
    %5169 = vmatpush1.msra.mxu0 %v345
    %5170 = vmatprep.subr.mxu0 %v761
    %5171 = vmatpush1.msra.mxu0 %v657
    %5172 = vmatprep.subr.mxu0 %v2151
    %5173 = vmatpush1.msra.mxu0 %v2148
    %5174 = vmatprep.subr.mxu0 0.0
    %5175 = vmatpush1.msra.mxu0 0.0
    %5176 = vmatprep.subr.mxu0 0.0
    %5177 = vmatpush1.msra.mxu0 0.0
    %5178 = vmatprep.subr.mxu0 0.0
    %5179 = vmatpush1.msra.mxu0 0.0
    %5180 = vmatprep.subr.mxu0 0.0
    %5181 = vmatpush1.msra.mxu0 0.0
    %5182 = vmatprep.subr.mxu0 0.0
    %5183 = vmatpush1.msra.mxu0 0.0
    %5184 = vmatprep.subr.mxu0 0.0
    %5185 = vmatpush1.msra.mxu0 0.0
    %5186 = vmatprep.subr.mxu0 0.0
    %5187 = vmatpush1.msra.mxu0 0.0
    %5188 = vmatprep.subr.mxu0 0.0
    %5189 = vmatpush1.msra.mxu0 0.0
    %5190 = vmatprep.subr.mxu0 0.0
    %5191 = vmatpush1.msra.mxu0 0.0
    %5192 = vmatprep.subr.mxu0 0.0
    %5193 = vmatpush1.msra.mxu0 0.0
    %5194 = vmatprep.subr.mxu0 0.0
    %5195 = vmatpush1.msra.mxu0 0.0
    %5196 = vmatprep.subr.mxu0 0.0
    %5197 = vmatpush1.msra.mxu0 0.0
    %5198 = vmatprep.subr.mxu0 0.0
    %5199 = vmatpush1.msra.mxu0 0.0
    %5200 = vmatprep.subr.mxu0 0.0
    %5201 = vmatpush1.msra.mxu0 0.0
    %5202 = vmatprep.subr.mxu0 0.0
    %5203 = vmatpush1.msra.mxu0 0.0
    %5204 = vmatprep.subr.mxu0 0.0
    %5205 = vmatpush1.msra.mxu0 0.0
    %5206 = vmatprep.subr.mxu0 0.0
    %5207 = vmatpush1.msra.mxu0 0.0
    %5208 = vmatprep.subr.mxu0 0.0
    %5209 = vmatpush1.msra.mxu0 0.0
    %5210 = vmatprep.subr.mxu0 0.0
    %5211 = vmatpush1.msra.mxu0 0.0
    %5212 = vmatprep.subr.mxu0 0.0
    %5213 = vmatpush1.msra.mxu0 0.0
    %5214 = vmatprep.subr.mxu0 0.0
    %5215 = vmatpush1.msra.mxu0 0.0
    %5216 = vmatprep.subr.mxu0 0.0
    %5217 = vmatpush1.msra.mxu0 0.0
    %5218 = vmatprep.subr.mxu0 0.0
    %5219 = vmatpush1.msra.mxu0 0.0
    %5220 = vmatprep.subr.mxu0 0.0
    %5221 = vmatpush1.msra.mxu0 0.0
    %5222 = vmatprep.subr.mxu0 0.0
    %5223 = vmatpush1.msra.mxu0 0.0
    %5224 = vmatprep.subr.mxu0 0.0
    %5225 = vmatpush1.msra.mxu0 0.0
    %5226 = vmatprep.subr.mxu0 0.0
    %5227 = vmatpush1.msra.mxu0 0.0
    %5228 = vmatprep.subr.mxu0 0.0
    %5229 = vmatpush1.msra.mxu0 0.0
    %5230 = vmatprep.subr.mxu0 0.0
    %5231 = vmatpush1.msra.mxu0 0.0
    %5232 = vmatprep.mubr.f32.mxu0 0.0
    %5233 = vmatmul.mubr.f32.gmra.mrb[0].mxu0 %v5166
    %v5234 = vpop.f32.mrb[0].mxu0
    %v5235 = vadd.f32 0.0, %v5234
    %v5236 = vpop.f32.mrb[0].mxu0
    %v5237 = vadd.f32 0.0, %v5236
    %5238 = vdwg.mxu0
    %5239 = vmatprep.subr.mxu0 0.0
    %5240 = vmatpush1.msra.mxu0 %v553
    %5241 = vmatprep.subr.mxu0 0.0
    %5242 = vmatpush1.msra.mxu0 %v865
    %5243 = vmatprep.subr.mxu0 0.0
    %5244 = vmatpush1.msra.mxu0 %v2154
    %5245 = vmatprep.subr.mxu0 0.0
    %5246 = vmatpush1.msra.mxu0 0.0
    %5247 = vmatprep.subr.mxu0 0.0
    %5248 = vmatpush1.msra.mxu0 0.0
    %5249 = vmatprep.subr.mxu0 0.0
    %5250 = vmatpush1.msra.mxu0 0.0
    %5251 = vmatprep.subr.mxu0 0.0
    %5252 = vmatpush1.msra.mxu0 0.0
    %5253 = vmatprep.subr.mxu0 0.0
    %5254 = vmatpush1.msra.mxu0 0.0
    %5255 = vmatprep.subr.mxu0 0.0
    %5256 = vmatpush1.msra.mxu0 0.0
    %5257 = vmatprep.subr.mxu0 0.0
    %5258 = vmatpush1.msra.mxu0 0.0
    %5259 = vmatprep.subr.mxu0 0.0
    %5260 = vmatpush1.msra.mxu0 0.0
    %5261 = vmatprep.subr.mxu0 0.0
    %5262 = vmatpush1.msra.mxu0 0.0
    %5263 = vmatprep.subr.mxu0 0.0
    %5264 = vmatpush1.msra.mxu0 0.0
    %5265 = vmatprep.subr.mxu0 0.0
    %5266 = vmatpush1.msra.mxu0 0.0
    %5267 = vmatprep.subr.mxu0 0.0
    %5268 = vmatpush1.msra.mxu0 0.0
    %5269 = vmatprep.subr.mxu0 0.0
    %5270 = vmatpush1.msra.mxu0 0.0
    %5271 = vmatprep.subr.mxu0 0.0
    %5272 = vmatpush1.msra.mxu0 0.0
    %5273 = vmatprep.subr.mxu0 0.0
    %5274 = vmatpush1.msra.mxu0 0.0
    %5275 = vmatprep.subr.mxu0 0.0
    %5276 = vmatpush1.msra.mxu0 0.0
    %5277 = vmatprep.subr.mxu0 0.0
    %5278 = vmatpush1.msra.mxu0 0.0
    %5279 = vmatprep.subr.mxu0 0.0
    %5280 = vmatpush1.msra.mxu0 0.0
    %5281 = vmatprep.subr.mxu0 0.0
    %5282 = vmatpush1.msra.mxu0 0.0
    %5283 = vmatprep.subr.mxu0 0.0
    %5284 = vmatpush1.msra.mxu0 0.0
    %5285 = vmatprep.subr.mxu0 0.0
    %5286 = vmatpush1.msra.mxu0 0.0
    %5287 = vmatprep.subr.mxu0 0.0
    %5288 = vmatpush1.msra.mxu0 0.0
    %5289 = vmatprep.subr.mxu0 0.0
    %5290 = vmatpush1.msra.mxu0 0.0
    %5291 = vmatprep.subr.mxu0 0.0
    %5292 = vmatpush1.msra.mxu0 0.0
    %5293 = vmatprep.subr.mxu0 0.0
    %5294 = vmatpush1.msra.mxu0 0.0
    %5295 = vmatprep.subr.mxu0 0.0
    %5296 = vmatpush1.msra.mxu0 0.0
    %5297 = vmatprep.subr.mxu0 0.0
    %5298 = vmatpush1.msra.mxu0 0.0
    %5299 = vmatprep.subr.mxu0 0.0
    %5300 = vmatpush1.msra.mxu0 0.0
    %5301 = vmatprep.subr.mxu0 0.0
    %5302 = vmatpush1.msra.mxu0 0.0
    %5303 = vmatprep.mubr.f32.mxu0 0.0
    %5304 = vmatmul.mubr.f32.gmra.mrb[0].mxu0 %v5166
    %v5305 = vpop.f32.mrb[0].mxu0
    %v5306 = vadd.f32 0.0, %v5305
    %v5307 = vpop.f32.mrb[0].mxu0
    %5308 = vdwg.mxu0
    %v5310 = vsel %vm62, %v5163, 0
    %5312 = vmatprep.subr.mxu0 %v75
    %5313 = vmatpush1.msra.mxu0 %v73
    %5314 = vmatprep.subr.mxu0 0.0
    %5315 = vmatpush1.msra.mxu0 0.0
    %5316 = vmatprep.subr.mxu0 0.0
    %5317 = vmatpush1.msra.mxu0 0.0
    %5318 = vmatprep.subr.mxu0 0.0
    %5319 = vmatpush1.msra.mxu0 0.0
    %5320 = vmatprep.subr.mxu0 0.0
    %5321 = vmatpush1.msra.mxu0 0.0
    %5322 = vmatprep.subr.mxu0 0.0
    %5323 = vmatpush1.msra.mxu0 0.0
    %5324 = vmatprep.subr.mxu0 0.0
    %5325 = vmatpush1.msra.mxu0 0.0
    %5326 = vmatprep.subr.mxu0 0.0
    %5327 = vmatpush1.msra.mxu0 0.0
    %5328 = vmatprep.subr.mxu0 0.0
    %5329 = vmatpush1.msra.mxu0 0.0
    %5330 = vmatprep.subr.mxu0 0.0
    %5331 = vmatpush1.msra.mxu0 0.0
    %5332 = vmatprep.subr.mxu0 0.0
    %5333 = vmatpush1.msra.mxu0 0.0
    %5334 = vmatprep.subr.mxu0 0.0
    %5335 = vmatpush1.msra.mxu0 0.0
    %5336 = vmatprep.subr.mxu0 0.0
    %5337 = vmatpush1.msra.mxu0 0.0
    %5338 = vmatprep.subr.mxu0 0.0
    %5339 = vmatpush1.msra.mxu0 0.0
    %5340 = vmatprep.subr.mxu0 0.0
    %5341 = vmatpush1.msra.mxu0 0.0
    %5342 = vmatprep.subr.mxu0 0.0
    %5343 = vmatpush1.msra.mxu0 0.0
    %5344 = vmatprep.subr.mxu0 0.0
    %5345 = vmatpush1.msra.mxu0 0.0
    %5346 = vmatprep.subr.mxu0 0.0
    %5347 = vmatpush1.msra.mxu0 0.0
    %5348 = vmatprep.subr.mxu0 0.0
    %5349 = vmatpush1.msra.mxu0 0.0
    %5350 = vmatprep.subr.mxu0 0.0
    %5351 = vmatpush1.msra.mxu0 0.0
    %5352 = vmatprep.subr.mxu0 0.0
    %5353 = vmatpush1.msra.mxu0 0.0
    %5354 = vmatprep.subr.mxu0 0.0
    %5355 = vmatpush1.msra.mxu0 0.0
    %5356 = vmatprep.subr.mxu0 0.0
    %5357 = vmatpush1.msra.mxu0 0.0
    %5358 = vmatprep.subr.mxu0 0.0
    %5359 = vmatpush1.msra.mxu0 0.0
    %5360 = vmatprep.subr.mxu0 0.0
    %5361 = vmatpush1.msra.mxu0 0.0
    %5362 = vmatprep.subr.mxu0 0.0
    %5363 = vmatpush1.msra.mxu0 0.0
    %5364 = vmatprep.subr.mxu0 0.0
    %5365 = vmatpush1.msra.mxu0 0.0
    %5366 = vmatprep.subr.mxu0 0.0
    %5367 = vmatpush1.msra.mxu0 0.0
    %5368 = vmatprep.subr.mxu0 0.0
    %5369 = vmatpush1.msra.mxu0 0.0
    %5370 = vmatprep.subr.mxu0 0.0
    %5371 = vmatpush1.msra.mxu0 0.0
    %5372 = vmatprep.subr.mxu0 0.0
    %5373 = vmatpush1.msra.mxu0 0.0
    %5374 = vmatprep.subr.mxu0 0.0
    %5375 = vmatpush1.msra.mxu0 0.0
    %5376 = vmatprep.mubr.f32.mxu0 0.0
    %5377 = vmatmul.mubr.f32.gmra.mrb[0].mxu0 %v5310
    %v5378 = vpop.f32.mrb[0].mxu0
    %v5379 = vadd.f32 %v5235, %v5378
    %v5380 = vpop.f32.mrb[0].mxu0
    %v5381 = vadd.f32 %v5237, %v5380
    %5382 = vdwg.mxu0
    %5383 = vmatprep.subr.mxu0 0.0
    %5384 = vmatpush1.msra.mxu0 %v77
    %5385 = vmatprep.subr.mxu0 0.0
    %5386 = vmatpush1.msra.mxu0 0.0
    %5387 = vmatprep.subr.mxu0 0.0
    %5388 = vmatpush1.msra.mxu0 0.0
    %5389 = vmatprep.subr.mxu0 0.0
    %5390 = vmatpush1.msra.mxu0 0.0
    %5391 = vmatprep.subr.mxu0 0.0
    %5392 = vmatpush1.msra.mxu0 0.0
    %5393 = vmatprep.subr.mxu0 0.0
    %5394 = vmatpush1.msra.mxu0 0.0
    %5395 = vmatprep.subr.mxu0 0.0
    %5396 = vmatpush1.msra.mxu0 0.0
    %5397 = vmatprep.subr.mxu0 0.0
    %5398 = vmatpush1.msra.mxu0 0.0
    %5399 = vmatprep.subr.mxu0 0.0
    %5400 = vmatpush1.msra.mxu0 0.0
    %5401 = vmatprep.subr.mxu0 0.0
    %5402 = vmatpush1.msra.mxu0 0.0
    %5403 = vmatprep.subr.mxu0 0.0
    %5404 = vmatpush1.msra.mxu0 0.0
    %5405 = vmatprep.subr.mxu0 0.0
    %5406 = vmatpush1.msra.mxu0 0.0
    %5407 = vmatprep.subr.mxu0 0.0
    %5408 = vmatpush1.msra.mxu0 0.0
    %5409 = vmatprep.subr.mxu0 0.0
    %5410 = vmatpush1.msra.mxu0 0.0
    %5411 = vmatprep.subr.mxu0 0.0
    %5412 = vmatpush1.msra.mxu0 0.0
    %5413 = vmatprep.subr.mxu0 0.0
    %5414 = vmatpush1.msra.mxu0 0.0
    %5415 = vmatprep.subr.mxu0 0.0
    %5416 = vmatpush1.msra.mxu0 0.0
    %5417 = vmatprep.subr.mxu0 0.0
    %5418 = vmatpush1.msra.mxu0 0.0
    %5419 = vmatprep.subr.mxu0 0.0
    %5420 = vmatpush1.msra.mxu0 0.0
    %5421 = vmatprep.subr.mxu0 0.0
    %5422 = vmatpush1.msra.mxu0 0.0
    %5423 = vmatprep.subr.mxu0 0.0
    %5424 = vmatpush1.msra.mxu0 0.0
    %5425 = vmatprep.subr.mxu0 0.0
    %5426 = vmatpush1.msra.mxu0 0.0
    %5427 = vmatprep.subr.mxu0 0.0
    %5428 = vmatpush1.msra.mxu0 0.0
    %5429 = vmatprep.subr.mxu0 0.0
    %5430 = vmatpush1.msra.mxu0 0.0
    %5431 = vmatprep.subr.mxu0 0.0
    %5432 = vmatpush1.msra.mxu0 0.0
    %5433 = vmatprep.subr.mxu0 0.0
    %5434 = vmatpush1.msra.mxu0 0.0
    %5435 = vmatprep.subr.mxu0 0.0
    %5436 = vmatpush1.msra.mxu0 0.0
    %5437 = vmatprep.subr.mxu0 0.0
    %5438 = vmatpush1.msra.mxu0 0.0
    %5439 = vmatprep.subr.mxu0 0.0
    %5440 = vmatpush1.msra.mxu0 0.0
    %5441 = vmatprep.subr.mxu0 0.0
    %5442 = vmatpush1.msra.mxu0 0.0
    %5443 = vmatprep.subr.mxu0 0.0
    %5444 = vmatpush1.msra.mxu0 0.0
    %5445 = vmatprep.subr.mxu0 0.0
    %5446 = vmatpush1.msra.mxu0 0.0
    %5447 = vmatprep.mubr.f32.mxu0 0.0
    %5448 = vmatmul.mubr.f32.gmra.mrb[0].mxu0 %v5310
    %v5449 = vpop.f32.mrb[0].mxu0
    %v5450 = vadd.f32 %v5306, %v5449
    %v5451 = vpop.f32.mrb[0].mxu0
    %5452 = vdwg.mxu0
    %v5453 = vld [vmem:[%s14] sm:$0xf]
    %v5455 = vsel %vm2121, %v5453, 0
    %5457 = vmatprep.subr.mxu0 %v1383
    %5458 = vmatpush1.msra.mxu0 %v1280
    %5459 = vmatprep.subr.mxu0 %v1692
    %5460 = vmatpush1.msra.mxu0 %v1589
    %5461 = vmatprep.subr.mxu0 %v2652
    %5462 = vmatpush1.msra.mxu0 %v2649
    %5463 = vmatprep.subr.mxu0 0.0
    %5464 = vmatpush1.msra.mxu0 0.0
    %5465 = vmatprep.subr.mxu0 0.0
    %5466 = vmatpush1.msra.mxu0 0.0
    %5467 = vmatprep.subr.mxu0 0.0
    %5468 = vmatpush1.msra.mxu0 0.0
    %5469 = vmatprep.subr.mxu0 0.0
    %5470 = vmatpush1.msra.mxu0 0.0
    %5471 = vmatprep.subr.mxu0 0.0
    %5472 = vmatpush1.msra.mxu0 0.0
    %5473 = vmatprep.subr.mxu0 0.0
    %5474 = vmatpush1.msra.mxu0 0.0
    %5475 = vmatprep.subr.mxu0 0.0
    %5476 = vmatpush1.msra.mxu0 0.0
    %5477 = vmatprep.subr.mxu0 0.0
    %5478 = vmatpush1.msra.mxu0 0.0
    %5479 = vmatprep.subr.mxu0 0.0
    %5480 = vmatpush1.msra.mxu0 0.0
    %5481 = vmatprep.subr.mxu0 0.0
    %5482 = vmatpush1.msra.mxu0 0.0
    %5483 = vmatprep.subr.mxu0 0.0
    %5484 = vmatpush1.msra.mxu0 0.0
    %5485 = vmatprep.subr.mxu0 0.0
    %5486 = vmatpush1.msra.mxu0 0.0
    %5487 = vmatprep.subr.mxu0 0.0
    %5488 = vmatpush1.msra.mxu0 0.0
    %5489 = vmatprep.subr.mxu0 0.0
    %5490 = vmatpush1.msra.mxu0 0.0
    %5491 = vmatprep.subr.mxu0 0.0
    %5492 = vmatpush1.msra.mxu0 0.0
    %5493 = vmatprep.subr.mxu0 0.0
    %5494 = vmatpush1.msra.mxu0 0.0
    %5495 = vmatprep.subr.mxu0 0.0
    %5496 = vmatpush1.msra.mxu0 0.0
    %5497 = vmatprep.subr.mxu0 0.0
    %5498 = vmatpush1.msra.mxu0 0.0
    %5499 = vmatprep.subr.mxu0 0.0
    %5500 = vmatpush1.msra.mxu0 0.0
    %5501 = vmatprep.subr.mxu0 0.0
    %5502 = vmatpush1.msra.mxu0 0.0
    %5503 = vmatprep.subr.mxu0 0.0
    %5504 = vmatpush1.msra.mxu0 0.0
    %5505 = vmatprep.subr.mxu0 0.0
    %5506 = vmatpush1.msra.mxu0 0.0
    %5507 = vmatprep.subr.mxu0 0.0
    %5508 = vmatpush1.msra.mxu0 0.0
    %5509 = vmatprep.subr.mxu0 0.0
    %5510 = vmatpush1.msra.mxu0 0.0
    %5511 = vmatprep.subr.mxu0 0.0
    %5512 = vmatpush1.msra.mxu0 0.0
    %5513 = vmatprep.subr.mxu0 0.0
    %5514 = vmatpush1.msra.mxu0 0.0
    %5515 = vmatprep.subr.mxu0 0.0
    %5516 = vmatpush1.msra.mxu0 0.0
    %5517 = vmatprep.subr.mxu0 0.0
    %5518 = vmatpush1.msra.mxu0 0.0
    %5519 = vmatprep.subr.mxu0 0.0
    %5520 = vmatpush1.msra.mxu0 0.0
    %5521 = vmatprep.mubr.f32.mxu0 0.0
    %5522 = vmatmul.mubr.f32.gmra.mrb[0].mxu0 %v5455
    %v5523 = vpop.f32.mrb[0].mxu0
    %v5524 = vadd.f32 0.0, %v5523
    %v5525 = vpop.f32.mrb[0].mxu0
    %v5526 = vadd.f32 0.0, %v5525
    %5527 = vdwg.mxu0
    %5528 = vmatprep.subr.mxu0 0.0
    %5529 = vmatpush1.msra.mxu0 %v1486
    %5530 = vmatprep.subr.mxu0 0.0
    %5531 = vmatpush1.msra.mxu0 %v1795
    %5532 = vmatprep.subr.mxu0 0.0
    %5533 = vmatpush1.msra.mxu0 %v2655
    %5534 = vmatprep.subr.mxu0 0.0
    %5535 = vmatpush1.msra.mxu0 0.0
    %5536 = vmatprep.subr.mxu0 0.0
    %5537 = vmatpush1.msra.mxu0 0.0
    %5538 = vmatprep.subr.mxu0 0.0
    %5539 = vmatpush1.msra.mxu0 0.0
    %5540 = vmatprep.subr.mxu0 0.0
    %5541 = vmatpush1.msra.mxu0 0.0
    %5542 = vmatprep.subr.mxu0 0.0
    %5543 = vmatpush1.msra.mxu0 0.0
    %5544 = vmatprep.subr.mxu0 0.0
    %5545 = vmatpush1.msra.mxu0 0.0
    %5546 = vmatprep.subr.mxu0 0.0
    %5547 = vmatpush1.msra.mxu0 0.0
    %5548 = vmatprep.subr.mxu0 0.0
    %5549 = vmatpush1.msra.mxu0 0.0
    %5550 = vmatprep.subr.mxu0 0.0
    %5551 = vmatpush1.msra.mxu0 0.0
    %5552 = vmatprep.subr.mxu0 0.0
    %5553 = vmatpush1.msra.mxu0 0.0
    %5554 = vmatprep.subr.mxu0 0.0
    %5555 = vmatpush1.msra.mxu0 0.0
    %5556 = vmatprep.subr.mxu0 0.0
    %5557 = vmatpush1.msra.mxu0 0.0
    %5558 = vmatprep.subr.mxu0 0.0
    %5559 = vmatpush1.msra.mxu0 0.0
    %5560 = vmatprep.subr.mxu0 0.0
    %5561 = vmatpush1.msra.mxu0 0.0
    %5562 = vmatprep.subr.mxu0 0.0
    %5563 = vmatpush1.msra.mxu0 0.0
    %5564 = vmatprep.subr.mxu0 0.0
    %5565 = vmatpush1.msra.mxu0 0.0
    %5566 = vmatprep.subr.mxu0 0.0
    %5567 = vmatpush1.msra.mxu0 0.0
    %5568 = vmatprep.subr.mxu0 0.0
    %5569 = vmatpush1.msra.mxu0 0.0
    %5570 = vmatprep.subr.mxu0 0.0
    %5571 = vmatpush1.msra.mxu0 0.0
    %5572 = vmatprep.subr.mxu0 0.0
    %5573 = vmatpush1.msra.mxu0 0.0
    %5574 = vmatprep.subr.mxu0 0.0
    %5575 = vmatpush1.msra.mxu0 0.0
    %5576 = vmatprep.subr.mxu0 0.0
    %5577 = vmatpush1.msra.mxu0 0.0
    %5578 = vmatprep.subr.mxu0 0.0
    %5579 = vmatpush1.msra.mxu0 0.0
    %5580 = vmatprep.subr.mxu0 0.0
    %5581 = vmatpush1.msra.mxu0 0.0
    %5582 = vmatprep.subr.mxu0 0.0
    %5583 = vmatpush1.msra.mxu0 0.0
    %5584 = vmatprep.subr.mxu0 0.0
    %5585 = vmatpush1.msra.mxu0 0.0
    %5586 = vmatprep.subr.mxu0 0.0
    %5587 = vmatpush1.msra.mxu0 0.0
    %5588 = vmatprep.subr.mxu0 0.0
    %5589 = vmatpush1.msra.mxu0 0.0
    %5590 = vmatprep.subr.mxu0 0.0
    %5591 = vmatpush1.msra.mxu0 0.0
    %5592 = vmatprep.mubr.f32.mxu0 0.0
    %5593 = vmatmul.mubr.f32.gmra.mrb[0].mxu0 %v5455
    %v5594 = vpop.f32.mrb[0].mxu0
    %v5595 = vadd.f32 0.0, %v5594
    %v5596 = vpop.f32.mrb[0].mxu0
    %5597 = vdwg.mxu0
    %v5598 = vadd.f32 %v5379, %v5524
    %v5599 = vadd.f32 %v5381, %v5526
    %v5600 = vadd.f32 %v5450, %v5595
    %v5602 = vsel %vm4301, %v5162, 0
    %5604 = vmatprep.subr.mxu0 %v5139
    %5605 = vmatpush1.msra.mxu0 %v5138
    %5606 = vmatprep.subr.mxu0 %v5142
    %5607 = vmatpush1.msra.mxu0 %v5141
    %5608 = vmatprep.subr.mxu0 %v5145
    %5609 = vmatpush1.msra.mxu0 %v5144
    %5610 = vmatprep.subr.mxu0 %v5148
    %5611 = vmatpush1.msra.mxu0 %v5147
    %5612 = vmatprep.subr.mxu0 %v5151
    %5613 = vmatpush1.msra.mxu0 %v5150
    %5614 = vmatprep.subr.mxu0 %v5154
    %5615 = vmatpush1.msra.mxu0 %v5153
    %5616 = vmatprep.subr.mxu0 %v5157
    %5617 = vmatpush1.msra.mxu0 %v5156
    %5618 = vmatprep.subr.mxu0 %v5160
    %5619 = vmatpush1.msra.mxu0 %v5159
    %5620 = vmatprep.subr.mxu0 0.0
    %5621 = vmatpush1.msra.mxu0 0.0
    %5622 = vmatprep.subr.mxu0 0.0
    %5623 = vmatpush1.msra.mxu0 0.0
    %5624 = vmatprep.subr.mxu0 0.0
    %5625 = vmatpush1.msra.mxu0 0.0
    %5626 = vmatprep.subr.mxu0 0.0
    %5627 = vmatpush1.msra.mxu0 0.0
    %5628 = vmatprep.subr.mxu0 0.0
    %5629 = vmatpush1.msra.mxu0 0.0
    %5630 = vmatprep.subr.mxu0 0.0
    %5631 = vmatpush1.msra.mxu0 0.0
    %5632 = vmatprep.subr.mxu0 0.0
    %5633 = vmatpush1.msra.mxu0 0.0
    %5634 = vmatprep.subr.mxu0 0.0
    %5635 = vmatpush1.msra.mxu0 0.0
    %5636 = vmatprep.subr.mxu0 0.0
    %5637 = vmatpush1.msra.mxu0 0.0
    %5638 = vmatprep.subr.mxu0 0.0
    %5639 = vmatpush1.msra.mxu0 0.0
    %5640 = vmatprep.subr.mxu0 0.0
    %5641 = vmatpush1.msra.mxu0 0.0
    %5642 = vmatprep.subr.mxu0 0.0
    %5643 = vmatpush1.msra.mxu0 0.0
    %5644 = vmatprep.subr.mxu0 0.0
    %5645 = vmatpush1.msra.mxu0 0.0
    %5646 = vmatprep.subr.mxu0 0.0
    %5647 = vmatpush1.msra.mxu0 0.0
    %5648 = vmatprep.subr.mxu0 0.0
    %5649 = vmatpush1.msra.mxu0 0.0
    %5650 = vmatprep.subr.mxu0 0.0
    %5651 = vmatpush1.msra.mxu0 0.0
    %5652 = vmatprep.subr.mxu0 0.0
    %5653 = vmatpush1.msra.mxu0 0.0
    %5654 = vmatprep.subr.mxu0 0.0
    %5655 = vmatpush1.msra.mxu0 0.0
    %5656 = vmatprep.subr.mxu0 0.0
    %5657 = vmatpush1.msra.mxu0 0.0
    %5658 = vmatprep.subr.mxu0 0.0
    %5659 = vmatpush1.msra.mxu0 0.0
    %5660 = vmatprep.subr.mxu0 0.0
    %5661 = vmatpush1.msra.mxu0 0.0
    %5662 = vmatprep.subr.mxu0 0.0
    %5663 = vmatpush1.msra.mxu0 0.0
    %5664 = vmatprep.subr.mxu0 0.0
    %5665 = vmatpush1.msra.mxu0 0.0
    %5666 = vmatprep.subr.mxu0 0.0
    %5667 = vmatpush1.msra.mxu0 0.0
    %5668 = vmatprep.mubr.f32.mxu0 0.0
    %5669 = vmatmul.mubr.f32.gmra.mrb[0].mxu0 %v5602
    %v5670 = vpop.f32.mrb[0].mxu0
    %v5671 = vadd.f32 %v5598, %v5670
    %v5672 = vpop.f32.mrb[0].mxu0
    %v5673 = vadd.f32 %v5599, %v5672
    %5674 = vdwg.mxu0
    %5675 = vmatprep.subr.mxu0 0.0
    %5676 = vmatpush1.msra.mxu0 %v5140
    %5677 = vmatprep.subr.mxu0 0.0
    %5678 = vmatpush1.msra.mxu0 %v5143
    %5679 = vmatprep.subr.mxu0 0.0
    %5680 = vmatpush1.msra.mxu0 %v5146
    %5681 = vmatprep.subr.mxu0 0.0
    %5682 = vmatpush1.msra.mxu0 %v5149
    %5683 = vmatprep.subr.mxu0 0.0
    %5684 = vmatpush1.msra.mxu0 %v5152
    %5685 = vmatprep.subr.mxu0 0.0
    %5686 = vmatpush1.msra.mxu0 %v5155
    %5687 = vmatprep.subr.mxu0 0.0
    %5688 = vmatpush1.msra.mxu0 %v5158
    %5689 = vmatprep.subr.mxu0 0.0
    %5690 = vmatpush1.msra.mxu0 %v5161
    %5691 = vmatprep.subr.mxu0 0.0
    %5692 = vmatpush1.msra.mxu0 0.0
    %5693 = vmatprep.subr.mxu0 0.0
    %5694 = vmatpush1.msra.mxu0 0.0
    %5695 = vmatprep.subr.mxu0 0.0
    %5696 = vmatpush1.msra.mxu0 0.0
    %5697 = vmatprep.subr.mxu0 0.0
    %5698 = vmatpush1.msra.mxu0 0.0
    %5699 = vmatprep.subr.mxu0 0.0
    %5700 = vmatpush1.msra.mxu0 0.0
    %5701 = vmatprep.subr.mxu0 0.0
    %5702 = vmatpush1.msra.mxu0 0.0
    %5703 = vmatprep.subr.mxu0 0.0
    %5704 = vmatpush1.msra.mxu0 0.0
    %5705 = vmatprep.subr.mxu0 0.0
    %5706 = vmatpush1.msra.mxu0 0.0
    %5707 = vmatprep.subr.mxu0 0.0
    %5708 = vmatpush1.msra.mxu0 0.0
    %5709 = vmatprep.subr.mxu0 0.0
    %5710 = vmatpush1.msra.mxu0 0.0
    %5711 = vmatprep.subr.mxu0 0.0
    %5712 = vmatpush1.msra.mxu0 0.0
    %5713 = vmatprep.subr.mxu0 0.0
    %5714 = vmatpush1.msra.mxu0 0.0
    %5715 = vmatprep.subr.mxu0 0.0
    %5716 = vmatpush1.msra.mxu0 0.0
    %5717 = vmatprep.subr.mxu0 0.0
    %5718 = vmatpush1.msra.mxu0 0.0
    %5719 = vmatprep.subr.mxu0 0.0
    %5720 = vmatpush1.msra.mxu0 0.0
    %5721 = vmatprep.subr.mxu0 0.0
    %5722 = vmatpush1.msra.mxu0 0.0
    %5723 = vmatprep.subr.mxu0 0.0
    %5724 = vmatpush1.msra.mxu0 0.0
    %5725 = vmatprep.subr.mxu0 0.0
    %5726 = vmatpush1.msra.mxu0 0.0
    %5727 = vmatprep.subr.mxu0 0.0
    %5728 = vmatpush1.msra.mxu0 0.0
    %5729 = vmatprep.subr.mxu0 0.0
    %5730 = vmatpush1.msra.mxu0 0.0
    %5731 = vmatprep.subr.mxu0 0.0
    %5732 = vmatpush1.msra.mxu0 0.0
    %5733 = vmatprep.subr.mxu0 0.0
    %5734 = vmatpush1.msra.mxu0 0.0
    %5735 = vmatprep.subr.mxu0 0.0
    %5736 = vmatpush1.msra.mxu0 0.0
    %5737 = vmatprep.subr.mxu0 0.0
    %5738 = vmatpush1.msra.mxu0 0.0
    %5739 = vmatprep.mubr.f32.mxu0 0.0
    %5740 = vmatmul.mubr.f32.gmra.mrb[0].mxu0 %v5602
    %v5741 = vpop.f32.mrb[0].mxu0
    %v5742 = vadd.f32 %v5600, %v5741
    %v5743 = vpop.f32.mrb[0].mxu0
    %5744 = vdwg.mxu0
    %v5745 = vld [vmem:[%s15] sm:$0xf]
    %5747 = vset.pattern.permute.xlu0 0
    %5748 = vperm.xlu0 %5747, %v5745
    %v5749 = vpop.permute.xlu0 %5748
    %v5751 = vadd.f32 %v5671, %v5749
    %v5752 = vadd.f32 %v5673, %v5749
    %v5753 = vadd.f32 %v5742, %v5749
    %v5756 = vcombine.low %v5751, %v5752
    %5758 = vst [vmem:[#allocation2] sm:$0xff] %v5756
    %5759 = vst [vmem:[#allocation2 + $0x8] sm:$0xf] %v5753
    // Predicated region
    $region66: #{tpu_custom_call.1} parent=1 // pred_check
      _
    $region67: #{tpu_custom_call.1} parent=1 // pred_check_branch
      %5761 = sbr.rel (0) target = $region69
    $region68: #{tpu_custom_call.1} parent=1 // pred_region
      %s5763 = ssub.s32 192, 192
      %5764 = vsyncadd [#allocation3], %s5763
      %s5766 = sshll.u32 [#allocation2], 4
      %s5767 = int_to_ptr.vmem [resolvable:$true] %s5766
      %5769 = dma.vmem_to_hbm [thread:$0]  %s5767, 192, %s16, [#allocation3]
    $region69: #{tpu_custom_call.1} parent=1 // pred_fallthru
      _
    // Predicated region
    $region70: #{tpu_custom_call.1} parent=1 // pred_check
      _
    $region71: #{tpu_custom_call.1} parent=1 // pred_check_branch
      %5771 = sbr.rel (0) target = $region73
    $region72: #{tpu_custom_call.1} parent=1 // pred_region
      %5772 = dma.done [#allocation3], 192
    $region73: #{tpu_custom_call.1} parent=1 // pred_fallthru
      _
    %5773 = vsyncpa [#allocation3], 1

</llo_original>
